<compile_context>
chip_gen: v5e
topology: v5e:2x2
jax: 0.10.0
libtpu: 0.0.40
codegen_flags: <defaults>
</compile_context>

<pallas_src>
import functools
import math

import jax
import jax.numpy as jnp
from jax.experimental import pallas as pl
from jax.experimental.pallas import tpu as pltpu

# Module hyper-parameters (defaults of TransformerClassifier / nn.TransformerEncoderLayer)
VOCAB = 528
NUM_CLASSES = 10
D_MODEL = 128
NHEAD = 8
NUM_LAYERS = 6
DIM_FF = 2048          # nn.TransformerEncoderLayer default dim_feedforward
LN_EPS = 1e-5

FC_PAD = 128           # pad classifier output to a full lane width
FF_CHUNK = 512         # FFN hidden-dim tile


# ----------------------------- helpers --------------------------------------

def _layer_norm(x, w, b, eps=LN_EPS):
    mu = jnp.mean(x, axis=-1, keepdims=True)
    var = jnp.mean((x - mu) ** 2, axis=-1, keepdims=True)
    return (x - mu) * jax.lax.rsqrt(var + eps) * w + b


def positional_encoding(seq_len, d_model):
    position = jnp.arange(seq_len, dtype=jnp.float32)[:, None]
    div_term = jnp.exp(
        -jnp.arange(0, d_model, 2, dtype=jnp.float32) * (math.log(10000.0) / d_model))
    pe = jnp.zeros((seq_len, d_model), jnp.float32)
    pe = pe.at[:, 0::2].set(jnp.sin(position * div_term))
    pe = pe.at[:, 1::2].set(jnp.cos(position * div_term))
    return pe


def _const_spec(shape):
    n = len(shape)
    return pl.BlockSpec(shape, lambda l, _n=n: (0,) * _n)


def _layer_spec(stacked_shape):
    # stacked_shape = (L, a, b); one layer's slab per grid step (double-buffered).
    return pl.BlockSpec((1,) + tuple(stacked_shape[1:]), lambda l: (l, 0, 0))


# ----------------------------- fused kernel ---------------------------------

def encoder_stack_kernel(emb_ref, pe_ref,
                         wqkv_ref, bqkv_ref, wo_ref, bo_ref,
                         ln1w_ref, ln1b_ref,
                         w1_ref, b1_ref, w2_ref, b2_ref,
                         ln2w_ref, ln2b_ref,
                         fcw_ref, fcb_ref,
                         out_ref, x_scratch):
    # One post-norm nn.TransformerEncoderLayer per grid step (ReLU FFN).
    # TODO(synk): dropout (p=0.1) has no deterministic equivalent; eval-mode identity.
    l = pl.program_id(0)
    B, S, D = x_scratch.shape
    H = NHEAD
    dh = D // H
    BS = B * S
    inv_sqrt_dh = 1.0 / math.sqrt(dh)

    # Layer 0: embed * sqrt(D) + positional encoding (x stays in VMEM afterwards).
    @pl.when(l == 0)
    def _():
        x_scratch[...] = emb_ref[...] * math.sqrt(D_MODEL) + pe_ref[...][None, :, :]

    x2d = x_scratch[...].reshape(BS, D)                        # (BS, D) f32

    # ---- fused QKV projection (bf16 weights, f32 accumulation) ----
    qkv = jnp.dot(x2d.astype(jnp.bfloat16), wqkv_ref[0],
                  preferred_element_type=jnp.float32) + bqkv_ref[0]   # (BS, 3D)
    q3 = qkv[:, :D].reshape(B, S, D)
    k3 = qkv[:, D:2 * D].reshape(B, S, D)
    v3 = qkv[:, 2 * D:].reshape(B, S, D)

    # ---- multi-head attention: heads unrolled, batched over B ----
    # Output projection is folded into a per-head accumulation:
    #   concat_h(head_h) @ Wo == sum_h head_h @ Wo[h*dh:(h+1)*dh, :]
    # so every store is a full-width (BS, D) write (no masked partial stores).
    wo = wo_ref[0]                                             # (D, D) bf16
    attn = jnp.zeros((BS, D), jnp.float32)
    for h in range(H):
        lo = h * dh
        qh = q3[:, :, lo:lo + dh]                              # (B, S, dh)
        kh = k3[:, :, lo:lo + dh]
        vh = v3[:, :, lo:lo + dh]
        sc = jax.lax.dot_general(qh, kh, (((2,), (2,)), ((0,), (0,))),
                                 preferred_element_type=jnp.float32) * inv_sqrt_dh
        sc = sc - jnp.max(sc, axis=-1, keepdims=True)          # stable softmax (f32)
        p = jnp.exp(sc)
        p = p * pl.reciprocal(jnp.sum(p, axis=-1, keepdims=True), approx=True)
        oh = jax.lax.dot_general(p, vh, (((2,), (1,)), ((0,), (0,))),
                                 preferred_element_type=jnp.float32)  # (B, S, dh)
        attn = attn + jnp.dot(oh.reshape(BS, dh).astype(jnp.bfloat16),
                              wo[lo:lo + dh, :],
                              preferred_element_type=jnp.float32)
    attn = attn + bo_ref[0]

    h1 = _layer_norm(x2d + attn, ln1w_ref[0], ln1b_ref[0])     # (BS, D) f32

    # ---- FFN, tiled over the 2048-wide hidden dim ----
    h1b = h1.astype(jnp.bfloat16)
    ff = jnp.zeros((BS, D), jnp.float32)
    for c in range(DIM_FF // FF_CHUNK):
        c0 = c * FF_CHUNK
        hc = jnp.dot(h1b, w1_ref[0, :, c0:c0 + FF_CHUNK],
                     preferred_element_type=jnp.float32) + b1_ref[0, :, c0:c0 + FF_CHUNK]
        hc = jnp.maximum(hc, 0.0)
        ff = ff + jnp.dot(hc.astype(jnp.bfloat16), w2_ref[0, c0:c0 + FF_CHUNK, :],
                          preferred_element_type=jnp.float32)
    ff = ff + b2_ref[0]

    h2 = _layer_norm(h1 + ff, ln2w_ref[0], ln2b_ref[0])        # (BS, D) f32
    x_scratch[...] = h2.reshape(B, S, D)

    # Last layer: mean over sequence + classifier head (lane-dense padded output).
    @pl.when(l == pl.num_programs(0) - 1)
    def _():
        pooled = jnp.mean(h2.reshape(B, S, D), axis=1)         # (B, D)
        out_ref[...] = jnp.dot(pooled.astype(jnp.bfloat16), fcw_ref[...],
                               preferred_element_type=jnp.float32) + fcb_ref[...]


# ----------------------------- model ----------------------------------------

def init_params(key):
    keys = jax.random.split(key, 2 + NUM_LAYERS)

    def nrm(k, shape, scale=0.02):
        return (scale * jax.random.normal(k, shape)).astype(jnp.float32)

    fc_w = jnp.zeros((D_MODEL, FC_PAD), jnp.float32)
    fc_w = fc_w.at[:, :NUM_CLASSES].set(nrm(keys[1], (D_MODEL, NUM_CLASSES)))

    wqkv, wo, w1, w2 = [], [], [], []
    for l in range(NUM_LAYERS):
        lk = jax.random.split(keys[2 + l], 6)
        wq = nrm(lk[0], (D_MODEL, D_MODEL))
        wk = nrm(lk[1], (D_MODEL, D_MODEL))
        wv = nrm(lk[2], (D_MODEL, D_MODEL))
        wqkv.append(jnp.concatenate([wq, wk, wv], axis=1))      # (D, 3D), q|k|v order
        wo.append(nrm(lk[3], (D_MODEL, D_MODEL)))
        w1.append(nrm(lk[4], (D_MODEL, DIM_FF)))
        w2.append(nrm(lk[5], (DIM_FF, D_MODEL)))

    L = NUM_LAYERS
    params = {
        "embedding": nrm(keys[0], (VOCAB, D_MODEL), 1.0),       # nn.Embedding ~ N(0,1)
        "fc_w": fc_w.astype(jnp.bfloat16),                      # (D, 128) padded
        "fc_b": jnp.zeros((1, FC_PAD), jnp.float32),
        # stacked per-layer weights, bf16 matmul operands / f32 bias & LN params
        "wqkv": jnp.stack(wqkv).astype(jnp.bfloat16),           # (L, D, 3D)
        "bqkv": jnp.zeros((L, 1, 3 * D_MODEL), jnp.float32),
        "wo":   jnp.stack(wo).astype(jnp.bfloat16),             # (L, D, D)
        "bo":   jnp.zeros((L, 1, D_MODEL), jnp.float32),
        "ln1w": jnp.ones((L, 1, D_MODEL), jnp.float32),
        "ln1b": jnp.zeros((L, 1, D_MODEL), jnp.float32),
        "w1":   jnp.stack(w1).astype(jnp.bfloat16),             # (L, D, FF)
        "b1":   jnp.zeros((L, 1, DIM_FF), jnp.float32),
        "w2":   jnp.stack(w2).astype(jnp.bfloat16),             # (L, FF, D)
        "b2":   jnp.zeros((L, 1, D_MODEL), jnp.float32),
        "ln2w": jnp.ones((L, 1, D_MODEL), jnp.float32),
        "ln2b": jnp.zeros((L, 1, D_MODEL), jnp.float32),
    }
    return params


def transformer_classifier_forward(params, src):
    B, S = src.shape
    # glue: embedding table gather (nn.Embedding lookup) left to XLA
    emb = jnp.take(params["embedding"], src, axis=0)            # (B, S, D) f32
    pe = positional_encoding(S, D_MODEL)                        # (S, D) f32

    args = (emb, pe,
            params["wqkv"], params["bqkv"], params["wo"], params["bo"],
            params["ln1w"], params["ln1b"],
            params["w1"], params["b1"], params["w2"], params["b2"],
            params["ln2w"], params["ln2b"],
            params["fc_w"], params["fc_b"])

    in_specs = [
        _const_spec(emb.shape),                  # emb, resident (same block every l)
        _const_spec(pe.shape),                   # pe
        _layer_spec(params["wqkv"].shape),       # per-layer weights (double-buffered)
        _layer_spec(params["bqkv"].shape),
        _layer_spec(params["wo"].shape),
        _layer_spec(params["bo"].shape),
        _layer_spec(params["ln1w"].shape),
        _layer_spec(params["ln1b"].shape),
        _layer_spec(params["w1"].shape),
        _layer_spec(params["b1"].shape),
        _layer_spec(params["w2"].shape),
        _layer_spec(params["b2"].shape),
        _layer_spec(params["ln2w"].shape),
        _layer_spec(params["ln2b"].shape),
        _const_spec(params["fc_w"].shape),       # classifier weights
        _const_spec(params["fc_b"].shape),
    ]

    logits_padded = pl.pallas_call(
        encoder_stack_kernel,
        out_shape=jax.ShapeDtypeStruct((B, FC_PAD), jnp.float32),
        grid=(NUM_LAYERS,),
        in_specs=in_specs,
        out_specs=pl.BlockSpec((B, FC_PAD), lambda l: (0, 0)),
        scratch_shapes=[pltpu.VMEM((B, S, D_MODEL), jnp.float32)],
        compiler_params=pltpu.CompilerParams(
            dimension_semantics=("arbitrary",),   # layer axis is sequential
            vmem_limit_bytes=64 * 1024 * 1024),
    )(*args)

    return logits_padded[:, :NUM_CLASSES]


if __name__ == "__main__":
    key = jax.random.PRNGKey(0)
    pkey, dkey = jax.random.split(key)
    params = init_params(pkey)

    B, S = 2, 8
    src = jax.random.randint(dkey, (B, S), 0, VOCAB, dtype=jnp.int32)

    fwd = jax.jit(transformer_classifier_forward)
    logits = fwd(params, src)
    logits = jax.block_until_ready(logits)
    assert logits.shape == (B, NUM_CLASSES)
    assert bool(jnp.all(jnp.isfinite(logits)))
    print("KERNEL_OK")
</pallas_src>

<mosaic_0001>
module attributes {stable_mosaic.version = 11 : i64} {
  func.func @encoder_stack_kernel(%arg0: i32, %arg1: memref<2x8x128xf32, #tpu.memory_space<vmem>>, %arg2: memref<8x128xf32, #tpu.memory_space<vmem>>, %arg3: memref<1x128x384xbf16, #tpu.memory_space<vmem>>, %arg4: memref<1x1x384xf32, #tpu.memory_space<vmem>>, %arg5: memref<1x128x128xbf16, #tpu.memory_space<vmem>>, %arg6: memref<1x1x128xf32, #tpu.memory_space<vmem>>, %arg7: memref<1x1x128xf32, #tpu.memory_space<vmem>>, %arg8: memref<1x1x128xf32, #tpu.memory_space<vmem>>, %arg9: memref<1x128x2048xbf16, #tpu.memory_space<vmem>>, %arg10: memref<1x1x2048xf32, #tpu.memory_space<vmem>>, %arg11: memref<1x2048x128xbf16, #tpu.memory_space<vmem>>, %arg12: memref<1x1x128xf32, #tpu.memory_space<vmem>>, %arg13: memref<1x1x128xf32, #tpu.memory_space<vmem>>, %arg14: memref<1x1x128xf32, #tpu.memory_space<vmem>>, %arg15: memref<128x128xbf16, #tpu.memory_space<vmem>>, %arg16: memref<1x128xf32, #tpu.memory_space<vmem>>, %arg17: memref<2x128xf32, #tpu.memory_space<vmem>>, %arg18: memref<2x8x128xf32, #tpu.memory_space<vmem>>) attributes {dimension_semantics = [#tpu.dimension_semantics<arbitrary>], iteration_bounds = array<i64: 6>, scalar_prefetch = 0 : i64, scratch_operands = 1 : i64, tpu.core_type = #tpu.core_type<tc>, window_params = [{pipeline_mode = #tpu.pipeline_mode<synchronous>, transform_indices = @transform_0, window_bounds = array<i64: 2, 8, 128>}, {pipeline_mode = #tpu.pipeline_mode<synchronous>, transform_indices = @transform_1, window_bounds = array<i64: 8, 128>}, {transform_indices = @transform_2, window_bounds = array<i64: 1, 128, 384>}, {transform_indices = @transform_3, window_bounds = array<i64: 1, 1, 384>}, {transform_indices = @transform_4, window_bounds = array<i64: 1, 128, 128>}, {transform_indices = @transform_5, window_bounds = array<i64: 1, 1, 128>}, {transform_indices = @transform_6, window_bounds = array<i64: 1, 1, 128>}, {transform_indices = @transform_7, window_bounds = array<i64: 1, 1, 128>}, {transform_indices = @transform_8, window_bounds = array<i64: 1, 128, 2048>}, {transform_indices = @transform_9, window_bounds = array<i64: 1, 1, 2048>}, {transform_indices = @transform_10, window_bounds = array<i64: 1, 2048, 128>}, {transform_indices = @transform_11, window_bounds = array<i64: 1, 1, 128>}, {transform_indices = @transform_12, window_bounds = array<i64: 1, 1, 128>}, {transform_indices = @transform_13, window_bounds = array<i64: 1, 1, 128>}, {pipeline_mode = #tpu.pipeline_mode<synchronous>, transform_indices = @transform_14, window_bounds = array<i64: 128, 128>}, {pipeline_mode = #tpu.pipeline_mode<synchronous>, transform_indices = @transform_15, window_bounds = array<i64: 1, 128>}, {pipeline_mode = #tpu.pipeline_mode<synchronous>, transform_indices = @transform_16, window_bounds = array<i64: 2, 128>}]} {
    %c0_i32 = arith.constant 0 : i32
    %0 = arith.cmpi eq, %arg0, %c0_i32 : i32
    %1 = arith.extui %0 : i1 to i32
    %c0_i32_0 = arith.constant 0 : i32
    %2 = arith.cmpi ne, %1, %c0_i32_0 : i32
    scf.if %2 {
      %c0_139 = arith.constant 0 : index
      %c0_140 = arith.constant 0 : index
      %c0_141 = arith.constant 0 : index
      %323 = vector.load %arg1[%c0_139, %c0_140, %c0_141] : memref<2x8x128xf32, #tpu.memory_space<vmem>>, vector<2x8x128xf32>
      %cst_142 = arith.constant 11.3137083 : f32
      %324 = vector.broadcast %cst_142 : f32 to vector<2x8x128xf32>
      %325 = arith.mulf %323, %324 : vector<2x8x128xf32>
      %c0_143 = arith.constant 0 : index
      %c0_144 = arith.constant 0 : index
      %326 = vector.load %arg2[%c0_143, %c0_144] : memref<8x128xf32, #tpu.memory_space<vmem>>, vector<8x128xf32>
      %327 = vector.shape_cast %326 : vector<8x128xf32> to vector<1x8x128xf32>
      %328 = vector.broadcast %327 : vector<1x8x128xf32> to vector<2x8x128xf32>
      %329 = arith.addf %325, %328 : vector<2x8x128xf32>
      %c0_145 = arith.constant 0 : index
      %c0_146 = arith.constant 0 : index
      %c0_147 = arith.constant 0 : index
      %330 = vector.load %arg18[%c0_145, %c0_146, %c0_147] : memref<2x8x128xf32, #tpu.memory_space<vmem>>, vector<2x8x128xf32>
      tpu.vector_store %arg18[%c0_145, %c0_146, %c0_147], %329 {strides = array<i32>} : memref<2x8x128xf32, #tpu.memory_space<vmem>>, vector<2x8x128xf32>,
    } else {
    }
    %c0 = arith.constant 0 : index
    %c0_1 = arith.constant 0 : index
    %c0_2 = arith.constant 0 : index
    %3 = vector.load %arg18[%c0, %c0_1, %c0_2] : memref<2x8x128xf32, #tpu.memory_space<vmem>>, vector<2x8x128xf32>
    %4 = vector.shape_cast %3 : vector<2x8x128xf32> to vector<16x128xf32>
    %5 = arith.truncf %4 : vector<16x128xf32> to vector<16x128xbf16>
    %c0_3 = arith.constant 0 : index
    %c0_4 = arith.constant 0 : index
    %c0_5 = arith.constant 0 : index
    %6 = vector.load %arg3[%c0_3, %c0_4, %c0_5] : memref<1x128x384xbf16, #tpu.memory_space<vmem>>, vector<1x128x384xbf16>
    %7 = vector.shape_cast %6 : vector<1x128x384xbf16> to vector<128x384xbf16>
    %cst = arith.constant dense<0.000000e+00> : vector<16x384xf32>
    %8 = tpu.matmul %5, %7, %cst {dimension_numbers = #tpu.dot_dimension_numbers<[1], [0], [0], [1], [0, 0, 1, 1], [], []>} : vector<16x128xbf16>, vector<128x384xbf16>, vector<16x384xf32> -> vector<16x384xf32>
    %c0_6 = arith.constant 0 : index
    %c0_7 = arith.constant 0 : index
    %c0_8 = arith.constant 0 : index
    %9 = vector.load %arg4[%c0_6, %c0_7, %c0_8] : memref<1x1x384xf32, #tpu.memory_space<vmem>>, vector<1x1x384xf32>
    %10 = vector.shape_cast %9 : vector<1x1x384xf32> to vector<1x384xf32>
    %11 = vector.broadcast %10 : vector<1x384xf32> to vector<16x384xf32>
    %12 = arith.addf %8, %11 : vector<16x384xf32>
    %13 = vector.extract_strided_slice %12 {offsets = [0, 0], sizes = [16, 128], strides = [1, 1]} : vector<16x384xf32> to vector<16x128xf32>
    %14 = vector.shape_cast %13 : vector<16x128xf32> to vector<2x8x128xf32>
    %15 = vector.extract_strided_slice %12 {offsets = [0, 128], sizes = [16, 128], strides = [1, 1]} : vector<16x384xf32> to vector<16x128xf32>
    %16 = vector.shape_cast %15 : vector<16x128xf32> to vector<2x8x128xf32>
    %17 = vector.extract_strided_slice %12 {offsets = [0, 256], sizes = [16, 128], strides = [1, 1]} : vector<16x384xf32> to vector<16x128xf32>
    %18 = vector.shape_cast %17 : vector<16x128xf32> to vector<2x8x128xf32>
    %c0_9 = arith.constant 0 : index
    %c0_10 = arith.constant 0 : index
    %c0_11 = arith.constant 0 : index
    %19 = vector.load %arg5[%c0_9, %c0_10, %c0_11] : memref<1x128x128xbf16, #tpu.memory_space<vmem>>, vector<1x128x128xbf16>
    %20 = vector.shape_cast %19 : vector<1x128x128xbf16> to vector<128x128xbf16>
    %cst_12 = arith.constant 0.000000e+00 : f32
    %21 = vector.broadcast %cst_12 : f32 to vector<16x128xf32>
    %22 = vector.extract_strided_slice %14 {offsets = [0, 0, 0], sizes = [2, 8, 16], strides = [1, 1, 1]} : vector<2x8x128xf32> to vector<2x8x16xf32>
    %23 = vector.extract_strided_slice %16 {offsets = [0, 0, 0], sizes = [2, 8, 16], strides = [1, 1, 1]} : vector<2x8x128xf32> to vector<2x8x16xf32>
    %24 = vector.extract_strided_slice %18 {offsets = [0, 0, 0], sizes = [2, 8, 16], strides = [1, 1, 1]} : vector<2x8x128xf32> to vector<2x8x16xf32>
    %cst_13 = arith.constant dense<0.000000e+00> : vector<2x8x8xf32>
    %25 = tpu.matmul %22, %23, %cst_13 {dimension_numbers = #tpu.dot_dimension_numbers<[2], [2], [1], [1], [0, 0, 0, 1, 1, 1], [0], [0]>} : vector<2x8x16xf32>, vector<2x8x16xf32>, vector<2x8x8xf32> -> vector<2x8x8xf32>
    %cst_14 = arith.constant 2.500000e-01 : f32
    %26 = vector.broadcast %cst_14 : f32 to vector<2x8x8xf32>
    %27 = arith.mulf %25, %26 : vector<2x8x8xf32>
    %cst_15 = arith.constant dense<0xFF800000> : vector<2x8xf32>
    %28 = vector.multi_reduction <maximumf>, %27, %cst_15 [2] : vector<2x8x8xf32> to vector<2x8xf32>
    %29 = vector.shape_cast %28 : vector<2x8xf32> to vector<2x8x1xf32>
    %30 = vector.broadcast %29 : vector<2x8x1xf32> to vector<2x8x8xf32>
    %31 = arith.subf %27, %30 : vector<2x8x8xf32>
    %32 = math.exp %31 : vector<2x8x8xf32>
    %cst_16 = arith.constant dense<0.000000e+00> : vector<2x8xf32>
    %33 = vector.multi_reduction <add>, %32, %cst_16 [2] : vector<2x8x8xf32> to vector<2x8xf32>
    %34 = vector.shape_cast %33 : vector<2x8xf32> to vector<2x8x1xf32>
    %35 = tpu.reciprocal %34 {approx = true} : vector<2x8x1xf32> -> vector<2x8x1xf32>
    %36 = vector.broadcast %35 : vector<2x8x1xf32> to vector<2x8x8xf32>
    %37 = arith.mulf %32, %36 : vector<2x8x8xf32>
    %cst_17 = arith.constant dense<0.000000e+00> : vector<2x8x16xf32>
    %38 = tpu.matmul %37, %24, %cst_17 {dimension_numbers = #tpu.dot_dimension_numbers<[2], [1], [1], [2], [0, 0, 0, 1, 1, 2], [0], [0]>} : vector<2x8x8xf32>, vector<2x8x16xf32>, vector<2x8x16xf32> -> vector<2x8x16xf32>
    %39 = vector.shape_cast %38 : vector<2x8x16xf32> to vector<16x16xf32>
    %40 = arith.truncf %39 : vector<16x16xf32> to vector<16x16xbf16>
    %41 = vector.extract_strided_slice %20 {offsets = [0, 0], sizes = [16, 128], strides = [1, 1]} : vector<128x128xbf16> to vector<16x128xbf16>
    %cst_18 = arith.constant dense<0.000000e+00> : vector<16x128xf32>
    %42 = tpu.matmul %40, %41, %cst_18 {dimension_numbers = #tpu.dot_dimension_numbers<[1], [0], [0], [1], [0, 0, 1, 1], [], []>} : vector<16x16xbf16>, vector<16x128xbf16>, vector<16x128xf32> -> vector<16x128xf32>
    %43 = arith.addf %21, %42 : vector<16x128xf32>
    %44 = vector.extract_strided_slice %14 {offsets = [0, 0, 16], sizes = [2, 8, 16], strides = [1, 1, 1]} : vector<2x8x128xf32> to vector<2x8x16xf32>
    %45 = vector.extract_strided_slice %16 {offsets = [0, 0, 16], sizes = [2, 8, 16], strides = [1, 1, 1]} : vector<2x8x128xf32> to vector<2x8x16xf32>
    %46 = vector.extract_strided_slice %18 {offsets = [0, 0, 16], sizes = [2, 8, 16], strides = [1, 1, 1]} : vector<2x8x128xf32> to vector<2x8x16xf32>
    %cst_19 = arith.constant dense<0.000000e+00> : vector<2x8x8xf32>
    %47 = tpu.matmul %44, %45, %cst_19 {dimension_numbers = #tpu.dot_dimension_numbers<[2], [2], [1], [1], [0, 0, 0, 1, 1, 1], [0], [0]>} : vector<2x8x16xf32>, vector<2x8x16xf32>, vector<2x8x8xf32> -> vector<2x8x8xf32>
    %cst_20 = arith.constant 2.500000e-01 : f32
    %48 = vector.broadcast %cst_20 : f32 to vector<2x8x8xf32>
    %49 = arith.mulf %47, %48 : vector<2x8x8xf32>
    %cst_21 = arith.constant dense<0xFF800000> : vector<2x8xf32>
    %50 = vector.multi_reduction <maximumf>, %49, %cst_21 [2] : vector<2x8x8xf32> to vector<2x8xf32>
    %51 = vector.shape_cast %50 : vector<2x8xf32> to vector<2x8x1xf32>
    %52 = vector.broadcast %51 : vector<2x8x1xf32> to vector<2x8x8xf32>
    %53 = arith.subf %49, %52 : vector<2x8x8xf32>
    %54 = math.exp %53 : vector<2x8x8xf32>
    %cst_22 = arith.constant dense<0.000000e+00> : vector<2x8xf32>
    %55 = vector.multi_reduction <add>, %54, %cst_22 [2] : vector<2x8x8xf32> to vector<2x8xf32>
    %56 = vector.shape_cast %55 : vector<2x8xf32> to vector<2x8x1xf32>
    %57 = tpu.reciprocal %56 {approx = true} : vector<2x8x1xf32> -> vector<2x8x1xf32>
    %58 = vector.broadcast %57 : vector<2x8x1xf32> to vector<2x8x8xf32>
    %59 = arith.mulf %54, %58 : vector<2x8x8xf32>
    %cst_23 = arith.constant dense<0.000000e+00> : vector<2x8x16xf32>
    %60 = tpu.matmul %59, %46, %cst_23 {dimension_numbers = #tpu.dot_dimension_numbers<[2], [1], [1], [2], [0, 0, 0, 1, 1, 2], [0], [0]>} : vector<2x8x8xf32>, vector<2x8x16xf32>, vector<2x8x16xf32> -> vector<2x8x16xf32>
    %61 = vector.shape_cast %60 : vector<2x8x16xf32> to vector<16x16xf32>
    %62 = arith.truncf %61 : vector<16x16xf32> to vector<16x16xbf16>
    %63 = vector.extract_strided_slice %20 {offsets = [16, 0], sizes = [16, 128], strides = [1, 1]} : vector<128x128xbf16> to vector<16x128xbf16>
    %cst_24 = arith.constant dense<0.000000e+00> : vector<16x128xf32>
    %64 = tpu.matmul %62, %63, %cst_24 {dimension_numbers = #tpu.dot_dimension_numbers<[1], [0], [0], [1], [0, 0, 1, 1], [], []>} : vector<16x16xbf16>, vector<16x128xbf16>, vector<16x128xf32> -> vector<16x128xf32>
    %65 = arith.addf %43, %64 : vector<16x128xf32>
    %66 = vector.extract_strided_slice %14 {offsets = [0, 0, 32], sizes = [2, 8, 16], strides = [1, 1, 1]} : vector<2x8x128xf32> to vector<2x8x16xf32>
    %67 = vector.extract_strided_slice %16 {offsets = [0, 0, 32], sizes = [2, 8, 16], strides = [1, 1, 1]} : vector<2x8x128xf32> to vector<2x8x16xf32>
    %68 = vector.extract_strided_slice %18 {offsets = [0, 0, 32], sizes = [2, 8, 16], strides = [1, 1, 1]} : vector<2x8x128xf32> to vector<2x8x16xf32>
    %cst_25 = arith.constant dense<0.000000e+00> : vector<2x8x8xf32>
    %69 = tpu.matmul %66, %67, %cst_25 {dimension_numbers = #tpu.dot_dimension_numbers<[2], [2], [1], [1], [0, 0, 0, 1, 1, 1], [0], [0]>} : vector<2x8x16xf32>, vector<2x8x16xf32>, vector<2x8x8xf32> -> vector<2x8x8xf32>
    %cst_26 = arith.constant 2.500000e-01 : f32
    %70 = vector.broadcast %cst_26 : f32 to vector<2x8x8xf32>
    %71 = arith.mulf %69, %70 : vector<2x8x8xf32>
    %cst_27 = arith.constant dense<0xFF800000> : vector<2x8xf32>
    %72 = vector.multi_reduction <maximumf>, %71, %cst_27 [2] : vector<2x8x8xf32> to vector<2x8xf32>
    %73 = vector.shape_cast %72 : vector<2x8xf32> to vector<2x8x1xf32>
    %74 = vector.broadcast %73 : vector<2x8x1xf32> to vector<2x8x8xf32>
    %75 = arith.subf %71, %74 : vector<2x8x8xf32>
    %76 = math.exp %75 : vector<2x8x8xf32>
    %cst_28 = arith.constant dense<0.000000e+00> : vector<2x8xf32>
    %77 = vector.multi_reduction <add>, %76, %cst_28 [2] : vector<2x8x8xf32> to vector<2x8xf32>
    %78 = vector.shape_cast %77 : vector<2x8xf32> to vector<2x8x1xf32>
    %79 = tpu.reciprocal %78 {approx = true} : vector<2x8x1xf32> -> vector<2x8x1xf32>
    %80 = vector.broadcast %79 : vector<2x8x1xf32> to vector<2x8x8xf32>
    %81 = arith.mulf %76, %80 : vector<2x8x8xf32>
    %cst_29 = arith.constant dense<0.000000e+00> : vector<2x8x16xf32>
    %82 = tpu.matmul %81, %68, %cst_29 {dimension_numbers = #tpu.dot_dimension_numbers<[2], [1], [1], [2], [0, 0, 0, 1, 1, 2], [0], [0]>} : vector<2x8x8xf32>, vector<2x8x16xf32>, vector<2x8x16xf32> -> vector<2x8x16xf32>
    %83 = vector.shape_cast %82 : vector<2x8x16xf32> to vector<16x16xf32>
    %84 = arith.truncf %83 : vector<16x16xf32> to vector<16x16xbf16>
    %85 = vector.extract_strided_slice %20 {offsets = [32, 0], sizes = [16, 128], strides = [1, 1]} : vector<128x128xbf16> to vector<16x128xbf16>
    %cst_30 = arith.constant dense<0.000000e+00> : vector<16x128xf32>
    %86 = tpu.matmul %84, %85, %cst_30 {dimension_numbers = #tpu.dot_dimension_numbers<[1], [0], [0], [1], [0, 0, 1, 1], [], []>} : vector<16x16xbf16>, vector<16x128xbf16>, vector<16x128xf32> -> vector<16x128xf32>
    %87 = arith.addf %65, %86 : vector<16x128xf32>
    %88 = vector.extract_strided_slice %14 {offsets = [0, 0, 48], sizes = [2, 8, 16], strides = [1, 1, 1]} : vector<2x8x128xf32> to vector<2x8x16xf32>
    %89 = vector.extract_strided_slice %16 {offsets = [0, 0, 48], sizes = [2, 8, 16], strides = [1, 1, 1]} : vector<2x8x128xf32> to vector<2x8x16xf32>
    %90 = vector.extract_strided_slice %18 {offsets = [0, 0, 48], sizes = [2, 8, 16], strides = [1, 1, 1]} : vector<2x8x128xf32> to vector<2x8x16xf32>
    %cst_31 = arith.constant dense<0.000000e+00> : vector<2x8x8xf32>
    %91 = tpu.matmul %88, %89, %cst_31 {dimension_numbers = #tpu.dot_dimension_numbers<[2], [2], [1], [1], [0, 0, 0, 1, 1, 1], [0], [0]>} : vector<2x8x16xf32>, vector<2x8x16xf32>, vector<2x8x8xf32> -> vector<2x8x8xf32>
    %cst_32 = arith.constant 2.500000e-01 : f32
    %92 = vector.broadcast %cst_32 : f32 to vector<2x8x8xf32>
    %93 = arith.mulf %91, %92 : vector<2x8x8xf32>
    %cst_33 = arith.constant dense<0xFF800000> : vector<2x8xf32>
    %94 = vector.multi_reduction <maximumf>, %93, %cst_33 [2] : vector<2x8x8xf32> to vector<2x8xf32>
    %95 = vector.shape_cast %94 : vector<2x8xf32> to vector<2x8x1xf32>
    %96 = vector.broadcast %95 : vector<2x8x1xf32> to vector<2x8x8xf32>
    %97 = arith.subf %93, %96 : vector<2x8x8xf32>
    %98 = math.exp %97 : vector<2x8x8xf32>
    %cst_34 = arith.constant dense<0.000000e+00> : vector<2x8xf32>
    %99 = vector.multi_reduction <add>, %98, %cst_34 [2] : vector<2x8x8xf32> to vector<2x8xf32>
    %100 = vector.shape_cast %99 : vector<2x8xf32> to vector<2x8x1xf32>
    %101 = tpu.reciprocal %100 {approx = true} : vector<2x8x1xf32> -> vector<2x8x1xf32>
    %102 = vector.broadcast %101 : vector<2x8x1xf32> to vector<2x8x8xf32>
    %103 = arith.mulf %98, %102 : vector<2x8x8xf32>
    %cst_35 = arith.constant dense<0.000000e+00> : vector<2x8x16xf32>
    %104 = tpu.matmul %103, %90, %cst_35 {dimension_numbers = #tpu.dot_dimension_numbers<[2], [1], [1], [2], [0, 0, 0, 1, 1, 2], [0], [0]>} : vector<2x8x8xf32>, vector<2x8x16xf32>, vector<2x8x16xf32> -> vector<2x8x16xf32>
    %105 = vector.shape_cast %104 : vector<2x8x16xf32> to vector<16x16xf32>
    %106 = arith.truncf %105 : vector<16x16xf32> to vector<16x16xbf16>
    %107 = vector.extract_strided_slice %20 {offsets = [48, 0], sizes = [16, 128], strides = [1, 1]} : vector<128x128xbf16> to vector<16x128xbf16>
    %cst_36 = arith.constant dense<0.000000e+00> : vector<16x128xf32>
    %108 = tpu.matmul %106, %107, %cst_36 {dimension_numbers = #tpu.dot_dimension_numbers<[1], [0], [0], [1], [0, 0, 1, 1], [], []>} : vector<16x16xbf16>, vector<16x128xbf16>, vector<16x128xf32> -> vector<16x128xf32>
    %109 = arith.addf %87, %108 : vector<16x128xf32>
    %110 = vector.extract_strided_slice %14 {offsets = [0, 0, 64], sizes = [2, 8, 16], strides = [1, 1, 1]} : vector<2x8x128xf32> to vector<2x8x16xf32>
    %111 = vector.extract_strided_slice %16 {offsets = [0, 0, 64], sizes = [2, 8, 16], strides = [1, 1, 1]} : vector<2x8x128xf32> to vector<2x8x16xf32>
    %112 = vector.extract_strided_slice %18 {offsets = [0, 0, 64], sizes = [2, 8, 16], strides = [1, 1, 1]} : vector<2x8x128xf32> to vector<2x8x16xf32>
    %cst_37 = arith.constant dense<0.000000e+00> : vector<2x8x8xf32>
    %113 = tpu.matmul %110, %111, %cst_37 {dimension_numbers = #tpu.dot_dimension_numbers<[2], [2], [1], [1], [0, 0, 0, 1, 1, 1], [0], [0]>} : vector<2x8x16xf32>, vector<2x8x16xf32>, vector<2x8x8xf32> -> vector<2x8x8xf32>
    %cst_38 = arith.constant 2.500000e-01 : f32
    %114 = vector.broadcast %cst_38 : f32 to vector<2x8x8xf32>
    %115 = arith.mulf %113, %114 : vector<2x8x8xf32>
    %cst_39 = arith.constant dense<0xFF800000> : vector<2x8xf32>
    %116 = vector.multi_reduction <maximumf>, %115, %cst_39 [2] : vector<2x8x8xf32> to vector<2x8xf32>
    %117 = vector.shape_cast %116 : vector<2x8xf32> to vector<2x8x1xf32>
    %118 = vector.broadcast %117 : vector<2x8x1xf32> to vector<2x8x8xf32>
    %119 = arith.subf %115, %118 : vector<2x8x8xf32>
    %120 = math.exp %119 : vector<2x8x8xf32>
    %cst_40 = arith.constant dense<0.000000e+00> : vector<2x8xf32>
    %121 = vector.multi_reduction <add>, %120, %cst_40 [2] : vector<2x8x8xf32> to vector<2x8xf32>
    %122 = vector.shape_cast %121 : vector<2x8xf32> to vector<2x8x1xf32>
    %123 = tpu.reciprocal %122 {approx = true} : vector<2x8x1xf32> -> vector<2x8x1xf32>
    %124 = vector.broadcast %123 : vector<2x8x1xf32> to vector<2x8x8xf32>
    %125 = arith.mulf %120, %124 : vector<2x8x8xf32>
    %cst_41 = arith.constant dense<0.000000e+00> : vector<2x8x16xf32>
    %126 = tpu.matmul %125, %112, %cst_41 {dimension_numbers = #tpu.dot_dimension_numbers<[2], [1], [1], [2], [0, 0, 0, 1, 1, 2], [0], [0]>} : vector<2x8x8xf32>, vector<2x8x16xf32>, vector<2x8x16xf32> -> vector<2x8x16xf32>
    %127 = vector.shape_cast %126 : vector<2x8x16xf32> to vector<16x16xf32>
    %128 = arith.truncf %127 : vector<16x16xf32> to vector<16x16xbf16>
    %129 = vector.extract_strided_slice %20 {offsets = [64, 0], sizes = [16, 128], strides = [1, 1]} : vector<128x128xbf16> to vector<16x128xbf16>
    %cst_42 = arith.constant dense<0.000000e+00> : vector<16x128xf32>
    %130 = tpu.matmul %128, %129, %cst_42 {dimension_numbers = #tpu.dot_dimension_numbers<[1], [0], [0], [1], [0, 0, 1, 1], [], []>} : vector<16x16xbf16>, vector<16x128xbf16>, vector<16x128xf32> -> vector<16x128xf32>
    %131 = arith.addf %109, %130 : vector<16x128xf32>
    %132 = vector.extract_strided_slice %14 {offsets = [0, 0, 80], sizes = [2, 8, 16], strides = [1, 1, 1]} : vector<2x8x128xf32> to vector<2x8x16xf32>
    %133 = vector.extract_strided_slice %16 {offsets = [0, 0, 80], sizes = [2, 8, 16], strides = [1, 1, 1]} : vector<2x8x128xf32> to vector<2x8x16xf32>
    %134 = vector.extract_strided_slice %18 {offsets = [0, 0, 80], sizes = [2, 8, 16], strides = [1, 1, 1]} : vector<2x8x128xf32> to vector<2x8x16xf32>
    %cst_43 = arith.constant dense<0.000000e+00> : vector<2x8x8xf32>
    %135 = tpu.matmul %132, %133, %cst_43 {dimension_numbers = #tpu.dot_dimension_numbers<[2], [2], [1], [1], [0, 0, 0, 1, 1, 1], [0], [0]>} : vector<2x8x16xf32>, vector<2x8x16xf32>, vector<2x8x8xf32> -> vector<2x8x8xf32>
    %cst_44 = arith.constant 2.500000e-01 : f32
    %136 = vector.broadcast %cst_44 : f32 to vector<2x8x8xf32>
    %137 = arith.mulf %135, %136 : vector<2x8x8xf32>
    %cst_45 = arith.constant dense<0xFF800000> : vector<2x8xf32>
    %138 = vector.multi_reduction <maximumf>, %137, %cst_45 [2] : vector<2x8x8xf32> to vector<2x8xf32>
    %139 = vector.shape_cast %138 : vector<2x8xf32> to vector<2x8x1xf32>
    %140 = vector.broadcast %139 : vector<2x8x1xf32> to vector<2x8x8xf32>
    %141 = arith.subf %137, %140 : vector<2x8x8xf32>
    %142 = math.exp %141 : vector<2x8x8xf32>
    %cst_46 = arith.constant dense<0.000000e+00> : vector<2x8xf32>
    %143 = vector.multi_reduction <add>, %142, %cst_46 [2] : vector<2x8x8xf32> to vector<2x8xf32>
    %144 = vector.shape_cast %143 : vector<2x8xf32> to vector<2x8x1xf32>
    %145 = tpu.reciprocal %144 {approx = true} : vector<2x8x1xf32> -> vector<2x8x1xf32>
    %146 = vector.broadcast %145 : vector<2x8x1xf32> to vector<2x8x8xf32>
    %147 = arith.mulf %142, %146 : vector<2x8x8xf32>
    %cst_47 = arith.constant dense<0.000000e+00> : vector<2x8x16xf32>
    %148 = tpu.matmul %147, %134, %cst_47 {dimension_numbers = #tpu.dot_dimension_numbers<[2], [1], [1], [2], [0, 0, 0, 1, 1, 2], [0], [0]>} : vector<2x8x8xf32>, vector<2x8x16xf32>, vector<2x8x16xf32> -> vector<2x8x16xf32>
    %149 = vector.shape_cast %148 : vector<2x8x16xf32> to vector<16x16xf32>
    %150 = arith.truncf %149 : vector<16x16xf32> to vector<16x16xbf16>
    %151 = vector.extract_strided_slice %20 {offsets = [80, 0], sizes = [16, 128], strides = [1, 1]} : vector<128x128xbf16> to vector<16x128xbf16>
    %cst_48 = arith.constant dense<0.000000e+00> : vector<16x128xf32>
    %152 = tpu.matmul %150, %151, %cst_48 {dimension_numbers = #tpu.dot_dimension_numbers<[1], [0], [0], [1], [0, 0, 1, 1], [], []>} : vector<16x16xbf16>, vector<16x128xbf16>, vector<16x128xf32> -> vector<16x128xf32>
    %153 = arith.addf %131, %152 : vector<16x128xf32>
    %154 = vector.extract_strided_slice %14 {offsets = [0, 0, 96], sizes = [2, 8, 16], strides = [1, 1, 1]} : vector<2x8x128xf32> to vector<2x8x16xf32>
    %155 = vector.extract_strided_slice %16 {offsets = [0, 0, 96], sizes = [2, 8, 16], strides = [1, 1, 1]} : vector<2x8x128xf32> to vector<2x8x16xf32>
    %156 = vector.extract_strided_slice %18 {offsets = [0, 0, 96], sizes = [2, 8, 16], strides = [1, 1, 1]} : vector<2x8x128xf32> to vector<2x8x16xf32>
    %cst_49 = arith.constant dense<0.000000e+00> : vector<2x8x8xf32>
    %157 = tpu.matmul %154, %155, %cst_49 {dimension_numbers = #tpu.dot_dimension_numbers<[2], [2], [1], [1], [0, 0, 0, 1, 1, 1], [0], [0]>} : vector<2x8x16xf32>, vector<2x8x16xf32>, vector<2x8x8xf32> -> vector<2x8x8xf32>
    %cst_50 = arith.constant 2.500000e-01 : f32
    %158 = vector.broadcast %cst_50 : f32 to vector<2x8x8xf32>
    %159 = arith.mulf %157, %158 : vector<2x8x8xf32>
    %cst_51 = arith.constant dense<0xFF800000> : vector<2x8xf32>
    %160 = vector.multi_reduction <maximumf>, %159, %cst_51 [2] : vector<2x8x8xf32> to vector<2x8xf32>
    %161 = vector.shape_cast %160 : vector<2x8xf32> to vector<2x8x1xf32>
    %162 = vector.broadcast %161 : vector<2x8x1xf32> to vector<2x8x8xf32>
    %163 = arith.subf %159, %162 : vector<2x8x8xf32>
    %164 = math.exp %163 : vector<2x8x8xf32>
    %cst_52 = arith.constant dense<0.000000e+00> : vector<2x8xf32>
    %165 = vector.multi_reduction <add>, %164, %cst_52 [2] : vector<2x8x8xf32> to vector<2x8xf32>
    %166 = vector.shape_cast %165 : vector<2x8xf32> to vector<2x8x1xf32>
    %167 = tpu.reciprocal %166 {approx = true} : vector<2x8x1xf32> -> vector<2x8x1xf32>
    %168 = vector.broadcast %167 : vector<2x8x1xf32> to vector<2x8x8xf32>
    %169 = arith.mulf %164, %168 : vector<2x8x8xf32>
    %cst_53 = arith.constant dense<0.000000e+00> : vector<2x8x16xf32>
    %170 = tpu.matmul %169, %156, %cst_53 {dimension_numbers = #tpu.dot_dimension_numbers<[2], [1], [1], [2], [0, 0, 0, 1, 1, 2], [0], [0]>} : vector<2x8x8xf32>, vector<2x8x16xf32>, vector<2x8x16xf32> -> vector<2x8x16xf32>
    %171 = vector.shape_cast %170 : vector<2x8x16xf32> to vector<16x16xf32>
    %172 = arith.truncf %171 : vector<16x16xf32> to vector<16x16xbf16>
    %173 = vector.extract_strided_slice %20 {offsets = [96, 0], sizes = [16, 128], strides = [1, 1]} : vector<128x128xbf16> to vector<16x128xbf16>
    %cst_54 = arith.constant dense<0.000000e+00> : vector<16x128xf32>
    %174 = tpu.matmul %172, %173, %cst_54 {dimension_numbers = #tpu.dot_dimension_numbers<[1], [0], [0], [1], [0, 0, 1, 1], [], []>} : vector<16x16xbf16>, vector<16x128xbf16>, vector<16x128xf32> -> vector<16x128xf32>
    %175 = arith.addf %153, %174 : vector<16x128xf32>
    %176 = vector.extract_strided_slice %14 {offsets = [0, 0, 112], sizes = [2, 8, 16], strides = [1, 1, 1]} : vector<2x8x128xf32> to vector<2x8x16xf32>
    %177 = vector.extract_strided_slice %16 {offsets = [0, 0, 112], sizes = [2, 8, 16], strides = [1, 1, 1]} : vector<2x8x128xf32> to vector<2x8x16xf32>
    %178 = vector.extract_strided_slice %18 {offsets = [0, 0, 112], sizes = [2, 8, 16], strides = [1, 1, 1]} : vector<2x8x128xf32> to vector<2x8x16xf32>
    %cst_55 = arith.constant dense<0.000000e+00> : vector<2x8x8xf32>
    %179 = tpu.matmul %176, %177, %cst_55 {dimension_numbers = #tpu.dot_dimension_numbers<[2], [2], [1], [1], [0, 0, 0, 1, 1, 1], [0], [0]>} : vector<2x8x16xf32>, vector<2x8x16xf32>, vector<2x8x8xf32> -> vector<2x8x8xf32>
    %cst_56 = arith.constant 2.500000e-01 : f32
    %180 = vector.broadcast %cst_56 : f32 to vector<2x8x8xf32>
    %181 = arith.mulf %179, %180 : vector<2x8x8xf32>
    %cst_57 = arith.constant dense<0xFF800000> : vector<2x8xf32>
    %182 = vector.multi_reduction <maximumf>, %181, %cst_57 [2] : vector<2x8x8xf32> to vector<2x8xf32>
    %183 = vector.shape_cast %182 : vector<2x8xf32> to vector<2x8x1xf32>
    %184 = vector.broadcast %183 : vector<2x8x1xf32> to vector<2x8x8xf32>
    %185 = arith.subf %181, %184 : vector<2x8x8xf32>
    %186 = math.exp %185 : vector<2x8x8xf32>
    %cst_58 = arith.constant dense<0.000000e+00> : vector<2x8xf32>
    %187 = vector.multi_reduction <add>, %186, %cst_58 [2] : vector<2x8x8xf32> to vector<2x8xf32>
    %188 = vector.shape_cast %187 : vector<2x8xf32> to vector<2x8x1xf32>
    %189 = tpu.reciprocal %188 {approx = true} : vector<2x8x1xf32> -> vector<2x8x1xf32>
    %190 = vector.broadcast %189 : vector<2x8x1xf32> to vector<2x8x8xf32>
    %191 = arith.mulf %186, %190 : vector<2x8x8xf32>
    %cst_59 = arith.constant dense<0.000000e+00> : vector<2x8x16xf32>
    %192 = tpu.matmul %191, %178, %cst_59 {dimension_numbers = #tpu.dot_dimension_numbers<[2], [1], [1], [2], [0, 0, 0, 1, 1, 2], [0], [0]>} : vector<2x8x8xf32>, vector<2x8x16xf32>, vector<2x8x16xf32> -> vector<2x8x16xf32>
    %193 = vector.shape_cast %192 : vector<2x8x16xf32> to vector<16x16xf32>
    %194 = arith.truncf %193 : vector<16x16xf32> to vector<16x16xbf16>
    %195 = vector.extract_strided_slice %20 {offsets = [112, 0], sizes = [16, 128], strides = [1, 1]} : vector<128x128xbf16> to vector<16x128xbf16>
    %cst_60 = arith.constant dense<0.000000e+00> : vector<16x128xf32>
    %196 = tpu.matmul %194, %195, %cst_60 {dimension_numbers = #tpu.dot_dimension_numbers<[1], [0], [0], [1], [0, 0, 1, 1], [], []>} : vector<16x16xbf16>, vector<16x128xbf16>, vector<16x128xf32> -> vector<16x128xf32>
    %197 = arith.addf %175, %196 : vector<16x128xf32>
    %c0_61 = arith.constant 0 : index
    %c0_62 = arith.constant 0 : index
    %c0_63 = arith.constant 0 : index
    %198 = vector.load %arg6[%c0_61, %c0_62, %c0_63] : memref<1x1x128xf32, #tpu.memory_space<vmem>>, vector<1x1x128xf32>
    %199 = vector.shape_cast %198 : vector<1x1x128xf32> to vector<1x128xf32>
    %200 = vector.broadcast %199 : vector<1x128xf32> to vector<16x128xf32>
    %201 = arith.addf %197, %200 : vector<16x128xf32>
    %202 = arith.addf %4, %201 : vector<16x128xf32>
    %c0_64 = arith.constant 0 : index
    %c0_65 = arith.constant 0 : index
    %c0_66 = arith.constant 0 : index
    %203 = vector.load %arg7[%c0_64, %c0_65, %c0_66] : memref<1x1x128xf32, #tpu.memory_space<vmem>>, vector<1x1x128xf32>
    %204 = vector.shape_cast %203 : vector<1x1x128xf32> to vector<1x128xf32>
    %c0_67 = arith.constant 0 : index
    %c0_68 = arith.constant 0 : index
    %c0_69 = arith.constant 0 : index
    %205 = vector.load %arg8[%c0_67, %c0_68, %c0_69] : memref<1x1x128xf32, #tpu.memory_space<vmem>>, vector<1x1x128xf32>
    %206 = vector.shape_cast %205 : vector<1x1x128xf32> to vector<1x128xf32>
    %cst_70 = arith.constant dense<0.000000e+00> : vector<16xf32>
    %207 = vector.multi_reduction <add>, %202, %cst_70 [1] : vector<16x128xf32> to vector<16xf32>
    %208 = vector.shape_cast %207 : vector<16xf32> to vector<16x1xf32>
    %cst_71 = arith.constant 1.280000e+02 : f32
    %209 = vector.broadcast %cst_71 : f32 to vector<16x1xf32>
    %210 = arith.divf %208, %209 : vector<16x1xf32>
    %211 = vector.broadcast %210 : vector<16x1xf32> to vector<16x128xf32>
    %212 = arith.subf %202, %211 : vector<16x128xf32>
    %213 = arith.mulf %212, %212 : vector<16x128xf32>
    %cst_72 = arith.constant dense<0.000000e+00> : vector<16xf32>
    %214 = vector.multi_reduction <add>, %213, %cst_72 [1] : vector<16x128xf32> to vector<16xf32>
    %215 = vector.shape_cast %214 : vector<16xf32> to vector<16x1xf32>
    %cst_73 = arith.constant 1.280000e+02 : f32
    %216 = vector.broadcast %cst_73 : f32 to vector<16x1xf32>
    %217 = arith.divf %215, %216 : vector<16x1xf32>
    %218 = vector.broadcast %210 : vector<16x1xf32> to vector<16x128xf32>
    %219 = arith.subf %202, %218 : vector<16x128xf32>
    %cst_74 = arith.constant 9.99999974E-6 : f32
    %220 = vector.broadcast %cst_74 : f32 to vector<16x1xf32>
    %221 = arith.addf %217, %220 : vector<16x1xf32>
    %222 = math.rsqrt %221 : vector<16x1xf32>
    %223 = vector.broadcast %222 : vector<16x1xf32> to vector<16x128xf32>
    %224 = arith.mulf %219, %223 : vector<16x128xf32>
    %225 = vector.broadcast %204 : vector<1x128xf32> to vector<16x128xf32>
    %226 = arith.mulf %224, %225 : vector<16x128xf32>
    %227 = vector.broadcast %206 : vector<1x128xf32> to vector<16x128xf32>
    %228 = arith.addf %226, %227 : vector<16x128xf32>
    %229 = arith.truncf %228 : vector<16x128xf32> to vector<16x128xbf16>
    %cst_75 = arith.constant 0.000000e+00 : f32
    %230 = vector.broadcast %cst_75 : f32 to vector<16x128xf32>
    %c0_76 = arith.constant 0 : index
    %c0_77 = arith.constant 0 : index
    %c0_78 = arith.constant 0 : index
    %231 = vector.load %arg9[%c0_76, %c0_77, %c0_78] : memref<1x128x2048xbf16, #tpu.memory_space<vmem>>, vector<1x128x512xbf16>
    %232 = vector.shape_cast %231 : vector<1x128x512xbf16> to vector<128x512xbf16>
    %cst_79 = arith.constant dense<0.000000e+00> : vector<16x512xf32>
    %233 = tpu.matmul %229, %232, %cst_79 {dimension_numbers = #tpu.dot_dimension_numbers<[1], [0], [0], [1], [0, 0, 1, 1], [], []>} : vector<16x128xbf16>, vector<128x512xbf16>, vector<16x512xf32> -> vector<16x512xf32>
    %c0_80 = arith.constant 0 : index
    %c0_81 = arith.constant 0 : index
    %c0_82 = arith.constant 0 : index
    %234 = vector.load %arg10[%c0_80, %c0_81, %c0_82] : memref<1x1x2048xf32, #tpu.memory_space<vmem>>, vector<1x1x512xf32>
    %235 = vector.shape_cast %234 : vector<1x1x512xf32> to vector<1x512xf32>
    %236 = vector.broadcast %235 : vector<1x512xf32> to vector<16x512xf32>
    %237 = arith.addf %233, %236 : vector<16x512xf32>
    %cst_83 = arith.constant 0.000000e+00 : f32
    %238 = vector.broadcast %cst_83 : f32 to vector<16x512xf32>
    %239 = arith.maximumf %237, %238 : vector<16x512xf32>
    %240 = arith.truncf %239 : vector<16x512xf32> to vector<16x512xbf16>
    %c0_84 = arith.constant 0 : index
    %c0_85 = arith.constant 0 : index
    %c0_86 = arith.constant 0 : index
    %241 = vector.load %arg11[%c0_84, %c0_85, %c0_86] : memref<1x2048x128xbf16, #tpu.memory_space<vmem>>, vector<1x512x128xbf16>
    %242 = vector.shape_cast %241 : vector<1x512x128xbf16> to vector<512x128xbf16>
    %cst_87 = arith.constant dense<0.000000e+00> : vector<16x128xf32>
    %243 = tpu.matmul %240, %242, %cst_87 {dimension_numbers = #tpu.dot_dimension_numbers<[1], [0], [0], [1], [0, 0, 1, 1], [], []>} : vector<16x512xbf16>, vector<512x128xbf16>, vector<16x128xf32> -> vector<16x128xf32>
    %244 = arith.addf %230, %243 : vector<16x128xf32>
    %c0_88 = arith.constant 0 : index
    %c0_89 = arith.constant 0 : index
    %c512 = arith.constant 512 : index
    %245 = vector.load %arg9[%c0_88, %c0_89, %c512] : memref<1x128x2048xbf16, #tpu.memory_space<vmem>>, vector<1x128x512xbf16>
    %246 = vector.shape_cast %245 : vector<1x128x512xbf16> to vector<128x512xbf16>
    %cst_90 = arith.constant dense<0.000000e+00> : vector<16x512xf32>
    %247 = tpu.matmul %229, %246, %cst_90 {dimension_numbers = #tpu.dot_dimension_numbers<[1], [0], [0], [1], [0, 0, 1, 1], [], []>} : vector<16x128xbf16>, vector<128x512xbf16>, vector<16x512xf32> -> vector<16x512xf32>
    %c0_91 = arith.constant 0 : index
    %c0_92 = arith.constant 0 : index
    %c512_93 = arith.constant 512 : index
    %248 = vector.load %arg10[%c0_91, %c0_92, %c512_93] : memref<1x1x2048xf32, #tpu.memory_space<vmem>>, vector<1x1x512xf32>
    %249 = vector.shape_cast %248 : vector<1x1x512xf32> to vector<1x512xf32>
    %250 = vector.broadcast %249 : vector<1x512xf32> to vector<16x512xf32>
    %251 = arith.addf %247, %250 : vector<16x512xf32>
    %cst_94 = arith.constant 0.000000e+00 : f32
    %252 = vector.broadcast %cst_94 : f32 to vector<16x512xf32>
    %253 = arith.maximumf %251, %252 : vector<16x512xf32>
    %254 = arith.truncf %253 : vector<16x512xf32> to vector<16x512xbf16>
    %c0_95 = arith.constant 0 : index
    %c512_96 = arith.constant 512 : index
    %c0_97 = arith.constant 0 : index
    %255 = vector.load %arg11[%c0_95, %c512_96, %c0_97] : memref<1x2048x128xbf16, #tpu.memory_space<vmem>>, vector<1x512x128xbf16>
    %256 = vector.shape_cast %255 : vector<1x512x128xbf16> to vector<512x128xbf16>
    %cst_98 = arith.constant dense<0.000000e+00> : vector<16x128xf32>
    %257 = tpu.matmul %254, %256, %cst_98 {dimension_numbers = #tpu.dot_dimension_numbers<[1], [0], [0], [1], [0, 0, 1, 1], [], []>} : vector<16x512xbf16>, vector<512x128xbf16>, vector<16x128xf32> -> vector<16x128xf32>
    %258 = arith.addf %244, %257 : vector<16x128xf32>
    %c0_99 = arith.constant 0 : index
    %c0_100 = arith.constant 0 : index
    %c1024 = arith.constant 1024 : index
    %259 = vector.load %arg9[%c0_99, %c0_100, %c1024] : memref<1x128x2048xbf16, #tpu.memory_space<vmem>>, vector<1x128x512xbf16>
    %260 = vector.shape_cast %259 : vector<1x128x512xbf16> to vector<128x512xbf16>
    %cst_101 = arith.constant dense<0.000000e+00> : vector<16x512xf32>
    %261 = tpu.matmul %229, %260, %cst_101 {dimension_numbers = #tpu.dot_dimension_numbers<[1], [0], [0], [1], [0, 0, 1, 1], [], []>} : vector<16x128xbf16>, vector<128x512xbf16>, vector<16x512xf32> -> vector<16x512xf32>
    %c0_102 = arith.constant 0 : index
    %c0_103 = arith.constant 0 : index
    %c1024_104 = arith.constant 1024 : index
    %262 = vector.load %arg10[%c0_102, %c0_103, %c1024_104] : memref<1x1x2048xf32, #tpu.memory_space<vmem>>, vector<1x1x512xf32>
    %263 = vector.shape_cast %262 : vector<1x1x512xf32> to vector<1x512xf32>
    %264 = vector.broadcast %263 : vector<1x512xf32> to vector<16x512xf32>
    %265 = arith.addf %261, %264 : vector<16x512xf32>
    %cst_105 = arith.constant 0.000000e+00 : f32
    %266 = vector.broadcast %cst_105 : f32 to vector<16x512xf32>
    %267 = arith.maximumf %265, %266 : vector<16x512xf32>
    %268 = arith.truncf %267 : vector<16x512xf32> to vector<16x512xbf16>
    %c0_106 = arith.constant 0 : index
    %c1024_107 = arith.constant 1024 : index
    %c0_108 = arith.constant 0 : index
    %269 = vector.load %arg11[%c0_106, %c1024_107, %c0_108] : memref<1x2048x128xbf16, #tpu.memory_space<vmem>>, vector<1x512x128xbf16>
    %270 = vector.shape_cast %269 : vector<1x512x128xbf16> to vector<512x128xbf16>
    %cst_109 = arith.constant dense<0.000000e+00> : vector<16x128xf32>
    %271 = tpu.matmul %268, %270, %cst_109 {dimension_numbers = #tpu.dot_dimension_numbers<[1], [0], [0], [1], [0, 0, 1, 1], [], []>} : vector<16x512xbf16>, vector<512x128xbf16>, vector<16x128xf32> -> vector<16x128xf32>
    %272 = arith.addf %258, %271 : vector<16x128xf32>
    %c0_110 = arith.constant 0 : index
    %c0_111 = arith.constant 0 : index
    %c1536 = arith.constant 1536 : index
    %273 = vector.load %arg9[%c0_110, %c0_111, %c1536] : memref<1x128x2048xbf16, #tpu.memory_space<vmem>>, vector<1x128x512xbf16>
    %274 = vector.shape_cast %273 : vector<1x128x512xbf16> to vector<128x512xbf16>
    %cst_112 = arith.constant dense<0.000000e+00> : vector<16x512xf32>
    %275 = tpu.matmul %229, %274, %cst_112 {dimension_numbers = #tpu.dot_dimension_numbers<[1], [0], [0], [1], [0, 0, 1, 1], [], []>} : vector<16x128xbf16>, vector<128x512xbf16>, vector<16x512xf32> -> vector<16x512xf32>
    %c0_113 = arith.constant 0 : index
    %c0_114 = arith.constant 0 : index
    %c1536_115 = arith.constant 1536 : index
    %276 = vector.load %arg10[%c0_113, %c0_114, %c1536_115] : memref<1x1x2048xf32, #tpu.memory_space<vmem>>, vector<1x1x512xf32>
    %277 = vector.shape_cast %276 : vector<1x1x512xf32> to vector<1x512xf32>
    %278 = vector.broadcast %277 : vector<1x512xf32> to vector<16x512xf32>
    %279 = arith.addf %275, %278 : vector<16x512xf32>
    %cst_116 = arith.constant 0.000000e+00 : f32
    %280 = vector.broadcast %cst_116 : f32 to vector<16x512xf32>
    %281 = arith.maximumf %279, %280 : vector<16x512xf32>
    %282 = arith.truncf %281 : vector<16x512xf32> to vector<16x512xbf16>
    %c0_117 = arith.constant 0 : index
    %c1536_118 = arith.constant 1536 : index
    %c0_119 = arith.constant 0 : index
    %283 = vector.load %arg11[%c0_117, %c1536_118, %c0_119] : memref<1x2048x128xbf16, #tpu.memory_space<vmem>>, vector<1x512x128xbf16>
    %284 = vector.shape_cast %283 : vector<1x512x128xbf16> to vector<512x128xbf16>
    %cst_120 = arith.constant dense<0.000000e+00> : vector<16x128xf32>
    %285 = tpu.matmul %282, %284, %cst_120 {dimension_numbers = #tpu.dot_dimension_numbers<[1], [0], [0], [1], [0, 0, 1, 1], [], []>} : vector<16x512xbf16>, vector<512x128xbf16>, vector<16x128xf32> -> vector<16x128xf32>
    %286 = arith.addf %272, %285 : vector<16x128xf32>
    %c0_121 = arith.constant 0 : index
    %c0_122 = arith.constant 0 : index
    %c0_123 = arith.constant 0 : index
    %287 = vector.load %arg12[%c0_121, %c0_122, %c0_123] : memref<1x1x128xf32, #tpu.memory_space<vmem>>, vector<1x1x128xf32>
    %288 = vector.shape_cast %287 : vector<1x1x128xf32> to vector<1x128xf32>
    %289 = vector.broadcast %288 : vector<1x128xf32> to vector<16x128xf32>
    %290 = arith.addf %286, %289 : vector<16x128xf32>
    %291 = arith.addf %228, %290 : vector<16x128xf32>
    %c0_124 = arith.constant 0 : index
    %c0_125 = arith.constant 0 : index
    %c0_126 = arith.constant 0 : index
    %292 = vector.load %arg13[%c0_124, %c0_125, %c0_126] : memref<1x1x128xf32, #tpu.memory_space<vmem>>, vector<1x1x128xf32>
    %293 = vector.shape_cast %292 : vector<1x1x128xf32> to vector<1x128xf32>
    %c0_127 = arith.constant 0 : index
    %c0_128 = arith.constant 0 : index
    %c0_129 = arith.constant 0 : index
    %294 = vector.load %arg14[%c0_127, %c0_128, %c0_129] : memref<1x1x128xf32, #tpu.memory_space<vmem>>, vector<1x1x128xf32>
    %295 = vector.shape_cast %294 : vector<1x1x128xf32> to vector<1x128xf32>
    %cst_130 = arith.constant dense<0.000000e+00> : vector<16xf32>
    %296 = vector.multi_reduction <add>, %291, %cst_130 [1] : vector<16x128xf32> to vector<16xf32>
    %297 = vector.shape_cast %296 : vector<16xf32> to vector<16x1xf32>
    %cst_131 = arith.constant 1.280000e+02 : f32
    %298 = vector.broadcast %cst_131 : f32 to vector<16x1xf32>
    %299 = arith.divf %297, %298 : vector<16x1xf32>
    %300 = vector.broadcast %299 : vector<16x1xf32> to vector<16x128xf32>
    %301 = arith.subf %291, %300 : vector<16x128xf32>
    %302 = arith.mulf %301, %301 : vector<16x128xf32>
    %cst_132 = arith.constant dense<0.000000e+00> : vector<16xf32>
    %303 = vector.multi_reduction <add>, %302, %cst_132 [1] : vector<16x128xf32> to vector<16xf32>
    %304 = vector.shape_cast %303 : vector<16xf32> to vector<16x1xf32>
    %cst_133 = arith.constant 1.280000e+02 : f32
    %305 = vector.broadcast %cst_133 : f32 to vector<16x1xf32>
    %306 = arith.divf %304, %305 : vector<16x1xf32>
    %307 = vector.broadcast %299 : vector<16x1xf32> to vector<16x128xf32>
    %308 = arith.subf %291, %307 : vector<16x128xf32>
    %cst_134 = arith.constant 9.99999974E-6 : f32
    %309 = vector.broadcast %cst_134 : f32 to vector<16x1xf32>
    %310 = arith.addf %306, %309 : vector<16x1xf32>
    %311 = math.rsqrt %310 : vector<16x1xf32>
    %312 = vector.broadcast %311 : vector<16x1xf32> to vector<16x128xf32>
    %313 = arith.mulf %308, %312 : vector<16x128xf32>
    %314 = vector.broadcast %293 : vector<1x128xf32> to vector<16x128xf32>
    %315 = arith.mulf %313, %314 : vector<16x128xf32>
    %316 = vector.broadcast %295 : vector<1x128xf32> to vector<16x128xf32>
    %317 = arith.addf %315, %316 : vector<16x128xf32>
    %318 = vector.shape_cast %317 : vector<16x128xf32> to vector<2x8x128xf32>
    %c0_135 = arith.constant 0 : index
    %c0_136 = arith.constant 0 : index
    %c0_137 = arith.constant 0 : index
    %319 = vector.load %arg18[%c0_135, %c0_136, %c0_137] : memref<2x8x128xf32, #tpu.memory_space<vmem>>, vector<2x8x128xf32>
    tpu.vector_store %arg18[%c0_135, %c0_136, %c0_137], %318 {strides = array<i32>} : memref<2x8x128xf32, #tpu.memory_space<vmem>>, vector<2x8x128xf32>,
    %c5_i32 = arith.constant 5 : i32
    %320 = arith.cmpi eq, %arg0, %c5_i32 : i32
    %321 = arith.extui %320 : i1 to i32
    %c0_i32_138 = arith.constant 0 : i32
    %322 = arith.cmpi ne, %321, %c0_i32_138 : i32
    scf.if %322 {
      %323 = vector.shape_cast %317 : vector<16x128xf32> to vector<2x8x128xf32>
      %cst_139 = arith.constant dense<0.000000e+00> : vector<2x128xf32>
      %324 = vector.multi_reduction <add>, %323, %cst_139 [1] : vector<2x8x128xf32> to vector<2x128xf32>
      %cst_140 = arith.constant 8.000000e+00 : f32
      %325 = vector.broadcast %cst_140 : f32 to vector<2x128xf32>
      %326 = arith.divf %324, %325 : vector<2x128xf32>
      %327 = arith.truncf %326 : vector<2x128xf32> to vector<2x128xbf16>
      %c0_141 = arith.constant 0 : index
      %c0_142 = arith.constant 0 : index
      %328 = vector.load %arg15[%c0_141, %c0_142] : memref<128x128xbf16, #tpu.memory_space<vmem>>, vector<128x128xbf16>
      %cst_143 = arith.constant dense<0.000000e+00> : vector<2x128xf32>
      %329 = tpu.matmul %327, %328, %cst_143 {dimension_numbers = #tpu.dot_dimension_numbers<[1], [0], [0], [1], [0, 0, 1, 1], [], []>} : vector<2x128xbf16>, vector<128x128xbf16>, vector<2x128xf32> -> vector<2x128xf32>
      %c0_144 = arith.constant 0 : index
      %c0_145 = arith.constant 0 : index
      %330 = vector.load %arg16[%c0_144, %c0_145] : memref<1x128xf32, #tpu.memory_space<vmem>>, vector<1x128xf32>
      %331 = vector.broadcast %330 : vector<1x128xf32> to vector<2x128xf32>
      %332 = arith.addf %329, %331 : vector<2x128xf32>
      %c0_146 = arith.constant 0 : index
      %c0_147 = arith.constant 0 : index
      %333 = vector.load %arg17[%c0_146, %c0_147] : memref<2x128xf32, #tpu.memory_space<vmem>>, vector<2x128xf32>
      tpu.vector_store %arg17[%c0_146, %c0_147], %332 {strides = array<i32>} : memref<2x128xf32, #tpu.memory_space<vmem>>, vector<2x128xf32>,
    } else {
    }
    return
  }
  func.func @transform_0(%arg0: i32) -> (i32, i32, i32) {
    %c0_i32 = arith.constant 0 : i32
    %c0_i32_0 = arith.constant 0 : i32
    %c0_i32_1 = arith.constant 0 : i32
    %c0_i32_2 = arith.constant 0 : i32
    return %c0_i32, %c0_i32_0, %c0_i32_1 : i32, i32, i32
  }
  func.func @transform_1(%arg0: i32) -> (i32, i32) {
    %c0_i32 = arith.constant 0 : i32
    %c0_i32_0 = arith.constant 0 : i32
    %c0_i32_1 = arith.constant 0 : i32
    return %c0_i32, %c0_i32_0 : i32, i32
  }
  func.func @transform_2(%arg0: i32) -> (i32, i32, i32) {
    %c0_i32 = arith.constant 0 : i32
    %c0_i32_0 = arith.constant 0 : i32
    %c0_i32_1 = arith.constant 0 : i32
    return %arg0, %c0_i32, %c0_i32_0 : i32, i32, i32
  }
  func.func @transform_3(%arg0: i32) -> (i32, i32, i32) {
    %c0_i32 = arith.constant 0 : i32
    %c0_i32_0 = arith.constant 0 : i32
    %c0_i32_1 = arith.constant 0 : i32
    return %arg0, %c0_i32, %c0_i32_0 : i32, i32, i32
  }
  func.func @transform_4(%arg0: i32) -> (i32, i32, i32) {
    %c0_i32 = arith.constant 0 : i32
    %c0_i32_0 = arith.constant 0 : i32
    %c0_i32_1 = arith.constant 0 : i32
    return %arg0, %c0_i32, %c0_i32_0 : i32, i32, i32
  }
  func.func @transform_5(%arg0: i32) -> (i32, i32, i32) {
    %c0_i32 = arith.constant 0 : i32
    %c0_i32_0 = arith.constant 0 : i32
    %c0_i32_1 = arith.constant 0 : i32
    return %arg0, %c0_i32, %c0_i32_0 : i32, i32, i32
  }
  func.func @transform_6(%arg0: i32) -> (i32, i32, i32) {
    %c0_i32 = arith.constant 0 : i32
    %c0_i32_0 = arith.constant 0 : i32
    %c0_i32_1 = arith.constant 0 : i32
    return %arg0, %c0_i32, %c0_i32_0 : i32, i32, i32
  }
  func.func @transform_7(%arg0: i32) -> (i32, i32, i32) {
    %c0_i32 = arith.constant 0 : i32
    %c0_i32_0 = arith.constant 0 : i32
    %c0_i32_1 = arith.constant 0 : i32
    return %arg0, %c0_i32, %c0_i32_0 : i32, i32, i32
  }
  func.func @transform_8(%arg0: i32) -> (i32, i32, i32) {
    %c0_i32 = arith.constant 0 : i32
    %c0_i32_0 = arith.constant 0 : i32
    %c0_i32_1 = arith.constant 0 : i32
    return %arg0, %c0_i32, %c0_i32_0 : i32, i32, i32
  }
  func.func @transform_9(%arg0: i32) -> (i32, i32, i32) {
    %c0_i32 = arith.constant 0 : i32
    %c0_i32_0 = arith.constant 0 : i32
    %c0_i32_1 = arith.constant 0 : i32
    return %arg0, %c0_i32, %c0_i32_0 : i32, i32, i32
  }
  func.func @transform_10(%arg0: i32) -> (i32, i32, i32) {
    %c0_i32 = arith.constant 0 : i32
    %c0_i32_0 = arith.constant 0 : i32
    %c0_i32_1 = arith.constant 0 : i32
    return %arg0, %c0_i32, %c0_i32_0 : i32, i32, i32
  }
  func.func @transform_11(%arg0: i32) -> (i32, i32, i32) {
    %c0_i32 = arith.constant 0 : i32
    %c0_i32_0 = arith.constant 0 : i32
    %c0_i32_1 = arith.constant 0 : i32
    return %arg0, %c0_i32, %c0_i32_0 : i32, i32, i32
  }
  func.func @transform_12(%arg0: i32) -> (i32, i32, i32) {
    %c0_i32 = arith.constant 0 : i32
    %c0_i32_0 = arith.constant 0 : i32
    %c0_i32_1 = arith.constant 0 : i32
    return %arg0, %c0_i32, %c0_i32_0 : i32, i32, i32
  }
  func.func @transform_13(%arg0: i32) -> (i32, i32, i32) {
    %c0_i32 = arith.constant 0 : i32
    %c0_i32_0 = arith.constant 0 : i32
    %c0_i32_1 = arith.constant 0 : i32
    return %arg0, %c0_i32, %c0_i32_0 : i32, i32, i32
  }
  func.func @transform_14(%arg0: i32) -> (i32, i32) {
    %c0_i32 = arith.constant 0 : i32
    %c0_i32_0 = arith.constant 0 : i32
    %c0_i32_1 = arith.constant 0 : i32
    return %c0_i32, %c0_i32_0 : i32, i32
  }
  func.func @transform_15(%arg0: i32) -> (i32, i32) {
    %c0_i32 = arith.constant 0 : i32
    %c0_i32_0 = arith.constant 0 : i32
    %c0_i32_1 = arith.constant 0 : i32
    return %c0_i32, %c0_i32_0 : i32, i32
  }
  func.func @transform_16(%arg0: i32) -> (i32, i32) {
    %c0_i32 = arith.constant 0 : i32
    %c0_i32_0 = arith.constant 0 : i32
    %c0_i32_1 = arith.constant 0 : i32
    return %c0_i32, %c0_i32_0 : i32, i32
  }
}

</mosaic_0001>

<llo_original>
// kernel: transformer_classifier_forward.1
$region0: #{transformer_classifier_forward.1}
  #allocation0 [shape = 'u32[]', space=smem, size = 0x4, offset = 0x4, fixed_abs, tag = 'smem constant byte address 0x4 - core index']
  #allocation1 [shape = 'u32[72,128]{1,0:T(1,128)}', space=vmem, size = 0x9000, scoped, tag = 'internal scratch']
  #allocation2 [shape = 'f32[2,8,128]{2,1,0:T(8,128)}', space=vmem, size = 0x2000, scoped, tag = 'scratch operand']
  %s0 = inlined_call_operand.vmem [shape: f32[2,8,128], index: 0, kind: input, shape index: {}]
  %s1 = inlined_call_operand.vmem [shape: f32[8,128], index: 1, kind: input, shape index: {}]
  %s2 = inlined_call_operand.hbm [shape: bf16[6,128,384], index: 2, kind: input, shape index: {}]
  %s3 = inlined_call_operand.hbm [shape: f32[6,1,384], index: 3, kind: input, shape index: {}]
  %s4 = inlined_call_operand.hbm [shape: bf16[6,128,128], index: 4, kind: input, shape index: {}]
  %s5 = inlined_call_operand.hbm [shape: f32[6,1,128], index: 5, kind: input, shape index: {}]
  %s6 = inlined_call_operand.hbm [shape: f32[6,1,128], index: 6, kind: input, shape index: {}]
  %s7 = inlined_call_operand.hbm [shape: f32[6,1,128], index: 7, kind: input, shape index: {}]
  %s8 = inlined_call_operand.hbm [shape: bf16[6,128,2048], index: 8, kind: input, shape index: {}]
  %s9 = inlined_call_operand.hbm [shape: f32[6,1,2048], index: 9, kind: input, shape index: {}]
  %s10 = inlined_call_operand.hbm [shape: bf16[6,2048,128], index: 10, kind: input, shape index: {}]
  %s11 = inlined_call_operand.hbm [shape: f32[6,1,128], index: 11, kind: input, shape index: {}]
  %s12 = inlined_call_operand.hbm [shape: f32[6,1,128], index: 12, kind: input, shape index: {}]
  %s13 = inlined_call_operand.hbm [shape: f32[6,1,128], index: 13, kind: input, shape index: {}]
  %s14 = inlined_call_operand.hbm [shape: bf16[128,128], index: 14, kind: input, shape index: {}]
  %s15 = inlined_call_operand.hbm [shape: f32[1,128], index: 15, kind: input, shape index: {}]
  %s16 = inlined_call_operand.hbm [shape: f32[2,128], index: 16, kind: output, shape index: {}]
  %s17 = sld [smem:[#allocation0]]
  $region161: #{transformer_classifier_forward.1} parent=0
    _
  %s19 = ssub.s32 1, %s17
  %s20 = scalar_select 0, %s19, %s17
  $region1: #{transformer_classifier_forward.1} parent=0
    #allocation3 [shape = 'u8[196608]{0}', space=vmem, size = 0x30000, scoped, tag = 'input window, operand 2']
    #allocation4 [shape = 's32[2]{0}', space=sflag, size = 0x8, scoped, tag = 'scoped memory for transformer_classifier_forward.1']
    #allocation5 [shape = 's32[2]{0}', space=sflag, size = 0x8, scoped, tag = 'scoped memory for transformer_classifier_forward.1']
    #allocation6 [shape = 'u8[3072]{0}', space=vmem, size = 0xc00, scoped, tag = 'input window, operand 3']
    #allocation7 [shape = 's32[2]{0}', space=sflag, size = 0x8, scoped, tag = 'scoped memory for transformer_classifier_forward.1']
    #allocation8 [shape = 'u8[65536]{0}', space=vmem, size = 0x10000, scoped, tag = 'input window, operand 4']
    #allocation9 [shape = 'u8[1024]{0}', space=vmem, size = 0x400, scoped, tag = 'input window, operand 5']
    #allocation10 [shape = 's32[2]{0}', space=sflag, size = 0x8, scoped, tag = 'scoped memory for transformer_classifier_forward.1']
    #allocation11 [shape = 'u8[1024]{0}', space=vmem, size = 0x400, scoped, tag = 'input window, operand 6']
    #allocation12 [shape = 'u8[1024]{0}', space=vmem, size = 0x400, scoped, tag = 'input window, operand 7']
    #allocation13 [shape = 's32[2]{0}', space=sflag, size = 0x8, scoped, tag = 'scoped memory for transformer_classifier_forward.1']
    #allocation14 [shape = 'u8[1048576]{0}', space=vmem, size = 0x100000, scoped, tag = 'input window, operand 8']
    #allocation15 [shape = 'u8[16384]{0}', space=vmem, size = 0x4000, scoped, tag = 'input window, operand 9']
    #allocation16 [shape = 's32[2]{0}', space=sflag, size = 0x8, scoped, tag = 'scoped memory for transformer_classifier_forward.1']
    #allocation17 [shape = 'u8[1048576]{0}', space=vmem, size = 0x100000, scoped, tag = 'input window, operand 10']
    #allocation18 [shape = 'u8[1024]{0}', space=vmem, size = 0x400, scoped, tag = 'input window, operand 11']
    #allocation19 [shape = 's32[2]{0}', space=sflag, size = 0x8, scoped, tag = 'scoped memory for transformer_classifier_forward.1']
    #allocation20 [shape = 'u8[1024]{0}', space=vmem, size = 0x400, scoped, tag = 'input window, operand 12']
    #allocation21 [shape = 'u8[1024]{0}', space=vmem, size = 0x400, scoped, tag = 'input window, operand 13']
    #allocation22 [shape = 's32[2]{0}', space=sflag, size = 0x8, scoped, tag = 'scoped memory for transformer_classifier_forward.1']
    #allocation23 [shape = 'u8[32768]{0}', space=vmem, size = 0x8000, scoped, tag = 'input window, operand 14, single buffered']
    #allocation24 [shape = 'u8[512]{0}', space=vmem, size = 0x400, scoped, tag = 'input window, operand 15, single buffered']
    #allocation25 [shape = 's32[1]{0}', space=sflag, size = 0x4, scoped, tag = 'scoped memory for transformer_classifier_forward.1']
    #allocation26 [shape = 'u8[1024]{0}', space=vmem, size = 0x400, scoped, tag = 'output window, operand 0, single buffered']
    %21 = vsyncpa [#allocation4], 0
    %s22 = scalar_lea.sflag [#allocation4], 1
    %23 = vsyncpa %s22, 0
    %24 = vsyncpa [#allocation7], 0
    %s25 = scalar_lea.sflag [#allocation7], 1
    %26 = vsyncpa %s25, 0
    %27 = vsyncpa [#allocation10], 0
    %s28 = scalar_lea.sflag [#allocation10], 1
    %29 = vsyncpa %s28, 0
    %30 = vsyncpa [#allocation13], 0
    %s31 = scalar_lea.sflag [#allocation13], 1
    %32 = vsyncpa %s31, 0
    %33 = vsyncpa [#allocation16], 0
    %s34 = scalar_lea.sflag [#allocation16], 1
    %35 = vsyncpa %s34, 0
    %36 = vsyncpa [#allocation19], 0
    %s37 = scalar_lea.sflag [#allocation19], 1
    %38 = vsyncpa %s37, 0
    %39 = vsyncpa [#allocation22], 0
    %s40 = scalar_lea.sflag [#allocation22], 1
    %41 = vsyncpa %s40, 0
    %42 = vsyncpa [#allocation25], 0
    %43 = vsyncpa [#allocation5], 0
    loop: start=0, step=1, limit=8
    $region2: #{transformer_classifier_forward.1} parent=1 // loop_pre_header
      _
    $region3: #{transformer_classifier_forward.1} parent=1 // loop_header
      %s45 = sphi 0, %s49
      %p46 = scmp.ge.s32.totalorder %s45, 8
      %s53 = sphi 0, %s53
      %s55 = sphi 0, %s53
      %s56 = sphi 0, %s55
      %s70 = sphi 0, %s56
      %s74 = sphi 0, %s74
      %s76 = sphi 0, %s74
      %s77 = sphi 0, %s76
      %s91 = sphi 0, %s77
      %s97 = sphi 0, %s99
      %s100 = sphi 0, %s97
      %s101 = sphi 0, %s100
      %s117 = sphi 0, %s101
      %s123 = sphi 0, %s125
      %s126 = sphi 0, %s123
      %s127 = sphi 0, %s126
      %s143 = sphi 0, %s127
      %s149 = sphi 0, %s151
      %s152 = sphi 0, %s149
      %s153 = sphi 0, %s152
      %s169 = sphi 0, %s153
      %s175 = sphi 0, %s177
      %s178 = sphi 0, %s175
      %s179 = sphi 0, %s178
      %s195 = sphi 0, %s179
      %s201 = sphi 0, %s203
      %s204 = sphi 0, %s201
      %s205 = sphi 0, %s204
      %s221 = sphi 0, %s205
      %s227 = sphi 0, %s229
      %s230 = sphi 0, %s227
      %s231 = sphi 0, %s230
      %s247 = sphi 0, %s231
      %s253 = sphi 0, %s255
      %s256 = sphi 0, %s253
      %s257 = sphi 0, %s256
      %s273 = sphi 0, %s257
      %s279 = sphi 0, %s281
      %s282 = sphi 0, %s279
      %s283 = sphi 0, %s282
      %s299 = sphi 0, %s283
      %s305 = sphi 0, %s307
      %s308 = sphi 0, %s305
      %s309 = sphi 0, %s308
      %s325 = sphi 0, %s309
      %s331 = sphi 0, %s333
      %s334 = sphi 0, %s331
      %s335 = sphi 0, %s334
      %s351 = sphi 0, %s335
      %s357 = sphi 0, %s359
      %s360 = sphi 0, %s357
      %s361 = sphi 0, %s360
      %s377 = sphi 0, %s361
      %s383 = sphi 0, %s385
      %s386 = sphi 0, %s383
      %s387 = sphi 0, %s386
      %s403 = sphi 0, %s387
      %s407 = sphi 0, %s407
      %s409 = sphi 0, %s407
      %s410 = sphi 0, %s409
      %s424 = sphi 0, %s410
      %s428 = sphi 0, %s428
      %s430 = sphi 0, %s428
      %s431 = sphi 0, %s430
      %s445 = sphi 0, %s431
      %s449 = sphi 0, %s449
      %s451 = sphi 0, %s449
      %s452 = sphi 0, %s451
      %s466 = sphi 0, %s452
    $region4: #{transformer_classifier_forward.1} parent=1 // loop_header_branch
      %48 = sbr.rel (%p46) target = $region8
    $region5: #{transformer_classifier_forward.1} parent=1 // loop_body
      %s50 = ssub.s32 %s45, 1
      %s51 = ssub.s32 %s45, 2
      %s52 = sadd.s32 %s45, 1
      %s54 = sadd.s32 %s53, 1
      %p57 = scmp.eq.s32.totalorder %s45, 5
      %p58 = scmp.ne.s32.totalorder %s53, %s55
      %p59 = scmp.eq.s32.totalorder %s45, 0
      %p60 = por %p58, %p59
      %p61 = scmp.ne.s32.totalorder %s53, %s55
      %p62 = scmp.eq.s32.totalorder %s50, 5
      %p63 = por %p61, %p62
      %p64 = scmp.ne.s32.totalorder %s55, %s56
      %p65 = scmp.eq.s32.totalorder %s50, 0
      %p66 = por %p64, %p65
      %p67 = scmp.ne.s32.totalorder %s55, %s56
      %p68 = scmp.eq.s32.totalorder %s51, 5
      %p69 = por %p67, %p68
      %p71 = scmp.ne.s32.totalorder %s56, %s70
      %p72 = scmp.eq.s32.totalorder %s51, 0
      %p73 = por %p71, %p72
      %s75 = sadd.s32 %s74, 1
      %p78 = scmp.eq.s32.totalorder %s45, 5
      %p79 = scmp.ne.s32.totalorder %s74, %s76
      %p80 = scmp.eq.s32.totalorder %s45, 0
      %p81 = por %p79, %p80
      %p82 = scmp.ne.s32.totalorder %s74, %s76
      %p83 = scmp.eq.s32.totalorder %s50, 5
      %p84 = por %p82, %p83
      %p85 = scmp.ne.s32.totalorder %s76, %s77
      %p86 = scmp.eq.s32.totalorder %s50, 0
      %p87 = por %p85, %p86
      %p88 = scmp.ne.s32.totalorder %s76, %s77
      %p89 = scmp.eq.s32.totalorder %s51, 5
      %p90 = por %p88, %p89
      %p92 = scmp.ne.s32.totalorder %s77, %s91
      %p93 = scmp.eq.s32.totalorder %s51, 0
      %p94 = por %p92, %p93
      %s95 = ssub.s32 %s45, %s52
      %p96 = scmp.eq.s32.totalorder %s95, 0
      %s98 = sadd.s32 %s97, 1
      %s99 = scalar_select %p96, %s97, %s98
      %p102 = pneg %p96
      %p103 = scmp.eq.s32.totalorder %s45, 5
      %p104 = por %p102, %p103
      %p105 = scmp.ne.s32.totalorder %s97, %s100
      %p106 = scmp.eq.s32.totalorder %s45, 0
      %p107 = por %p105, %p106
      %p108 = scmp.ne.s32.totalorder %s97, %s100
      %p109 = scmp.eq.s32.totalorder %s50, 5
      %p110 = por %p108, %p109
      %p111 = scmp.ne.s32.totalorder %s100, %s101
      %p112 = scmp.eq.s32.totalorder %s50, 0
      %p113 = por %p111, %p112
      %p114 = scmp.ne.s32.totalorder %s100, %s101
      %p115 = scmp.eq.s32.totalorder %s51, 5
      %p116 = por %p114, %p115
      %p118 = scmp.ne.s32.totalorder %s101, %s117
      %p119 = scmp.eq.s32.totalorder %s51, 0
      %p120 = por %p118, %p119
      %s121 = ssub.s32 %s45, %s52
      %p122 = scmp.eq.s32.totalorder %s121, 0
      %s124 = sadd.s32 %s123, 1
      %s125 = scalar_select %p122, %s123, %s124
      %p128 = pneg %p122
      %p129 = scmp.eq.s32.totalorder %s45, 5
      %p130 = por %p128, %p129
      %p131 = scmp.ne.s32.totalorder %s123, %s126
      %p132 = scmp.eq.s32.totalorder %s45, 0
      %p133 = por %p131, %p132
      %p134 = scmp.ne.s32.totalorder %s123, %s126
      %p135 = scmp.eq.s32.totalorder %s50, 5
      %p136 = por %p134, %p135
      %p137 = scmp.ne.s32.totalorder %s126, %s127
      %p138 = scmp.eq.s32.totalorder %s50, 0
      %p139 = por %p137, %p138
      %p140 = scmp.ne.s32.totalorder %s126, %s127
      %p141 = scmp.eq.s32.totalorder %s51, 5
      %p142 = por %p140, %p141
      %p144 = scmp.ne.s32.totalorder %s127, %s143
      %p145 = scmp.eq.s32.totalorder %s51, 0
      %p146 = por %p144, %p145
      %s147 = ssub.s32 %s45, %s52
      %p148 = scmp.eq.s32.totalorder %s147, 0
      %s150 = sadd.s32 %s149, 1
      %s151 = scalar_select %p148, %s149, %s150
      %p154 = pneg %p148
      %p155 = scmp.eq.s32.totalorder %s45, 5
      %p156 = por %p154, %p155
      %p157 = scmp.ne.s32.totalorder %s149, %s152
      %p158 = scmp.eq.s32.totalorder %s45, 0
      %p159 = por %p157, %p158
      %p160 = scmp.ne.s32.totalorder %s149, %s152
      %p161 = scmp.eq.s32.totalorder %s50, 5
      %p162 = por %p160, %p161
      %p163 = scmp.ne.s32.totalorder %s152, %s153
      %p164 = scmp.eq.s32.totalorder %s50, 0
      %p165 = por %p163, %p164
      %p166 = scmp.ne.s32.totalorder %s152, %s153
      %p167 = scmp.eq.s32.totalorder %s51, 5
      %p168 = por %p166, %p167
      %p170 = scmp.ne.s32.totalorder %s153, %s169
      %p171 = scmp.eq.s32.totalorder %s51, 0
      %p172 = por %p170, %p171
      %s173 = ssub.s32 %s45, %s52
      %p174 = scmp.eq.s32.totalorder %s173, 0
      %s176 = sadd.s32 %s175, 1
      %s177 = scalar_select %p174, %s175, %s176
      %p180 = pneg %p174
      %p181 = scmp.eq.s32.totalorder %s45, 5
      %p182 = por %p180, %p181
      %p183 = scmp.ne.s32.totalorder %s175, %s178
      %p184 = scmp.eq.s32.totalorder %s45, 0
      %p185 = por %p183, %p184
      %p186 = scmp.ne.s32.totalorder %s175, %s178
      %p187 = scmp.eq.s32.totalorder %s50, 5
      %p188 = por %p186, %p187
      %p189 = scmp.ne.s32.totalorder %s178, %s179
      %p190 = scmp.eq.s32.totalorder %s50, 0
      %p191 = por %p189, %p190
      %p192 = scmp.ne.s32.totalorder %s178, %s179
      %p193 = scmp.eq.s32.totalorder %s51, 5
      %p194 = por %p192, %p193
      %p196 = scmp.ne.s32.totalorder %s179, %s195
      %p197 = scmp.eq.s32.totalorder %s51, 0
      %p198 = por %p196, %p197
      %s199 = ssub.s32 %s45, %s52
      %p200 = scmp.eq.s32.totalorder %s199, 0
      %s202 = sadd.s32 %s201, 1
      %s203 = scalar_select %p200, %s201, %s202
      %p206 = pneg %p200
      %p207 = scmp.eq.s32.totalorder %s45, 5
      %p208 = por %p206, %p207
      %p209 = scmp.ne.s32.totalorder %s201, %s204
      %p210 = scmp.eq.s32.totalorder %s45, 0
      %p211 = por %p209, %p210
      %p212 = scmp.ne.s32.totalorder %s201, %s204
      %p213 = scmp.eq.s32.totalorder %s50, 5
      %p214 = por %p212, %p213
      %p215 = scmp.ne.s32.totalorder %s204, %s205
      %p216 = scmp.eq.s32.totalorder %s50, 0
      %p217 = por %p215, %p216
      %p218 = scmp.ne.s32.totalorder %s204, %s205
      %p219 = scmp.eq.s32.totalorder %s51, 5
      %p220 = por %p218, %p219
      %p222 = scmp.ne.s32.totalorder %s205, %s221
      %p223 = scmp.eq.s32.totalorder %s51, 0
      %p224 = por %p222, %p223
      %s225 = ssub.s32 %s45, %s52
      %p226 = scmp.eq.s32.totalorder %s225, 0
      %s228 = sadd.s32 %s227, 1
      %s229 = scalar_select %p226, %s227, %s228
      %p232 = pneg %p226
      %p233 = scmp.eq.s32.totalorder %s45, 5
      %p234 = por %p232, %p233
      %p235 = scmp.ne.s32.totalorder %s227, %s230
      %p236 = scmp.eq.s32.totalorder %s45, 0
      %p237 = por %p235, %p236
      %p238 = scmp.ne.s32.totalorder %s227, %s230
      %p239 = scmp.eq.s32.totalorder %s50, 5
      %p240 = por %p238, %p239
      %p241 = scmp.ne.s32.totalorder %s230, %s231
      %p242 = scmp.eq.s32.totalorder %s50, 0
      %p243 = por %p241, %p242
      %p244 = scmp.ne.s32.totalorder %s230, %s231
      %p245 = scmp.eq.s32.totalorder %s51, 5
      %p246 = por %p244, %p245
      %p248 = scmp.ne.s32.totalorder %s231, %s247
      %p249 = scmp.eq.s32.totalorder %s51, 0
      %p250 = por %p248, %p249
      %s251 = ssub.s32 %s45, %s52
      %p252 = scmp.eq.s32.totalorder %s251, 0
      %s254 = sadd.s32 %s253, 1
      %s255 = scalar_select %p252, %s253, %s254
      %p258 = pneg %p252
      %p259 = scmp.eq.s32.totalorder %s45, 5
      %p260 = por %p258, %p259
      %p261 = scmp.ne.s32.totalorder %s253, %s256
      %p262 = scmp.eq.s32.totalorder %s45, 0
      %p263 = por %p261, %p262
      %p264 = scmp.ne.s32.totalorder %s253, %s256
      %p265 = scmp.eq.s32.totalorder %s50, 5
      %p266 = por %p264, %p265
      %p267 = scmp.ne.s32.totalorder %s256, %s257
      %p268 = scmp.eq.s32.totalorder %s50, 0
      %p269 = por %p267, %p268
      %p270 = scmp.ne.s32.totalorder %s256, %s257
      %p271 = scmp.eq.s32.totalorder %s51, 5
      %p272 = por %p270, %p271
      %p274 = scmp.ne.s32.totalorder %s257, %s273
      %p275 = scmp.eq.s32.totalorder %s51, 0
      %p276 = por %p274, %p275
      %s277 = ssub.s32 %s45, %s52
      %p278 = scmp.eq.s32.totalorder %s277, 0
      %s280 = sadd.s32 %s279, 1
      %s281 = scalar_select %p278, %s279, %s280
      %p284 = pneg %p278
      %p285 = scmp.eq.s32.totalorder %s45, 5
      %p286 = por %p284, %p285
      %p287 = scmp.ne.s32.totalorder %s279, %s282
      %p288 = scmp.eq.s32.totalorder %s45, 0
      %p289 = por %p287, %p288
      %p290 = scmp.ne.s32.totalorder %s279, %s282
      %p291 = scmp.eq.s32.totalorder %s50, 5
      %p292 = por %p290, %p291
      %p293 = scmp.ne.s32.totalorder %s282, %s283
      %p294 = scmp.eq.s32.totalorder %s50, 0
      %p295 = por %p293, %p294
      %p296 = scmp.ne.s32.totalorder %s282, %s283
      %p297 = scmp.eq.s32.totalorder %s51, 5
      %p298 = por %p296, %p297
      %p300 = scmp.ne.s32.totalorder %s283, %s299
      %p301 = scmp.eq.s32.totalorder %s51, 0
      %p302 = por %p300, %p301
      %s303 = ssub.s32 %s45, %s52
      %p304 = scmp.eq.s32.totalorder %s303, 0
      %s306 = sadd.s32 %s305, 1
      %s307 = scalar_select %p304, %s305, %s306
      %p310 = pneg %p304
      %p311 = scmp.eq.s32.totalorder %s45, 5
      %p312 = por %p310, %p311
      %p313 = scmp.ne.s32.totalorder %s305, %s308
      %p314 = scmp.eq.s32.totalorder %s45, 0
      %p315 = por %p313, %p314
      %p316 = scmp.ne.s32.totalorder %s305, %s308
      %p317 = scmp.eq.s32.totalorder %s50, 5
      %p318 = por %p316, %p317
      %p319 = scmp.ne.s32.totalorder %s308, %s309
      %p320 = scmp.eq.s32.totalorder %s50, 0
      %p321 = por %p319, %p320
      %p322 = scmp.ne.s32.totalorder %s308, %s309
      %p323 = scmp.eq.s32.totalorder %s51, 5
      %p324 = por %p322, %p323
      %p326 = scmp.ne.s32.totalorder %s309, %s325
      %p327 = scmp.eq.s32.totalorder %s51, 0
      %p328 = por %p326, %p327
      %s329 = ssub.s32 %s45, %s52
      %p330 = scmp.eq.s32.totalorder %s329, 0
      %s332 = sadd.s32 %s331, 1
      %s333 = scalar_select %p330, %s331, %s332
      %p336 = pneg %p330
      %p337 = scmp.eq.s32.totalorder %s45, 5
      %p338 = por %p336, %p337
      %p339 = scmp.ne.s32.totalorder %s331, %s334
      %p340 = scmp.eq.s32.totalorder %s45, 0
      %p341 = por %p339, %p340
      %p342 = scmp.ne.s32.totalorder %s331, %s334
      %p343 = scmp.eq.s32.totalorder %s50, 5
      %p344 = por %p342, %p343
      %p345 = scmp.ne.s32.totalorder %s334, %s335
      %p346 = scmp.eq.s32.totalorder %s50, 0
      %p347 = por %p345, %p346
      %p348 = scmp.ne.s32.totalorder %s334, %s335
      %p349 = scmp.eq.s32.totalorder %s51, 5
      %p350 = por %p348, %p349
      %p352 = scmp.ne.s32.totalorder %s335, %s351
      %p353 = scmp.eq.s32.totalorder %s51, 0
      %p354 = por %p352, %p353
      %s355 = ssub.s32 %s45, %s52
      %p356 = scmp.eq.s32.totalorder %s355, 0
      %s358 = sadd.s32 %s357, 1
      %s359 = scalar_select %p356, %s357, %s358
      %p362 = pneg %p356
      %p363 = scmp.eq.s32.totalorder %s45, 5
      %p364 = por %p362, %p363
      %p365 = scmp.ne.s32.totalorder %s357, %s360
      %p366 = scmp.eq.s32.totalorder %s45, 0
      %p367 = por %p365, %p366
      %p368 = scmp.ne.s32.totalorder %s357, %s360
      %p369 = scmp.eq.s32.totalorder %s50, 5
      %p370 = por %p368, %p369
      %p371 = scmp.ne.s32.totalorder %s360, %s361
      %p372 = scmp.eq.s32.totalorder %s50, 0
      %p373 = por %p371, %p372
      %p374 = scmp.ne.s32.totalorder %s360, %s361
      %p375 = scmp.eq.s32.totalorder %s51, 5
      %p376 = por %p374, %p375
      %p378 = scmp.ne.s32.totalorder %s361, %s377
      %p379 = scmp.eq.s32.totalorder %s51, 0
      %p380 = por %p378, %p379
      %s381 = ssub.s32 %s45, %s52
      %p382 = scmp.eq.s32.totalorder %s381, 0
      %s384 = sadd.s32 %s383, 1
      %s385 = scalar_select %p382, %s383, %s384
      %p388 = pneg %p382
      %p389 = scmp.eq.s32.totalorder %s45, 5
      %p390 = por %p388, %p389
      %p391 = scmp.ne.s32.totalorder %s383, %s386
      %p392 = scmp.eq.s32.totalorder %s45, 0
      %p393 = por %p391, %p392
      %p394 = scmp.ne.s32.totalorder %s383, %s386
      %p395 = scmp.eq.s32.totalorder %s50, 5
      %p396 = por %p394, %p395
      %p397 = scmp.ne.s32.totalorder %s386, %s387
      %p398 = scmp.eq.s32.totalorder %s50, 0
      %p399 = por %p397, %p398
      %p400 = scmp.ne.s32.totalorder %s386, %s387
      %p401 = scmp.eq.s32.totalorder %s51, 5
      %p402 = por %p400, %p401
      %p404 = scmp.ne.s32.totalorder %s387, %s403
      %p405 = scmp.eq.s32.totalorder %s51, 0
      %p406 = por %p404, %p405
      %s408 = sadd.s32 %s407, 1
      %p411 = scmp.eq.s32.totalorder %s45, 5
      %p412 = scmp.ne.s32.totalorder %s407, %s409
      %p413 = scmp.eq.s32.totalorder %s45, 0
      %p414 = por %p412, %p413
      %p415 = scmp.ne.s32.totalorder %s407, %s409
      %p416 = scmp.eq.s32.totalorder %s50, 5
      %p417 = por %p415, %p416
      %p418 = scmp.ne.s32.totalorder %s409, %s410
      %p419 = scmp.eq.s32.totalorder %s50, 0
      %p420 = por %p418, %p419
      %p421 = scmp.ne.s32.totalorder %s409, %s410
      %p422 = scmp.eq.s32.totalorder %s51, 5
      %p423 = por %p421, %p422
      %p425 = scmp.ne.s32.totalorder %s410, %s424
      %p426 = scmp.eq.s32.totalorder %s51, 0
      %p427 = por %p425, %p426
      %s429 = sadd.s32 %s428, 1
      %p432 = scmp.eq.s32.totalorder %s45, 5
      %p433 = scmp.ne.s32.totalorder %s428, %s430
      %p434 = scmp.eq.s32.totalorder %s45, 0
      %p435 = por %p433, %p434
      %p436 = scmp.ne.s32.totalorder %s428, %s430
      %p437 = scmp.eq.s32.totalorder %s50, 5
      %p438 = por %p436, %p437
      %p439 = scmp.ne.s32.totalorder %s430, %s431
      %p440 = scmp.eq.s32.totalorder %s50, 0
      %p441 = por %p439, %p440
      %p442 = scmp.ne.s32.totalorder %s430, %s431
      %p443 = scmp.eq.s32.totalorder %s51, 5
      %p444 = por %p442, %p443
      %p446 = scmp.ne.s32.totalorder %s431, %s445
      %p447 = scmp.eq.s32.totalorder %s51, 0
      %p448 = por %p446, %p447
      %s450 = sadd.s32 %s449, 1
      %p453 = scmp.eq.s32.totalorder %s45, 5
      %p454 = scmp.ne.s32.totalorder %s449, %s451
      %p455 = scmp.eq.s32.totalorder %s45, 0
      %p456 = por %p454, %p455
      %p457 = scmp.ne.s32.totalorder %s449, %s451
      %p458 = scmp.eq.s32.totalorder %s50, 5
      %p459 = por %p457, %p458
      %p460 = scmp.ne.s32.totalorder %s451, %s452
      %p461 = scmp.eq.s32.totalorder %s50, 0
      %p462 = por %p460, %p461
      %p463 = scmp.ne.s32.totalorder %s451, %s452
      %p464 = scmp.eq.s32.totalorder %s51, 5
      %p465 = por %p463, %p464
      %p467 = scmp.ne.s32.totalorder %s452, %s466
      %p468 = scmp.eq.s32.totalorder %s51, 0
      %p469 = por %p467, %p468
      %p470 = scmp.le.s32.totalorder 1, %s45
      %p471 = scmp.lt.s32.totalorder %s45, 7
      %p472 = pnand %p470, %p471
      %p473 = pneg %p472
      // Predicated region
      $region9: #{transformer_classifier_forward.1} parent=5 // pred_check
        _
      $region10: #{transformer_classifier_forward.1} parent=5 // pred_check_branch
        %475 = sbr.rel (%p472) target = $region12
      $region11: #{transformer_classifier_forward.1} parent=5 // pred_region
        %s476 = ssub.s32 %s45, 1
        // Predicated region
        $region13: #{transformer_classifier_forward.1} parent=11 // pred_check
          %p477 = pneg %p66
        $region14: #{transformer_classifier_forward.1} parent=11 // pred_check_branch
          %479 = sbr.rel (%p477) target = $region16
        $region15: #{transformer_classifier_forward.1} parent=11 // pred_region
          _
        $region16: #{transformer_classifier_forward.1} parent=11 // pred_fallthru
          _
        // Predicated region
        $region17: #{transformer_classifier_forward.1} parent=11 // pred_check
          %p480 = pneg %p87
        $region18: #{transformer_classifier_forward.1} parent=11 // pred_check_branch
          %482 = sbr.rel (%p480) target = $region20
        $region19: #{transformer_classifier_forward.1} parent=11 // pred_region
          _
        $region20: #{transformer_classifier_forward.1} parent=11 // pred_fallthru
          _
        // Predicated region
        $region21: #{transformer_classifier_forward.1} parent=11 // pred_check
          %p483 = pneg %p420
        $region22: #{transformer_classifier_forward.1} parent=11 // pred_check_branch
          %485 = sbr.rel (%p483) target = $region24
        $region23: #{transformer_classifier_forward.1} parent=11 // pred_region
          %487 = vsyncadd [#allocation22], 0
          %s488 = sshll.u32 %s14, 4
          %s489 = int_to_ptr.hbm [resolvable:$true] %s488
          %s490 = sshll.u32 [#allocation23], 4
          %s491 = int_to_ptr.vmem [resolvable:$true] %s490
          %496 = dma.hbm_to_vmem [thread:$0]  %s489, 1024, %s491, [#allocation22], 64, 64, 4
        $region24: #{transformer_classifier_forward.1} parent=11 // pred_fallthru
          _
        // Predicated region
        $region25: #{transformer_classifier_forward.1} parent=11 // pred_check
          %p497 = pneg %p441
        $region26: #{transformer_classifier_forward.1} parent=11 // pred_check_branch
          %499 = sbr.rel (%p497) target = $region28
        $region27: #{transformer_classifier_forward.1} parent=11 // pred_region
          %501 = vsyncadd [#allocation25], 0
          %s503 = sshll.u32 %s15, 4
          %s504 = int_to_ptr.hbm [resolvable:$true] %s503
          %s505 = sshll.u32 [#allocation24], 4
          %s506 = int_to_ptr.vmem [resolvable:$true] %s505
          %508 = dma.hbm_to_vmem [thread:$0]  %s504, 16, %s506, [#allocation25]
        $region28: #{transformer_classifier_forward.1} parent=11 // pred_fallthru
          _
      $region12: #{transformer_classifier_forward.1} parent=5 // pred_fallthru
        _
      %p509 = scmp.lt.s32.totalorder %s45, 6
      // Predicated region
      $region29: #{transformer_classifier_forward.1} parent=5 // pred_check
        %p510 = pneg %p509
      $region30: #{transformer_classifier_forward.1} parent=5 // pred_check_branch
        %512 = sbr.rel (%p510) target = $region32
      $region31: #{transformer_classifier_forward.1} parent=5 // pred_region
        // Predicated region
        $region33: #{transformer_classifier_forward.1} parent=31 // pred_check
          %p513 = pneg %p107
        $region34: #{transformer_classifier_forward.1} parent=31 // pred_check_branch
          %515 = sbr.rel (%p513) target = $region36
        $region35: #{transformer_classifier_forward.1} parent=31 // pred_region
          %s516 = sand.u32 %s97, 1
          %s517 = scalar_lea.sflag [#allocation4], %s516
          %s518 = sand.u32 %s97, 1
          %s519 = smul.addr %s518, 192
          %s520 = scalar_lea.vmem [#allocation3], %s519
          %522 = vsyncadd %s517, 0
          %s523 = smul.addr %s45, 48
          %s524 = smul.addr %s523, 4
          %s525 = scalar_lea.hbm %s2, %s524
          %s526 = sshll.u32 %s525, 4
          %s527 = int_to_ptr.hbm [resolvable:$true] %s526
          %s528 = sshll.u32 %s520, 4
          %s529 = int_to_ptr.vmem [resolvable:$true] %s528
          %534 = dma.hbm_to_vmem [thread:$0]  %s527, 3072, %s529, %s517, 192, 192, 12
        $region36: #{transformer_classifier_forward.1} parent=31 // pred_fallthru
          _
        // Predicated region
        $region37: #{transformer_classifier_forward.1} parent=31 // pred_check
          %p535 = pneg %p133
        $region38: #{transformer_classifier_forward.1} parent=31 // pred_check_branch
          %537 = sbr.rel (%p535) target = $region40
        $region39: #{transformer_classifier_forward.1} parent=31 // pred_region
          %s538 = sand.u32 %s45, 1
          %s539 = scalar_lea.sflag [#allocation7], %s538
          %s540 = sand.u32 %s123, 1
          %s541 = smul.addr %s540, 3
          %s542 = scalar_lea.vmem [#allocation6], %s541
          %544 = vsyncadd %s539, 0
          %s545 = smul.addr %s45, 3
          %s546 = scalar_lea.hbm %s3, %s545
          %s548 = sshll.u32 %s546, 4
          %s549 = int_to_ptr.hbm [resolvable:$true] %s548
          %s550 = sshll.u32 %s542, 4
          %s551 = int_to_ptr.vmem [resolvable:$true] %s550
          %553 = dma.hbm_to_vmem [thread:$0]  %s549, 48, %s551, %s539
        $region40: #{transformer_classifier_forward.1} parent=31 // pred_fallthru
          _
        // Predicated region
        $region41: #{transformer_classifier_forward.1} parent=31 // pred_check
          %p554 = pneg %p159
        $region42: #{transformer_classifier_forward.1} parent=31 // pred_check_branch
          %556 = sbr.rel (%p554) target = $region44
        $region43: #{transformer_classifier_forward.1} parent=31 // pred_region
          %s557 = sand.u32 %s45, 1
          %s558 = scalar_lea.sflag [#allocation7], %s557
          %s559 = sand.u32 %s149, 1
          %s560 = smul.addr %s559, 64
          %s561 = scalar_lea.vmem [#allocation8], %s560
          %563 = vsyncadd %s558, 0
          %s564 = smul.addr %s45, 16
          %s565 = smul.addr %s564, 4
          %s566 = scalar_lea.hbm %s4, %s565
          %s567 = sshll.u32 %s566, 4
          %s568 = int_to_ptr.hbm [resolvable:$true] %s567
          %s569 = sshll.u32 %s561, 4
          %s570 = int_to_ptr.vmem [resolvable:$true] %s569
          %575 = dma.hbm_to_vmem [thread:$0]  %s568, 1024, %s570, %s558, 64, 64, 4
        $region44: #{transformer_classifier_forward.1} parent=31 // pred_fallthru
          _
        // Predicated region
        $region45: #{transformer_classifier_forward.1} parent=31 // pred_check
          %p576 = pneg %p185
        $region46: #{transformer_classifier_forward.1} parent=31 // pred_check_branch
          %578 = sbr.rel (%p576) target = $region48
        $region47: #{transformer_classifier_forward.1} parent=31 // pred_region
          %s579 = sand.u32 %s45, 1
          %s580 = scalar_lea.sflag [#allocation10], %s579
          %s581 = sand.u32 %s175, 1
          %s582 = scalar_lea.vmem [#allocation9], %s581
          %584 = vsyncadd %s580, 0
          %s585 = scalar_lea.hbm %s5, %s45
          %s587 = sshll.u32 %s585, 4
          %s588 = int_to_ptr.hbm [resolvable:$true] %s587
          %s589 = sshll.u32 %s582, 4
          %s590 = int_to_ptr.vmem [resolvable:$true] %s589
          %592 = dma.hbm_to_vmem [thread:$0]  %s588, 16, %s590, %s580
        $region48: #{transformer_classifier_forward.1} parent=31 // pred_fallthru
          _
        // Predicated region
        $region49: #{transformer_classifier_forward.1} parent=31 // pred_check
          %p593 = pneg %p211
        $region50: #{transformer_classifier_forward.1} parent=31 // pred_check_branch
          %595 = sbr.rel (%p593) target = $region52
        $region51: #{transformer_classifier_forward.1} parent=31 // pred_region
          %s596 = sand.u32 %s45, 1
          %s597 = scalar_lea.sflag [#allocation10], %s596
          %s598 = sand.u32 %s201, 1
          %s599 = scalar_lea.vmem [#allocation11], %s598
          %601 = vsyncadd %s597, 0
          %s602 = scalar_lea.hbm %s6, %s45
          %s604 = sshll.u32 %s602, 4
          %s605 = int_to_ptr.hbm [resolvable:$true] %s604
          %s606 = sshll.u32 %s599, 4
          %s607 = int_to_ptr.vmem [resolvable:$true] %s606
          %609 = dma.hbm_to_vmem [thread:$0]  %s605, 16, %s607, %s597
        $region52: #{transformer_classifier_forward.1} parent=31 // pred_fallthru
          _
        // Predicated region
        $region53: #{transformer_classifier_forward.1} parent=31 // pred_check
          %p610 = pneg %p237
        $region54: #{transformer_classifier_forward.1} parent=31 // pred_check_branch
          %612 = sbr.rel (%p610) target = $region56
        $region55: #{transformer_classifier_forward.1} parent=31 // pred_region
          %s613 = sand.u32 %s45, 1
          %s614 = scalar_lea.sflag [#allocation13], %s613
          %s615 = sand.u32 %s227, 1
          %s616 = scalar_lea.vmem [#allocation12], %s615
          %618 = vsyncadd %s614, 0
          %s619 = scalar_lea.hbm %s7, %s45
          %s621 = sshll.u32 %s619, 4
          %s622 = int_to_ptr.hbm [resolvable:$true] %s621
          %s623 = sshll.u32 %s616, 4
          %s624 = int_to_ptr.vmem [resolvable:$true] %s623
          %626 = dma.hbm_to_vmem [thread:$0]  %s622, 16, %s624, %s614
        $region56: #{transformer_classifier_forward.1} parent=31 // pred_fallthru
          _
        // Predicated region
        $region57: #{transformer_classifier_forward.1} parent=31 // pred_check
          %p627 = pneg %p263
        $region58: #{transformer_classifier_forward.1} parent=31 // pred_check_branch
          %629 = sbr.rel (%p627) target = $region60
        $region59: #{transformer_classifier_forward.1} parent=31 // pred_region
          %s630 = sand.u32 %s45, 1
          %s631 = scalar_lea.sflag [#allocation13], %s630
          %s632 = sand.u32 %s253, 1
          %s633 = smul.addr %s632, 1024
          %s634 = scalar_lea.vmem [#allocation14], %s633
          %636 = vsyncadd %s631, 0
          %s637 = smul.addr %s45, 256
          %s638 = smul.addr %s637, 4
          %s639 = scalar_lea.hbm %s8, %s638
          %s640 = sshll.u32 %s639, 4
          %s641 = int_to_ptr.hbm [resolvable:$true] %s640
          %s642 = sshll.u32 %s634, 4
          %s643 = int_to_ptr.vmem [resolvable:$true] %s642
          %648 = dma.hbm_to_vmem [thread:$0]  %s641, 16384, %s643, %s631, 1024, 1024, 64
        $region60: #{transformer_classifier_forward.1} parent=31 // pred_fallthru
          _
        // Predicated region
        $region61: #{transformer_classifier_forward.1} parent=31 // pred_check
          %p649 = pneg %p289
        $region62: #{transformer_classifier_forward.1} parent=31 // pred_check_branch
          %651 = sbr.rel (%p649) target = $region64
        $region63: #{transformer_classifier_forward.1} parent=31 // pred_region
          %s652 = sand.u32 %s45, 1
          %s653 = scalar_lea.sflag [#allocation16], %s652
          %s654 = sand.u32 %s279, 1
          %s655 = smul.addr %s654, 16
          %s656 = scalar_lea.vmem [#allocation15], %s655
          %658 = vsyncadd %s653, 0
          %s659 = smul.addr %s45, 16
          %s660 = scalar_lea.hbm %s9, %s659
          %s662 = sshll.u32 %s660, 4
          %s663 = int_to_ptr.hbm [resolvable:$true] %s662
          %s664 = sshll.u32 %s656, 4
          %s665 = int_to_ptr.vmem [resolvable:$true] %s664
          %667 = dma.hbm_to_vmem [thread:$0]  %s663, 256, %s665, %s653
        $region64: #{transformer_classifier_forward.1} parent=31 // pred_fallthru
          _
        // Predicated region
        $region65: #{transformer_classifier_forward.1} parent=31 // pred_check
          %p668 = pneg %p315
        $region66: #{transformer_classifier_forward.1} parent=31 // pred_check_branch
          %670 = sbr.rel (%p668) target = $region68
        $region67: #{transformer_classifier_forward.1} parent=31 // pred_region
          %s671 = sand.u32 %s45, 1
          %s672 = scalar_lea.sflag [#allocation16], %s671
          %s673 = sand.u32 %s305, 1
          %s674 = smul.addr %s673, 1024
          %s675 = scalar_lea.vmem [#allocation17], %s674
          %677 = vsyncadd %s672, 0
          %s678 = smul.addr %s45, 256
          %s679 = smul.addr %s678, 4
          %s680 = scalar_lea.hbm %s10, %s679
          %s681 = sshll.u32 %s680, 4
          %s682 = int_to_ptr.hbm [resolvable:$true] %s681
          %s683 = sshll.u32 %s675, 4
          %s684 = int_to_ptr.vmem [resolvable:$true] %s683
          %689 = dma.hbm_to_vmem [thread:$0]  %s682, 16384, %s684, %s672, 64, 64, 4
        $region68: #{transformer_classifier_forward.1} parent=31 // pred_fallthru
          _
        // Predicated region
        $region69: #{transformer_classifier_forward.1} parent=31 // pred_check
          %p690 = pneg %p341
        $region70: #{transformer_classifier_forward.1} parent=31 // pred_check_branch
          %692 = sbr.rel (%p690) target = $region72
        $region71: #{transformer_classifier_forward.1} parent=31 // pred_region
          %s693 = sand.u32 %s45, 1
          %s694 = scalar_lea.sflag [#allocation19], %s693
          %s695 = sand.u32 %s331, 1
          %s696 = scalar_lea.vmem [#allocation18], %s695
          %698 = vsyncadd %s694, 0
          %s699 = scalar_lea.hbm %s11, %s45
          %s701 = sshll.u32 %s699, 4
          %s702 = int_to_ptr.hbm [resolvable:$true] %s701
          %s703 = sshll.u32 %s696, 4
          %s704 = int_to_ptr.vmem [resolvable:$true] %s703
          %706 = dma.hbm_to_vmem [thread:$0]  %s702, 16, %s704, %s694
        $region72: #{transformer_classifier_forward.1} parent=31 // pred_fallthru
          _
        // Predicated region
        $region73: #{transformer_classifier_forward.1} parent=31 // pred_check
          %p707 = pneg %p367
        $region74: #{transformer_classifier_forward.1} parent=31 // pred_check_branch
          %709 = sbr.rel (%p707) target = $region76
        $region75: #{transformer_classifier_forward.1} parent=31 // pred_region
          %s710 = sand.u32 %s45, 1
          %s711 = scalar_lea.sflag [#allocation19], %s710
          %s712 = sand.u32 %s357, 1
          %s713 = scalar_lea.vmem [#allocation20], %s712
          %715 = vsyncadd %s711, 0
          %s716 = scalar_lea.hbm %s12, %s45
          %s718 = sshll.u32 %s716, 4
          %s719 = int_to_ptr.hbm [resolvable:$true] %s718
          %s720 = sshll.u32 %s713, 4
          %s721 = int_to_ptr.vmem [resolvable:$true] %s720
          %723 = dma.hbm_to_vmem [thread:$0]  %s719, 16, %s721, %s711
        $region76: #{transformer_classifier_forward.1} parent=31 // pred_fallthru
          _
        // Predicated region
        $region77: #{transformer_classifier_forward.1} parent=31 // pred_check
          %p724 = pneg %p393
        $region78: #{transformer_classifier_forward.1} parent=31 // pred_check_branch
          %726 = sbr.rel (%p724) target = $region80
        $region79: #{transformer_classifier_forward.1} parent=31 // pred_region
          %s727 = sand.u32 %s45, 1
          %s728 = scalar_lea.sflag [#allocation22], %s727
          %s729 = sand.u32 %s383, 1
          %s730 = scalar_lea.vmem [#allocation21], %s729
          %732 = vsyncadd %s728, 0
          %s733 = scalar_lea.hbm %s13, %s45
          %s735 = sshll.u32 %s733, 4
          %s736 = int_to_ptr.hbm [resolvable:$true] %s735
          %s737 = sshll.u32 %s730, 4
          %s738 = int_to_ptr.vmem [resolvable:$true] %s737
          %740 = dma.hbm_to_vmem [thread:$0]  %s736, 16, %s738, %s728
        $region80: #{transformer_classifier_forward.1} parent=31 // pred_fallthru
          _
      $region32: #{transformer_classifier_forward.1} parent=5 // pred_fallthru
        _
      %p741 = scmp.le.s32.totalorder 1, %s45
      %p742 = scmp.lt.s32.totalorder %s45, 7
      %p743 = pnand %p741, %p742
      %p744 = pneg %p743
      // Predicated region
      $region81: #{transformer_classifier_forward.1} parent=5 // pred_check
        _
      $region82: #{transformer_classifier_forward.1} parent=5 // pred_check_branch
        %746 = sbr.rel (%p743) target = $region84
      $region83: #{transformer_classifier_forward.1} parent=5 // pred_region
        %s747 = ssub.s32 %s45, 1
        %s748 = sand.u32 %s100, 1
        %s749 = scalar_lea.sflag [#allocation4], %s748
        %s750 = sand.u32 %s100, 1
        %s751 = smul.addr %s750, 192
        %s752 = scalar_lea.vmem [#allocation3], %s751
        // Predicated region
        $region85: #{transformer_classifier_forward.1} parent=83 // pred_check
          %p753 = pneg %p113
        $region86: #{transformer_classifier_forward.1} parent=83 // pred_check_branch
          %755 = sbr.rel (%p753) target = $region88
        $region87: #{transformer_classifier_forward.1} parent=83 // pred_region
          %757 = dma.done %s749, 3072
        $region88: #{transformer_classifier_forward.1} parent=83 // pred_fallthru
          _
        %s758 = sand.u32 %s50, 1
        %s759 = scalar_lea.sflag [#allocation7], %s758
        %s760 = sand.u32 %s126, 1
        %s761 = smul.addr %s760, 3
        %s762 = scalar_lea.vmem [#allocation6], %s761
        // Predicated region
        $region89: #{transformer_classifier_forward.1} parent=83 // pred_check
          %p763 = pneg %p139
        $region90: #{transformer_classifier_forward.1} parent=83 // pred_check_branch
          %765 = sbr.rel (%p763) target = $region92
        $region91: #{transformer_classifier_forward.1} parent=83 // pred_region
          %767 = dma.done %s759, 48
        $region92: #{transformer_classifier_forward.1} parent=83 // pred_fallthru
          _
        %s768 = sand.u32 %s50, 1
        %s769 = scalar_lea.sflag [#allocation7], %s768
        %s770 = sand.u32 %s152, 1
        %s771 = smul.addr %s770, 64
        %s772 = scalar_lea.vmem [#allocation8], %s771
        // Predicated region
        $region93: #{transformer_classifier_forward.1} parent=83 // pred_check
          %p773 = pneg %p165
        $region94: #{transformer_classifier_forward.1} parent=83 // pred_check_branch
          %775 = sbr.rel (%p773) target = $region96
        $region95: #{transformer_classifier_forward.1} parent=83 // pred_region
          %777 = dma.done %s769, 1024
        $region96: #{transformer_classifier_forward.1} parent=83 // pred_fallthru
          _
        %s778 = sand.u32 %s50, 1
        %s779 = scalar_lea.sflag [#allocation10], %s778
        %s780 = sand.u32 %s178, 1
        %s781 = scalar_lea.vmem [#allocation9], %s780
        // Predicated region
        $region97: #{transformer_classifier_forward.1} parent=83 // pred_check
          %p782 = pneg %p191
        $region98: #{transformer_classifier_forward.1} parent=83 // pred_check_branch
          %784 = sbr.rel (%p782) target = $region100
        $region99: #{transformer_classifier_forward.1} parent=83 // pred_region
          %786 = dma.done %s779, 16
        $region100: #{transformer_classifier_forward.1} parent=83 // pred_fallthru
          _
        %s787 = sand.u32 %s50, 1
        %s788 = scalar_lea.sflag [#allocation10], %s787
        %s789 = sand.u32 %s204, 1
        %s790 = scalar_lea.vmem [#allocation11], %s789
        // Predicated region
        $region101: #{transformer_classifier_forward.1} parent=83 // pred_check
          %p791 = pneg %p217
        $region102: #{transformer_classifier_forward.1} parent=83 // pred_check_branch
          %793 = sbr.rel (%p791) target = $region104
        $region103: #{transformer_classifier_forward.1} parent=83 // pred_region
          %795 = dma.done %s788, 16
        $region104: #{transformer_classifier_forward.1} parent=83 // pred_fallthru
          _
        %s796 = sand.u32 %s50, 1
        %s797 = scalar_lea.sflag [#allocation13], %s796
        %s798 = sand.u32 %s230, 1
        %s799 = scalar_lea.vmem [#allocation12], %s798
        // Predicated region
        $region105: #{transformer_classifier_forward.1} parent=83 // pred_check
          %p800 = pneg %p243
        $region106: #{transformer_classifier_forward.1} parent=83 // pred_check_branch
          %802 = sbr.rel (%p800) target = $region108
        $region107: #{transformer_classifier_forward.1} parent=83 // pred_region
          %804 = dma.done %s797, 16
        $region108: #{transformer_classifier_forward.1} parent=83 // pred_fallthru
          _
        %s805 = sand.u32 %s50, 1
        %s806 = scalar_lea.sflag [#allocation13], %s805
        %s807 = sand.u32 %s256, 1
        %s808 = smul.addr %s807, 1024
        %s809 = scalar_lea.vmem [#allocation14], %s808
        // Predicated region
        $region109: #{transformer_classifier_forward.1} parent=83 // pred_check
          %p810 = pneg %p269
        $region110: #{transformer_classifier_forward.1} parent=83 // pred_check_branch
          %812 = sbr.rel (%p810) target = $region112
        $region111: #{transformer_classifier_forward.1} parent=83 // pred_region
          %814 = dma.done %s806, 16384
        $region112: #{transformer_classifier_forward.1} parent=83 // pred_fallthru
          _
        %s815 = sand.u32 %s50, 1
        %s816 = scalar_lea.sflag [#allocation16], %s815
        %s817 = sand.u32 %s282, 1
        %s818 = smul.addr %s817, 16
        %s819 = scalar_lea.vmem [#allocation15], %s818
        // Predicated region
        $region113: #{transformer_classifier_forward.1} parent=83 // pred_check
          %p820 = pneg %p295
        $region114: #{transformer_classifier_forward.1} parent=83 // pred_check_branch
          %822 = sbr.rel (%p820) target = $region116
        $region115: #{transformer_classifier_forward.1} parent=83 // pred_region
          %824 = dma.done %s816, 256
        $region116: #{transformer_classifier_forward.1} parent=83 // pred_fallthru
          _
        %s825 = sand.u32 %s50, 1
        %s826 = scalar_lea.sflag [#allocation16], %s825
        %s827 = sand.u32 %s308, 1
        %s828 = smul.addr %s827, 1024
        %s829 = scalar_lea.vmem [#allocation17], %s828
        // Predicated region
        $region117: #{transformer_classifier_forward.1} parent=83 // pred_check
          %p830 = pneg %p321
        $region118: #{transformer_classifier_forward.1} parent=83 // pred_check_branch
          %832 = sbr.rel (%p830) target = $region120
        $region119: #{transformer_classifier_forward.1} parent=83 // pred_region
          %834 = dma.done %s826, 16384
        $region120: #{transformer_classifier_forward.1} parent=83 // pred_fallthru
          _
        %s835 = sand.u32 %s50, 1
        %s836 = scalar_lea.sflag [#allocation19], %s835
        %s837 = sand.u32 %s334, 1
        %s838 = scalar_lea.vmem [#allocation18], %s837
        // Predicated region
        $region121: #{transformer_classifier_forward.1} parent=83 // pred_check
          %p839 = pneg %p347
        $region122: #{transformer_classifier_forward.1} parent=83 // pred_check_branch
          %841 = sbr.rel (%p839) target = $region124
        $region123: #{transformer_classifier_forward.1} parent=83 // pred_region
          %843 = dma.done %s836, 16
        $region124: #{transformer_classifier_forward.1} parent=83 // pred_fallthru
          _
        %s844 = sand.u32 %s50, 1
        %s845 = scalar_lea.sflag [#allocation19], %s844
        %s846 = sand.u32 %s360, 1
        %s847 = scalar_lea.vmem [#allocation20], %s846
        // Predicated region
        $region125: #{transformer_classifier_forward.1} parent=83 // pred_check
          %p848 = pneg %p373
        $region126: #{transformer_classifier_forward.1} parent=83 // pred_check_branch
          %850 = sbr.rel (%p848) target = $region128
        $region127: #{transformer_classifier_forward.1} parent=83 // pred_region
          %852 = dma.done %s845, 16
        $region128: #{transformer_classifier_forward.1} parent=83 // pred_fallthru
          _
        %s853 = sand.u32 %s50, 1
        %s854 = scalar_lea.sflag [#allocation22], %s853
        %s855 = sand.u32 %s386, 1
        %s856 = scalar_lea.vmem [#allocation21], %s855
        // Predicated region
        $region129: #{transformer_classifier_forward.1} parent=83 // pred_check
          %p857 = pneg %p399
        $region130: #{transformer_classifier_forward.1} parent=83 // pred_check_branch
          %859 = sbr.rel (%p857) target = $region132
        $region131: #{transformer_classifier_forward.1} parent=83 // pred_region
          %861 = dma.done %s854, 16
        $region132: #{transformer_classifier_forward.1} parent=83 // pred_fallthru
          _
        // Predicated region
        $region133: #{transformer_classifier_forward.1} parent=83 // pred_check
          %p862 = pneg %p420
        $region134: #{transformer_classifier_forward.1} parent=83 // pred_check_branch
          %864 = sbr.rel (%p862) target = $region136
        $region135: #{transformer_classifier_forward.1} parent=83 // pred_region
          %866 = dma.done [#allocation22], 1024
        $region136: #{transformer_classifier_forward.1} parent=83 // pred_fallthru
          _
        // Predicated region
        $region137: #{transformer_classifier_forward.1} parent=83 // pred_check
          %p867 = pneg %p441
        $region138: #{transformer_classifier_forward.1} parent=83 // pred_check_branch
          %869 = sbr.rel (%p867) target = $region140
        $region139: #{transformer_classifier_forward.1} parent=83 // pred_region
          %871 = dma.done [#allocation25], 16
        $region140: #{transformer_classifier_forward.1} parent=83 // pred_fallthru
          _
        %p872 = pneg %p66
        %p873 = pneg %p63
        %p874 = pneg %p87
        %p875 = pneg %p84
        %s876 = sand.u32 %s100, 1
        %s877 = scalar_lea.sflag [#allocation4], %s876
        %s878 = sand.u32 %s100, 1
        %s879 = smul.addr %s878, 192
        %s880 = scalar_lea.vmem [#allocation3], %s879
        %p881 = pneg %p113
        %p882 = pneg %p110
        %s883 = sand.u32 %s50, 1
        %s884 = scalar_lea.sflag [#allocation7], %s883
        %s885 = sand.u32 %s126, 1
        %s886 = smul.addr %s885, 3
        %s887 = scalar_lea.vmem [#allocation6], %s886
        %p888 = pneg %p139
        %p889 = pneg %p136
        %s890 = sand.u32 %s50, 1
        %s891 = scalar_lea.sflag [#allocation7], %s890
        %s892 = sand.u32 %s152, 1
        %s893 = smul.addr %s892, 64
        %s894 = scalar_lea.vmem [#allocation8], %s893
        %p895 = pneg %p165
        %p896 = pneg %p162
        %s897 = sand.u32 %s50, 1
        %s898 = scalar_lea.sflag [#allocation10], %s897
        %s899 = sand.u32 %s178, 1
        %s900 = scalar_lea.vmem [#allocation9], %s899
        %p901 = pneg %p191
        %p902 = pneg %p188
        %s903 = sand.u32 %s50, 1
        %s904 = scalar_lea.sflag [#allocation10], %s903
        %s905 = sand.u32 %s204, 1
        %s906 = scalar_lea.vmem [#allocation11], %s905
        %p907 = pneg %p217
        %p908 = pneg %p214
        %s909 = sand.u32 %s50, 1
        %s910 = scalar_lea.sflag [#allocation13], %s909
        %s911 = sand.u32 %s230, 1
        %s912 = scalar_lea.vmem [#allocation12], %s911
        %p913 = pneg %p243
        %p914 = pneg %p240
        %s915 = sand.u32 %s50, 1
        %s916 = scalar_lea.sflag [#allocation13], %s915
        %s917 = sand.u32 %s256, 1
        %s918 = smul.addr %s917, 1024
        %s919 = scalar_lea.vmem [#allocation14], %s918
        %p920 = pneg %p269
        %p921 = pneg %p266
        %s922 = sand.u32 %s50, 1
        %s923 = scalar_lea.sflag [#allocation16], %s922
        %s924 = sand.u32 %s282, 1
        %s925 = smul.addr %s924, 16
        %s926 = scalar_lea.vmem [#allocation15], %s925
        %p927 = pneg %p295
        %p928 = pneg %p292
        %s929 = sand.u32 %s50, 1
        %s930 = scalar_lea.sflag [#allocation16], %s929
        %s931 = sand.u32 %s308, 1
        %s932 = smul.addr %s931, 1024
        %s933 = scalar_lea.vmem [#allocation17], %s932
        %p934 = pneg %p321
        %p935 = pneg %p318
        %s936 = sand.u32 %s50, 1
        %s937 = scalar_lea.sflag [#allocation19], %s936
        %s938 = sand.u32 %s334, 1
        %s939 = scalar_lea.vmem [#allocation18], %s938
        %p940 = pneg %p347
        %p941 = pneg %p344
        %s942 = sand.u32 %s50, 1
        %s943 = scalar_lea.sflag [#allocation19], %s942
        %s944 = sand.u32 %s360, 1
        %s945 = scalar_lea.vmem [#allocation20], %s944
        %p946 = pneg %p373
        %p947 = pneg %p370
        %s948 = sand.u32 %s50, 1
        %s949 = scalar_lea.sflag [#allocation22], %s948
        %s950 = sand.u32 %s386, 1
        %s951 = scalar_lea.vmem [#allocation21], %s950
        %p952 = pneg %p399
        %p953 = pneg %p396
        %p954 = pneg %p420
        %p955 = pneg %p417
        %p956 = pneg %p441
        %p957 = pneg %p438
        %p958 = pneg %p462
        %p959 = pneg %p459
        %p961 = scmp.eq.s32.totalorder %s50, 0
        // Predicated region
        $region141: #{transformer_classifier_forward.1} parent=83 // pred_check
          %p962 = pneg %p961
        $region142: #{transformer_classifier_forward.1} parent=83 // pred_check_branch
          %964 = sbr.rel (%p962) target = $region144
        $region143: #{transformer_classifier_forward.1} parent=83 // pred_region
          %v965 = vld [vmem:[%s0] sm:$0xff]
          %v966 = vld [vmem:[%s0 + $0x8] sm:$0xff]
          %v967 = vmul.f32 %v965, 11.313708
          %v968 = vmul.f32 %v966, 11.313708
          %v969 = vld [vmem:[%s1] sm:$0xff]
          %v970 = vadd.f32 %v967, %v969
          %v971 = vadd.f32 %v968, %v969
          %972 = vst [vmem:[#allocation2] sm:$0xff] %v970
          %973 = vst [vmem:[#allocation2 + $0x8] sm:$0xff] %v971
        $region144: #{transformer_classifier_forward.1} parent=83 // pred_fallthru
          _
        %v974 = vld [vmem:[#allocation2] sm:$0xff]
        %v975 = vld [vmem:[#allocation2 + $0x8] sm:$0xff]
        %v976 = vpack.c.bf16 %v975, %v974
        %v977 = vld [vmem:[%s752] sm:$0xff]
        %v978 = vld [vmem:[%s752 + $0x8] sm:$0xf]
        %v979 = vld [vmem:[%s752 + $0xc] sm:$0xff]
        %v980 = vld [vmem:[%s752 + $0x14] sm:$0xf]
        %v981 = vld [vmem:[%s752 + $0x18] sm:$0xff]
        %v982 = vld [vmem:[%s752 + $0x20] sm:$0xf]
        %v983 = vld [vmem:[%s752 + $0x24] sm:$0xff]
        %v984 = vld [vmem:[%s752 + $0x2c] sm:$0xf]
        %v985 = vld [vmem:[%s752 + $0x30] sm:$0xff]
        %v986 = vld [vmem:[%s752 + $0x38] sm:$0xf]
        %v987 = vld [vmem:[%s752 + $0x3c] sm:$0xff]
        %v988 = vld [vmem:[%s752 + $0x44] sm:$0xf]
        %v989 = vld [vmem:[%s752 + $0x48] sm:$0xff]
        %v990 = vld [vmem:[%s752 + $0x50] sm:$0xf]
        %v991 = vld [vmem:[%s752 + $0x54] sm:$0xff]
        %v992 = vld [vmem:[%s752 + $0x5c] sm:$0xf]
        %v993 = vld [vmem:[%s752 + $0x60] sm:$0xff]
        %v994 = vld [vmem:[%s752 + $0x68] sm:$0xf]
        %v995 = vld [vmem:[%s752 + $0x6c] sm:$0xff]
        %v996 = vld [vmem:[%s752 + $0x74] sm:$0xf]
        %v997 = vld [vmem:[%s752 + $0x78] sm:$0xff]
        %v998 = vld [vmem:[%s752 + $0x80] sm:$0xf]
        %v999 = vld [vmem:[%s752 + $0x84] sm:$0xff]
        %v1000 = vld [vmem:[%s752 + $0x8c] sm:$0xf]
        %v1001 = vld [vmem:[%s752 + $0x90] sm:$0xff]
        %v1002 = vld [vmem:[%s752 + $0x98] sm:$0xf]
        %v1003 = vld [vmem:[%s752 + $0x9c] sm:$0xff]
        %v1004 = vld [vmem:[%s752 + $0xa4] sm:$0xf]
        %v1005 = vld [vmem:[%s752 + $0xa8] sm:$0xff]
        %v1006 = vld [vmem:[%s752 + $0xb0] sm:$0xf]
        %v1007 = vld [vmem:[%s752 + $0xb4] sm:$0xff]
        %v1008 = vld [vmem:[%s752 + $0xbc] sm:$0xf]
        %v1009 = vld [vmem:[%s762] sm:$0x7]
        %v1011 = vperm.slane %v1009, 0
        %v1012 = vperm.slane %v1009, 1
        %v1013 = vperm.slane %v1009, 2
        %v1049 = vunpack.c.l.b16 %v977
        %v1050 = vunpack.c.h.b16 %v977
        %v1051 = vunpack.c.l.b16 %v978
        %v1052 = vunpack.c.l.b16 %v979
        %v1053 = vunpack.c.h.b16 %v979
        %v1054 = vunpack.c.l.b16 %v980
        %v1055 = vunpack.c.l.b16 %v981
        %v1056 = vunpack.c.h.b16 %v981
        %v1057 = vunpack.c.l.b16 %v982
        %v1058 = vunpack.c.l.b16 %v983
        %v1059 = vunpack.c.h.b16 %v983
        %v1060 = vunpack.c.l.b16 %v984
        %v1061 = vunpack.c.l.b16 %v985
        %v1062 = vunpack.c.h.b16 %v985
        %v1063 = vunpack.c.l.b16 %v986
        %v1064 = vunpack.c.l.b16 %v987
        %v1065 = vunpack.c.h.b16 %v987
        %v1066 = vunpack.c.l.b16 %v988
        %v1067 = vunpack.c.l.b16 %v989
        %v1068 = vunpack.c.h.b16 %v989
        %v1069 = vunpack.c.l.b16 %v990
        %v1070 = vunpack.c.l.b16 %v991
        %v1071 = vunpack.c.h.b16 %v991
        %v1072 = vunpack.c.l.b16 %v992
        %v1073 = vunpack.c.l.b16 %v993
        %v1074 = vunpack.c.h.b16 %v993
        %v1075 = vunpack.c.l.b16 %v994
        %v1076 = vunpack.c.l.b16 %v995
        %v1077 = vunpack.c.h.b16 %v995
        %v1078 = vunpack.c.l.b16 %v996
        %v1079 = vunpack.c.l.b16 %v997
        %v1080 = vunpack.c.h.b16 %v997
        %v1081 = vunpack.c.l.b16 %v998
        %v1082 = vunpack.c.l.b16 %v999
        %v1083 = vunpack.c.h.b16 %v999
        %v1084 = vunpack.c.l.b16 %v1000
        %v1085 = vunpack.c.l.b16 %v1001
        %v1086 = vunpack.c.h.b16 %v1001
        %v1087 = vunpack.c.l.b16 %v1002
        %v1088 = vunpack.c.l.b16 %v1003
        %v1089 = vunpack.c.h.b16 %v1003
        %v1090 = vunpack.c.l.b16 %v1004
        %v1091 = vunpack.c.l.b16 %v1005
        %v1092 = vunpack.c.h.b16 %v1005
        %v1093 = vunpack.c.l.b16 %v1006
        %v1094 = vunpack.c.l.b16 %v1007
        %v1095 = vunpack.c.h.b16 %v1007
        %v1096 = vunpack.c.l.b16 %v1008
        %v1097 = vpack.c.b16 %v1052, %v1049
        %v1098 = vpack.c.b16 %v1053, %v1050
        %v1099 = vpack.c.b16 %v1054, %v1051
        %v1100 = vpack.c.b16 %v1058, %v1055
        %v1101 = vpack.c.b16 %v1059, %v1056
        %v1102 = vpack.c.b16 %v1060, %v1057
        %v1103 = vpack.c.b16 %v1064, %v1061
        %v1104 = vpack.c.b16 %v1065, %v1062
        %v1105 = vpack.c.b16 %v1066, %v1063
        %v1106 = vpack.c.b16 %v1070, %v1067
        %v1107 = vpack.c.b16 %v1071, %v1068
        %v1108 = vpack.c.b16 %v1072, %v1069
        %v1109 = vpack.c.b16 %v1076, %v1073
        %v1110 = vpack.c.b16 %v1077, %v1074
        %v1111 = vpack.c.b16 %v1078, %v1075
        %v1112 = vpack.c.b16 %v1082, %v1079
        %v1113 = vpack.c.b16 %v1083, %v1080
        %v1114 = vpack.c.b16 %v1084, %v1081
        %v1115 = vpack.c.b16 %v1088, %v1085
        %v1116 = vpack.c.b16 %v1089, %v1086
        %v1117 = vpack.c.b16 %v1090, %v1087
        %v1118 = vpack.c.b16 %v1094, %v1091
        %v1119 = vpack.c.b16 %v1095, %v1092
        %v1120 = vpack.c.b16 %v1096, %v1093
        %1145 = vmatpush.bf16.msra.mxu0 %v1118
        %1146 = vmatpush.bf16.msra.mxu0 %v1115
        %1147 = vmatpush.bf16.msra.mxu0 %v1112
        %1148 = vmatpush.bf16.msra.mxu0 %v1109
        %1149 = vmatpush.bf16.msra.mxu0 %v1106
        %1150 = vmatpush.bf16.msra.mxu0 %v1103
        %1151 = vmatpush.bf16.msra.mxu0 %v1100
        %1152 = vmatpush.bf16.msra.mxu0 %v1097
        %1153 = vmatmul.bf16.gmra.mxu0 %v976
        %v1154 = vpop.f32.mrf.mxu0
        %v1155 = vadd.f32 %v1011, %v1154
        %v1156 = vpop.f32.mrf.mxu0
        %v1157 = vadd.f32 %v1011, %v1156
        %1158 = vdwg.mxu0
        %1159 = vmatpush.bf16.msra.mxu0 %v1119
        %1160 = vmatpush.bf16.msra.mxu0 %v1116
        %1161 = vmatpush.bf16.msra.mxu0 %v1113
        %1162 = vmatpush.bf16.msra.mxu0 %v1110
        %1163 = vmatpush.bf16.msra.mxu0 %v1107
        %1164 = vmatpush.bf16.msra.mxu0 %v1104
        %1165 = vmatpush.bf16.msra.mxu0 %v1101
        %1166 = vmatpush.bf16.msra.mxu0 %v1098
        %1167 = vmatmul.bf16.gmra.mxu0 %v976
        %v1168 = vpop.f32.mrf.mxu0
        %v1169 = vadd.f32 %v1012, %v1168
        %v1170 = vpop.f32.mrf.mxu0
        %v1171 = vadd.f32 %v1012, %v1170
        %1172 = vdwg.mxu0
        %1173 = vmatpush.bf16.msra.mxu0 %v1120
        %1174 = vmatpush.bf16.msra.mxu0 %v1117
        %1175 = vmatpush.bf16.msra.mxu0 %v1114
        %1176 = vmatpush.bf16.msra.mxu0 %v1111
        %1177 = vmatpush.bf16.msra.mxu0 %v1108
        %1178 = vmatpush.bf16.msra.mxu0 %v1105
        %1179 = vmatpush.bf16.msra.mxu0 %v1102
        %1180 = vmatpush.bf16.msra.mxu0 %v1099
        %1181 = vmatmul.bf16.gmra.mxu0 %v976
        %v1182 = vpop.f32.mrf.mxu0
        %v1183 = vadd.f32 %v1013, %v1182
        %v1184 = vpop.f32.mrf.mxu0
        %v1185 = vadd.f32 %v1013, %v1184
        %1186 = vdwg.mxu0
        %v1187 = vld [vmem:[%s772] sm:$0xf]
        %v1188 = vld [vmem:[%s772 + $0x4] sm:$0xf]
        %v1189 = vld [vmem:[%s772 + $0x8] sm:$0xf]
        %v1190 = vld [vmem:[%s772 + $0xc] sm:$0xf]
        %v1191 = vld [vmem:[%s772 + $0x10] sm:$0xf]
        %v1192 = vld [vmem:[%s772 + $0x14] sm:$0xf]
        %v1193 = vld [vmem:[%s772 + $0x18] sm:$0xf]
        %v1194 = vld [vmem:[%s772 + $0x1c] sm:$0xf]
        %v1195 = vld [vmem:[%s772 + $0x20] sm:$0xf]
        %v1196 = vld [vmem:[%s772 + $0x24] sm:$0xf]
        %v1197 = vld [vmem:[%s772 + $0x28] sm:$0xf]
        %v1198 = vld [vmem:[%s772 + $0x2c] sm:$0xf]
        %v1199 = vld [vmem:[%s772 + $0x30] sm:$0xf]
        %v1200 = vld [vmem:[%s772 + $0x34] sm:$0xf]
        %v1201 = vld [vmem:[%s772 + $0x38] sm:$0xf]
        %v1202 = vld [vmem:[%s772 + $0x3c] sm:$0xf]
        %vm1203 = vcmask 130048
        %v1205 = vsel %vm1203, %v1155, 0
        %v1208 = vsel %vm1203, %v1169, 0
        %1210 = vmatpush.xpose.msra.mxu0 0.0
        %1211 = vmatpush.xpose.msra.mxu0 0.0
        %1212 = vmatpush.xpose.msra.mxu0 0.0
        %1213 = vmatpush.xpose.msra.mxu0 0.0
        %1214 = vmatpush.xpose.msra.mxu0 0.0
        %1215 = vmatpush.xpose.msra.mxu0 0.0
        %1216 = vmatpush.xpose.msra.mxu0 0.0
        %1217 = vmatpush.xpose.msra.mxu0 0.0
        %1218 = vmatpush.xpose.msra.mxu0 0.0
        %1219 = vmatpush.xpose.msra.mxu0 0.0
        %1220 = vmatpush.xpose.msra.mxu0 0.0
        %1221 = vmatpush.xpose.msra.mxu0 0.0
        %1222 = vmatpush.xpose.msra.mxu0 0.0
        %1223 = vmatpush.xpose.msra.mxu0 0.0
        %1224 = vmatpush.xpose.msra.mxu0 0.0
        %1225 = vmatpush.xpose.msra.mxu0 %v1208
        %1226 = vmatmul.f32.gmra.mxu0 %v1205
        %v1227 = vpop.f32.mrf.mxu0
        %v1228 = vadd.f32 0.0, %v1227
        %1229 = vdwg.mxu0
        %v1231 = vsel %vm1203, %v1157, 0
        %v1234 = vsel %vm1203, %v1171, 0
        %1236 = vmatpush.xpose.msra.mxu0 0.0
        %1237 = vmatpush.xpose.msra.mxu0 0.0
        %1238 = vmatpush.xpose.msra.mxu0 0.0
        %1239 = vmatpush.xpose.msra.mxu0 0.0
        %1240 = vmatpush.xpose.msra.mxu0 0.0
        %1241 = vmatpush.xpose.msra.mxu0 0.0
        %1242 = vmatpush.xpose.msra.mxu0 0.0
        %1243 = vmatpush.xpose.msra.mxu0 0.0
        %1244 = vmatpush.xpose.msra.mxu0 0.0
        %1245 = vmatpush.xpose.msra.mxu0 0.0
        %1246 = vmatpush.xpose.msra.mxu0 0.0
        %1247 = vmatpush.xpose.msra.mxu0 0.0
        %1248 = vmatpush.xpose.msra.mxu0 0.0
        %1249 = vmatpush.xpose.msra.mxu0 0.0
        %1250 = vmatpush.xpose.msra.mxu0 0.0
        %1251 = vmatpush.xpose.msra.mxu0 %v1234
        %1252 = vmatmul.f32.gmra.mxu0 %v1231
        %v1253 = vpop.f32.mrf.mxu0
        %v1254 = vadd.f32 0.0, %v1253
        %1255 = vdwg.mxu0
        %v1256 = vmul.f32 %v1228, 0.25
        %v1257 = vmul.f32 %v1254, 0.25
        %vm1258 = vcmask 64512
        %v1259 = vsel %vm1258, %v1256, -inf
        %1260 = vmax.xlane.f32.xlu0 %v1259
        %v1261 = vpop.xlane.xlu0 %1260
        %v1262 = vsel %vm1258, %v1257, -inf
        %1263 = vmax.xlane.f32.xlu0 %v1262
        %v1264 = vpop.xlane.xlu0 %1263
        %v1265 = vsub.f32 %v1256, %v1261
        %v1266 = vsub.f32 %v1257, %v1264
        %v1267 = vmul.f32 %v1265, 1.442695
        %v1268 = vpow.pop %v1267
        %v1269 = vmul.f32 %v1266, 1.442695
        %v1270 = vpow.pop %v1269
        %v1271 = vsel %vm1258, %v1268, 0.0
        %1272 = vadd.xlane.f32.xlu0 %v1271
        %v1273 = vpop.xlane.xlu0 %1272
        %v1274 = vsel %vm1258, %v1270, 0.0
        %1275 = vadd.xlane.f32.xlu0 %v1274
        %v1276 = vpop.xlane.xlu0 %1275
        %v1277 = vrcp.pop %v1273
        %v1278 = vrcp.pop %v1276
        %v1279 = vmul.f32 %v1268, %v1277
        %v1280 = vmul.f32 %v1270, %v1278
        %v1282 = vsel %vm1258, %v1279, 0
        %1284 = vmatpush.msra.mxu0 0.0
        %1285 = vmatpush.msra.mxu0 0.0
        %1286 = vmatpush.msra.mxu0 0.0
        %1287 = vmatpush.msra.mxu0 0.0
        %1288 = vmatpush.msra.mxu0 0.0
        %1289 = vmatpush.msra.mxu0 0.0
        %1290 = vmatpush.msra.mxu0 0.0
        %1291 = vmatpush.msra.mxu0 0.0
        %1292 = vmatpush.msra.mxu0 0.0
        %1293 = vmatpush.msra.mxu0 0.0
        %1294 = vmatpush.msra.mxu0 0.0
        %1295 = vmatpush.msra.mxu0 0.0
        %1296 = vmatpush.msra.mxu0 0.0
        %1297 = vmatpush.msra.mxu0 0.0
        %1298 = vmatpush.msra.mxu0 0.0
        %1299 = vmatpush.msra.mxu0 %v1183
        %1300 = vmatmul.f32.gmra.mxu0 %v1282
        %v1301 = vpop.f32.mrf.mxu0
        %v1302 = vadd.f32 0.0, %v1301
        %1303 = vdwg.mxu0
        %v1305 = vsel %vm1258, %v1280, 0
        %1307 = vmatpush.msra.mxu0 0.0
        %1308 = vmatpush.msra.mxu0 0.0
        %1309 = vmatpush.msra.mxu0 0.0
        %1310 = vmatpush.msra.mxu0 0.0
        %1311 = vmatpush.msra.mxu0 0.0
        %1312 = vmatpush.msra.mxu0 0.0
        %1313 = vmatpush.msra.mxu0 0.0
        %1314 = vmatpush.msra.mxu0 0.0
        %1315 = vmatpush.msra.mxu0 0.0
        %1316 = vmatpush.msra.mxu0 0.0
        %1317 = vmatpush.msra.mxu0 0.0
        %1318 = vmatpush.msra.mxu0 0.0
        %1319 = vmatpush.msra.mxu0 0.0
        %1320 = vmatpush.msra.mxu0 0.0
        %1321 = vmatpush.msra.mxu0 0.0
        %1322 = vmatpush.msra.mxu0 %v1185
        %1323 = vmatmul.f32.gmra.mxu0 %v1305
        %v1324 = vpop.f32.mrf.mxu0
        %v1325 = vadd.f32 0.0, %v1324
        %1326 = vdwg.mxu0
        %v1327 = vpack.c.bf16 %v1325, %v1302
        %1328 = vrot.lane.b32.xlu0 %v1155, 112
        %v1329 = vpop.permute.xlu0 %1328
        %1330 = vrot.lane.b32.xlu0 %v1169, 112
        %v1331 = vpop.permute.xlu0 %1330
        %v1332 = vsel %vm1203, %v1329, 0
        %v1334 = vsel %vm1203, %v1331, 0
        %1336 = vmatpush.xpose.msra.mxu0 0.0
        %1337 = vmatpush.xpose.msra.mxu0 0.0
        %1338 = vmatpush.xpose.msra.mxu0 0.0
        %1339 = vmatpush.xpose.msra.mxu0 0.0
        %1340 = vmatpush.xpose.msra.mxu0 0.0
        %1341 = vmatpush.xpose.msra.mxu0 0.0
        %1342 = vmatpush.xpose.msra.mxu0 0.0
        %1343 = vmatpush.xpose.msra.mxu0 0.0
        %1344 = vmatpush.xpose.msra.mxu0 0.0
        %1345 = vmatpush.xpose.msra.mxu0 0.0
        %1346 = vmatpush.xpose.msra.mxu0 0.0
        %1347 = vmatpush.xpose.msra.mxu0 0.0
        %1348 = vmatpush.xpose.msra.mxu0 0.0
        %1349 = vmatpush.xpose.msra.mxu0 0.0
        %1350 = vmatpush.xpose.msra.mxu0 0.0
        %1351 = vmatpush.xpose.msra.mxu0 %v1334
        %1352 = vmatmul.f32.gmra.mxu0 %v1332
        %v1353 = vpop.f32.mrf.mxu0
        %v1354 = vadd.f32 0.0, %v1353
        %1355 = vdwg.mxu0
        %1356 = vrot.lane.b32.xlu0 %v1157, 112
        %v1357 = vpop.permute.xlu0 %1356
        %1358 = vrot.lane.b32.xlu0 %v1171, 112
        %v1359 = vpop.permute.xlu0 %1358
        %v1360 = vsel %vm1203, %v1357, 0
        %v1362 = vsel %vm1203, %v1359, 0
        %1364 = vmatpush.xpose.msra.mxu0 0.0
        %1365 = vmatpush.xpose.msra.mxu0 0.0
        %1366 = vmatpush.xpose.msra.mxu0 0.0
        %1367 = vmatpush.xpose.msra.mxu0 0.0
        %1368 = vmatpush.xpose.msra.mxu0 0.0
        %1369 = vmatpush.xpose.msra.mxu0 0.0
        %1370 = vmatpush.xpose.msra.mxu0 0.0
        %1371 = vmatpush.xpose.msra.mxu0 0.0
        %1372 = vmatpush.xpose.msra.mxu0 0.0
        %1373 = vmatpush.xpose.msra.mxu0 0.0
        %1374 = vmatpush.xpose.msra.mxu0 0.0
        %1375 = vmatpush.xpose.msra.mxu0 0.0
        %1376 = vmatpush.xpose.msra.mxu0 0.0
        %1377 = vmatpush.xpose.msra.mxu0 0.0
        %1378 = vmatpush.xpose.msra.mxu0 0.0
        %1379 = vmatpush.xpose.msra.mxu0 %v1362
        %1380 = vmatmul.f32.gmra.mxu0 %v1360
        %v1381 = vpop.f32.mrf.mxu0
        %v1382 = vadd.f32 0.0, %v1381
        %1383 = vdwg.mxu0
        %v1384 = vmul.f32 %v1354, 0.25
        %v1385 = vmul.f32 %v1382, 0.25
        %v1386 = vsel %vm1258, %v1384, -inf
        %1387 = vmax.xlane.f32.xlu0 %v1386
        %v1388 = vpop.xlane.xlu0 %1387
        %v1389 = vsel %vm1258, %v1385, -inf
        %1390 = vmax.xlane.f32.xlu0 %v1389
        %v1391 = vpop.xlane.xlu0 %1390
        %v1392 = vsub.f32 %v1384, %v1388
        %v1393 = vsub.f32 %v1385, %v1391
        %v1394 = vmul.f32 %v1392, 1.442695
        %v1395 = vpow.pop %v1394
        %v1396 = vmul.f32 %v1393, 1.442695
        %v1397 = vpow.pop %v1396
        %v1398 = vsel %vm1258, %v1395, 0.0
        %1399 = vadd.xlane.f32.xlu0 %v1398
        %v1400 = vpop.xlane.xlu0 %1399
        %v1401 = vsel %vm1258, %v1397, 0.0
        %1402 = vadd.xlane.f32.xlu0 %v1401
        %v1403 = vpop.xlane.xlu0 %1402
        %v1404 = vrcp.pop %v1400
        %v1405 = vrcp.pop %v1403
        %v1406 = vmul.f32 %v1395, %v1404
        %v1407 = vmul.f32 %v1397, %v1405
        %1409 = vrot.lane.b32.xlu0 %v1183, 112
        %v1410 = vpop.permute.xlu0 %1409
        %v1413 = vsel %vm1258, %v1406, 0
        %1415 = vmatpush.msra.mxu0 0.0
        %1416 = vmatpush.msra.mxu0 0.0
        %1417 = vmatpush.msra.mxu0 0.0
        %1418 = vmatpush.msra.mxu0 0.0
        %1419 = vmatpush.msra.mxu0 0.0
        %1420 = vmatpush.msra.mxu0 0.0
        %1421 = vmatpush.msra.mxu0 0.0
        %1422 = vmatpush.msra.mxu0 0.0
        %1423 = vmatpush.msra.mxu0 0.0
        %1424 = vmatpush.msra.mxu0 0.0
        %1425 = vmatpush.msra.mxu0 0.0
        %1426 = vmatpush.msra.mxu0 0.0
        %1427 = vmatpush.msra.mxu0 0.0
        %1428 = vmatpush.msra.mxu0 0.0
        %1429 = vmatpush.msra.mxu0 0.0
        %1430 = vmatpush.msra.mxu0 %v1410
        %1431 = vmatmul.f32.gmra.mxu0 %v1413
        %v1432 = vpop.f32.mrf.mxu0
        %v1433 = vadd.f32 0.0, %v1432
        %1434 = vdwg.mxu0
        %1436 = vrot.lane.b32.xlu0 %v1185, 112
        %v1437 = vpop.permute.xlu0 %1436
        %v1440 = vsel %vm1258, %v1407, 0
        %1442 = vmatpush.msra.mxu0 0.0
        %1443 = vmatpush.msra.mxu0 0.0
        %1444 = vmatpush.msra.mxu0 0.0
        %1445 = vmatpush.msra.mxu0 0.0
        %1446 = vmatpush.msra.mxu0 0.0
        %1447 = vmatpush.msra.mxu0 0.0
        %1448 = vmatpush.msra.mxu0 0.0
        %1449 = vmatpush.msra.mxu0 0.0
        %1450 = vmatpush.msra.mxu0 0.0
        %1451 = vmatpush.msra.mxu0 0.0
        %1452 = vmatpush.msra.mxu0 0.0
        %1453 = vmatpush.msra.mxu0 0.0
        %1454 = vmatpush.msra.mxu0 0.0
        %1455 = vmatpush.msra.mxu0 0.0
        %1456 = vmatpush.msra.mxu0 0.0
        %1457 = vmatpush.msra.mxu0 %v1437
        %1458 = vmatmul.f32.gmra.mxu0 %v1440
        %v1459 = vpop.f32.mrf.mxu0
        %v1460 = vadd.f32 0.0, %v1459
        %1461 = vdwg.mxu0
        %v1462 = vpack.c.bf16 %v1460, %v1433
        %v1465 = vunpack.c.l.b16 %v1189
        %v1466 = vunpack.c.l.b16 %v1190
        %v1467 = vpack.c.b16 %v1466, %v1465
        %v1470 = vsel %vm1203, %v1462, 0
        %1472 = vmatpush.bf16.msra.mxu0 0
        %1473 = vmatpush.bf16.msra.mxu0 0
        %1474 = vmatpush.bf16.msra.mxu0 0
        %1475 = vmatpush.bf16.msra.mxu0 0
        %1476 = vmatpush.bf16.msra.mxu0 0
        %1477 = vmatpush.bf16.msra.mxu0 0
        %1478 = vmatpush.bf16.msra.mxu0 0
        %1479 = vmatpush.bf16.msra.mxu0 %v1467
        %1480 = vmatmul.bf16.gmra.mxu0 %v1470
        %v1481 = vpop.f32.mrf.mxu0
        %v1482 = vadd.f32 0.0, %v1481
        %v1483 = vpop.f32.mrf.mxu0
        %v1484 = vadd.f32 0.0, %v1483
        %1485 = vdwg.mxu0
        %v1488 = vunpack.c.l.b16 %v1187
        %v1489 = vunpack.c.l.b16 %v1188
        %v1490 = vpack.c.b16 %v1489, %v1488
        %v1493 = vsel %vm1203, %v1327, 0
        %1495 = vmatpush.bf16.msra.mxu0 0
        %1496 = vmatpush.bf16.msra.mxu0 0
        %1497 = vmatpush.bf16.msra.mxu0 0
        %1498 = vmatpush.bf16.msra.mxu0 0
        %1499 = vmatpush.bf16.msra.mxu0 0
        %1500 = vmatpush.bf16.msra.mxu0 0
        %1501 = vmatpush.bf16.msra.mxu0 0
        %1502 = vmatpush.bf16.msra.mxu0 %v1490
        %1503 = vmatmul.bf16.gmra.mxu0 %v1493
        %v1504 = vpop.f32.mrf.mxu0
        %v1505 = vadd.f32 %v1482, %v1504
        %v1506 = vpop.f32.mrf.mxu0
        %v1507 = vadd.f32 %v1484, %v1506
        %1508 = vdwg.mxu0
        %1509 = vrot.lane.b32.xlu0 %v1155, 96
        %v1510 = vpop.permute.xlu0 %1509
        %1511 = vrot.lane.b32.xlu0 %v1169, 96
        %v1512 = vpop.permute.xlu0 %1511
        %v1513 = vsel %vm1203, %v1510, 0
        %v1515 = vsel %vm1203, %v1512, 0
        %1517 = vmatpush.xpose.msra.mxu0 0.0
        %1518 = vmatpush.xpose.msra.mxu0 0.0
        %1519 = vmatpush.xpose.msra.mxu0 0.0
        %1520 = vmatpush.xpose.msra.mxu0 0.0
        %1521 = vmatpush.xpose.msra.mxu0 0.0
        %1522 = vmatpush.xpose.msra.mxu0 0.0
        %1523 = vmatpush.xpose.msra.mxu0 0.0
        %1524 = vmatpush.xpose.msra.mxu0 0.0
        %1525 = vmatpush.xpose.msra.mxu0 0.0
        %1526 = vmatpush.xpose.msra.mxu0 0.0
        %1527 = vmatpush.xpose.msra.mxu0 0.0
        %1528 = vmatpush.xpose.msra.mxu0 0.0
        %1529 = vmatpush.xpose.msra.mxu0 0.0
        %1530 = vmatpush.xpose.msra.mxu0 0.0
        %1531 = vmatpush.xpose.msra.mxu0 0.0
        %1532 = vmatpush.xpose.msra.mxu0 %v1515
        %1533 = vmatmul.f32.gmra.mxu0 %v1513
        %v1534 = vpop.f32.mrf.mxu0
        %v1535 = vadd.f32 0.0, %v1534
        %1536 = vdwg.mxu0
        %1537 = vrot.lane.b32.xlu0 %v1157, 96
        %v1538 = vpop.permute.xlu0 %1537
        %1539 = vrot.lane.b32.xlu0 %v1171, 96
        %v1540 = vpop.permute.xlu0 %1539
        %v1541 = vsel %vm1203, %v1538, 0
        %v1543 = vsel %vm1203, %v1540, 0
        %1545 = vmatpush.xpose.msra.mxu0 0.0
        %1546 = vmatpush.xpose.msra.mxu0 0.0
        %1547 = vmatpush.xpose.msra.mxu0 0.0
        %1548 = vmatpush.xpose.msra.mxu0 0.0
        %1549 = vmatpush.xpose.msra.mxu0 0.0
        %1550 = vmatpush.xpose.msra.mxu0 0.0
        %1551 = vmatpush.xpose.msra.mxu0 0.0
        %1552 = vmatpush.xpose.msra.mxu0 0.0
        %1553 = vmatpush.xpose.msra.mxu0 0.0
        %1554 = vmatpush.xpose.msra.mxu0 0.0
        %1555 = vmatpush.xpose.msra.mxu0 0.0
        %1556 = vmatpush.xpose.msra.mxu0 0.0
        %1557 = vmatpush.xpose.msra.mxu0 0.0
        %1558 = vmatpush.xpose.msra.mxu0 0.0
        %1559 = vmatpush.xpose.msra.mxu0 0.0
        %1560 = vmatpush.xpose.msra.mxu0 %v1543
        %1561 = vmatmul.f32.gmra.mxu0 %v1541
        %v1562 = vpop.f32.mrf.mxu0
        %v1563 = vadd.f32 0.0, %v1562
        %1564 = vdwg.mxu0
        %v1565 = vmul.f32 %v1535, 0.25
        %v1566 = vmul.f32 %v1563, 0.25
        %v1567 = vsel %vm1258, %v1565, -inf
        %1568 = vmax.xlane.f32.xlu0 %v1567
        %v1569 = vpop.xlane.xlu0 %1568
        %v1570 = vsel %vm1258, %v1566, -inf
        %1571 = vmax.xlane.f32.xlu0 %v1570
        %v1572 = vpop.xlane.xlu0 %1571
        %v1573 = vsub.f32 %v1565, %v1569
        %v1574 = vsub.f32 %v1566, %v1572
        %v1575 = vmul.f32 %v1573, 1.442695
        %v1576 = vpow.pop %v1575
        %v1577 = vmul.f32 %v1574, 1.442695
        %v1578 = vpow.pop %v1577
        %v1579 = vsel %vm1258, %v1576, 0.0
        %1580 = vadd.xlane.f32.xlu0 %v1579
        %v1581 = vpop.xlane.xlu0 %1580
        %v1582 = vsel %vm1258, %v1578, 0.0
        %1583 = vadd.xlane.f32.xlu0 %v1582
        %v1584 = vpop.xlane.xlu0 %1583
        %v1585 = vrcp.pop %v1581
        %v1586 = vrcp.pop %v1584
        %v1587 = vmul.f32 %v1576, %v1585
        %v1588 = vmul.f32 %v1578, %v1586
        %1589 = vrot.lane.b32.xlu0 %v1183, 96
        %v1590 = vpop.permute.xlu0 %1589
        %v1593 = vsel %vm1258, %v1587, 0
        %1595 = vmatpush.msra.mxu0 0.0
        %1596 = vmatpush.msra.mxu0 0.0
        %1597 = vmatpush.msra.mxu0 0.0
        %1598 = vmatpush.msra.mxu0 0.0
        %1599 = vmatpush.msra.mxu0 0.0
        %1600 = vmatpush.msra.mxu0 0.0
        %1601 = vmatpush.msra.mxu0 0.0
        %1602 = vmatpush.msra.mxu0 0.0
        %1603 = vmatpush.msra.mxu0 0.0
        %1604 = vmatpush.msra.mxu0 0.0
        %1605 = vmatpush.msra.mxu0 0.0
        %1606 = vmatpush.msra.mxu0 0.0
        %1607 = vmatpush.msra.mxu0 0.0
        %1608 = vmatpush.msra.mxu0 0.0
        %1609 = vmatpush.msra.mxu0 0.0
        %1610 = vmatpush.msra.mxu0 %v1590
        %1611 = vmatmul.f32.gmra.mxu0 %v1593
        %v1612 = vpop.f32.mrf.mxu0
        %v1613 = vadd.f32 0.0, %v1612
        %1614 = vdwg.mxu0
        %1615 = vrot.lane.b32.xlu0 %v1185, 96
        %v1616 = vpop.permute.xlu0 %1615
        %v1619 = vsel %vm1258, %v1588, 0
        %1621 = vmatpush.msra.mxu0 0.0
        %1622 = vmatpush.msra.mxu0 0.0
        %1623 = vmatpush.msra.mxu0 0.0
        %1624 = vmatpush.msra.mxu0 0.0
        %1625 = vmatpush.msra.mxu0 0.0
        %1626 = vmatpush.msra.mxu0 0.0
        %1627 = vmatpush.msra.mxu0 0.0
        %1628 = vmatpush.msra.mxu0 0.0
        %1629 = vmatpush.msra.mxu0 0.0
        %1630 = vmatpush.msra.mxu0 0.0
        %1631 = vmatpush.msra.mxu0 0.0
        %1632 = vmatpush.msra.mxu0 0.0
        %1633 = vmatpush.msra.mxu0 0.0
        %1634 = vmatpush.msra.mxu0 0.0
        %1635 = vmatpush.msra.mxu0 0.0
        %1636 = vmatpush.msra.mxu0 %v1616
        %1637 = vmatmul.f32.gmra.mxu0 %v1619
        %v1638 = vpop.f32.mrf.mxu0
        %v1639 = vadd.f32 0.0, %v1638
        %1640 = vdwg.mxu0
        %v1641 = vpack.c.bf16 %v1639, %v1613
        %v1644 = vunpack.c.l.b16 %v1191
        %v1645 = vunpack.c.l.b16 %v1192
        %v1646 = vpack.c.b16 %v1645, %v1644
        %v1649 = vsel %vm1203, %v1641, 0
        %1651 = vmatpush.bf16.msra.mxu0 0
        %1652 = vmatpush.bf16.msra.mxu0 0
        %1653 = vmatpush.bf16.msra.mxu0 0
        %1654 = vmatpush.bf16.msra.mxu0 0
        %1655 = vmatpush.bf16.msra.mxu0 0
        %1656 = vmatpush.bf16.msra.mxu0 0
        %1657 = vmatpush.bf16.msra.mxu0 0
        %1658 = vmatpush.bf16.msra.mxu0 %v1646
        %1659 = vmatmul.bf16.gmra.mxu0 %v1649
        %v1660 = vpop.f32.mrf.mxu0
        %v1661 = vadd.f32 0.0, %v1660
        %v1662 = vpop.f32.mrf.mxu0
        %v1663 = vadd.f32 0.0, %v1662
        %1664 = vdwg.mxu0
        %v1665 = vadd.f32 %v1505, %v1661
        %v1666 = vadd.f32 %v1507, %v1663
        %1667 = vrot.lane.b32.xlu0 %v1155, 80
        %v1668 = vpop.permute.xlu0 %1667
        %1669 = vrot.lane.b32.xlu0 %v1169, 80
        %v1670 = vpop.permute.xlu0 %1669
        %v1671 = vsel %vm1203, %v1668, 0
        %v1673 = vsel %vm1203, %v1670, 0
        %1675 = vmatpush.xpose.msra.mxu0 0.0
        %1676 = vmatpush.xpose.msra.mxu0 0.0
        %1677 = vmatpush.xpose.msra.mxu0 0.0
        %1678 = vmatpush.xpose.msra.mxu0 0.0
        %1679 = vmatpush.xpose.msra.mxu0 0.0
        %1680 = vmatpush.xpose.msra.mxu0 0.0
        %1681 = vmatpush.xpose.msra.mxu0 0.0
        %1682 = vmatpush.xpose.msra.mxu0 0.0
        %1683 = vmatpush.xpose.msra.mxu0 0.0
        %1684 = vmatpush.xpose.msra.mxu0 0.0
        %1685 = vmatpush.xpose.msra.mxu0 0.0
        %1686 = vmatpush.xpose.msra.mxu0 0.0
        %1687 = vmatpush.xpose.msra.mxu0 0.0
        %1688 = vmatpush.xpose.msra.mxu0 0.0
        %1689 = vmatpush.xpose.msra.mxu0 0.0
        %1690 = vmatpush.xpose.msra.mxu0 %v1673
        %1691 = vmatmul.f32.gmra.mxu0 %v1671
        %v1692 = vpop.f32.mrf.mxu0
        %v1693 = vadd.f32 0.0, %v1692
        %1694 = vdwg.mxu0
        %1695 = vrot.lane.b32.xlu0 %v1157, 80
        %v1696 = vpop.permute.xlu0 %1695
        %1697 = vrot.lane.b32.xlu0 %v1171, 80
        %v1698 = vpop.permute.xlu0 %1697
        %v1699 = vsel %vm1203, %v1696, 0
        %v1701 = vsel %vm1203, %v1698, 0
        %1703 = vmatpush.xpose.msra.mxu0 0.0
        %1704 = vmatpush.xpose.msra.mxu0 0.0
        %1705 = vmatpush.xpose.msra.mxu0 0.0
        %1706 = vmatpush.xpose.msra.mxu0 0.0
        %1707 = vmatpush.xpose.msra.mxu0 0.0
        %1708 = vmatpush.xpose.msra.mxu0 0.0
        %1709 = vmatpush.xpose.msra.mxu0 0.0
        %1710 = vmatpush.xpose.msra.mxu0 0.0
        %1711 = vmatpush.xpose.msra.mxu0 0.0
        %1712 = vmatpush.xpose.msra.mxu0 0.0
        %1713 = vmatpush.xpose.msra.mxu0 0.0
        %1714 = vmatpush.xpose.msra.mxu0 0.0
        %1715 = vmatpush.xpose.msra.mxu0 0.0
        %1716 = vmatpush.xpose.msra.mxu0 0.0
        %1717 = vmatpush.xpose.msra.mxu0 0.0
        %1718 = vmatpush.xpose.msra.mxu0 %v1701
        %1719 = vmatmul.f32.gmra.mxu0 %v1699
        %v1720 = vpop.f32.mrf.mxu0
        %v1721 = vadd.f32 0.0, %v1720
        %1722 = vdwg.mxu0
        %v1723 = vmul.f32 %v1693, 0.25
        %v1724 = vmul.f32 %v1721, 0.25
        %v1725 = vsel %vm1258, %v1723, -inf
        %1726 = vmax.xlane.f32.xlu0 %v1725
        %v1727 = vpop.xlane.xlu0 %1726
        %v1728 = vsel %vm1258, %v1724, -inf
        %1729 = vmax.xlane.f32.xlu0 %v1728
        %v1730 = vpop.xlane.xlu0 %1729
        %v1731 = vsub.f32 %v1723, %v1727
        %v1732 = vsub.f32 %v1724, %v1730
        %v1733 = vmul.f32 %v1731, 1.442695
        %v1734 = vpow.pop %v1733
        %v1735 = vmul.f32 %v1732, 1.442695
        %v1736 = vpow.pop %v1735
        %v1737 = vsel %vm1258, %v1734, 0.0
        %1738 = vadd.xlane.f32.xlu0 %v1737
        %v1739 = vpop.xlane.xlu0 %1738
        %v1740 = vsel %vm1258, %v1736, 0.0
        %1741 = vadd.xlane.f32.xlu0 %v1740
        %v1742 = vpop.xlane.xlu0 %1741
        %v1743 = vrcp.pop %v1739
        %v1744 = vrcp.pop %v1742
        %v1745 = vmul.f32 %v1734, %v1743
        %v1746 = vmul.f32 %v1736, %v1744
        %1747 = vrot.lane.b32.xlu0 %v1183, 80
        %v1748 = vpop.permute.xlu0 %1747
        %v1751 = vsel %vm1258, %v1745, 0
        %1753 = vmatpush.msra.mxu0 0.0
        %1754 = vmatpush.msra.mxu0 0.0
        %1755 = vmatpush.msra.mxu0 0.0
        %1756 = vmatpush.msra.mxu0 0.0
        %1757 = vmatpush.msra.mxu0 0.0
        %1758 = vmatpush.msra.mxu0 0.0
        %1759 = vmatpush.msra.mxu0 0.0
        %1760 = vmatpush.msra.mxu0 0.0
        %1761 = vmatpush.msra.mxu0 0.0
        %1762 = vmatpush.msra.mxu0 0.0
        %1763 = vmatpush.msra.mxu0 0.0
        %1764 = vmatpush.msra.mxu0 0.0
        %1765 = vmatpush.msra.mxu0 0.0
        %1766 = vmatpush.msra.mxu0 0.0
        %1767 = vmatpush.msra.mxu0 0.0
        %1768 = vmatpush.msra.mxu0 %v1748
        %1769 = vmatmul.f32.gmra.mxu0 %v1751
        %v1770 = vpop.f32.mrf.mxu0
        %v1771 = vadd.f32 0.0, %v1770
        %1772 = vdwg.mxu0
        %1773 = vrot.lane.b32.xlu0 %v1185, 80
        %v1774 = vpop.permute.xlu0 %1773
        %v1777 = vsel %vm1258, %v1746, 0
        %1779 = vmatpush.msra.mxu0 0.0
        %1780 = vmatpush.msra.mxu0 0.0
        %1781 = vmatpush.msra.mxu0 0.0
        %1782 = vmatpush.msra.mxu0 0.0
        %1783 = vmatpush.msra.mxu0 0.0
        %1784 = vmatpush.msra.mxu0 0.0
        %1785 = vmatpush.msra.mxu0 0.0
        %1786 = vmatpush.msra.mxu0 0.0
        %1787 = vmatpush.msra.mxu0 0.0
        %1788 = vmatpush.msra.mxu0 0.0
        %1789 = vmatpush.msra.mxu0 0.0
        %1790 = vmatpush.msra.mxu0 0.0
        %1791 = vmatpush.msra.mxu0 0.0
        %1792 = vmatpush.msra.mxu0 0.0
        %1793 = vmatpush.msra.mxu0 0.0
        %1794 = vmatpush.msra.mxu0 %v1774
        %1795 = vmatmul.f32.gmra.mxu0 %v1777
        %v1796 = vpop.f32.mrf.mxu0
        %v1797 = vadd.f32 0.0, %v1796
        %1798 = vdwg.mxu0
        %v1799 = vpack.c.bf16 %v1797, %v1771
        %v1802 = vunpack.c.l.b16 %v1193
        %v1803 = vunpack.c.l.b16 %v1194
        %v1804 = vpack.c.b16 %v1803, %v1802
        %v1807 = vsel %vm1203, %v1799, 0
        %1809 = vmatpush.bf16.msra.mxu0 0
        %1810 = vmatpush.bf16.msra.mxu0 0
        %1811 = vmatpush.bf16.msra.mxu0 0
        %1812 = vmatpush.bf16.msra.mxu0 0
        %1813 = vmatpush.bf16.msra.mxu0 0
        %1814 = vmatpush.bf16.msra.mxu0 0
        %1815 = vmatpush.bf16.msra.mxu0 0
        %1816 = vmatpush.bf16.msra.mxu0 %v1804
        %1817 = vmatmul.bf16.gmra.mxu0 %v1807
        %v1818 = vpop.f32.mrf.mxu0
        %v1819 = vadd.f32 0.0, %v1818
        %v1820 = vpop.f32.mrf.mxu0
        %v1821 = vadd.f32 0.0, %v1820
        %1822 = vdwg.mxu0
        %v1823 = vadd.f32 %v1665, %v1819
        %v1824 = vadd.f32 %v1666, %v1821
        %1825 = vrot.lane.b32.xlu0 %v1155, 64
        %v1826 = vpop.permute.xlu0 %1825
        %1827 = vrot.lane.b32.xlu0 %v1169, 64
        %v1828 = vpop.permute.xlu0 %1827
        %v1829 = vsel %vm1203, %v1826, 0
        %v1831 = vsel %vm1203, %v1828, 0
        %1833 = vmatpush.xpose.msra.mxu0 0.0
        %1834 = vmatpush.xpose.msra.mxu0 0.0
        %1835 = vmatpush.xpose.msra.mxu0 0.0
        %1836 = vmatpush.xpose.msra.mxu0 0.0
        %1837 = vmatpush.xpose.msra.mxu0 0.0
        %1838 = vmatpush.xpose.msra.mxu0 0.0
        %1839 = vmatpush.xpose.msra.mxu0 0.0
        %1840 = vmatpush.xpose.msra.mxu0 0.0
        %1841 = vmatpush.xpose.msra.mxu0 0.0
        %1842 = vmatpush.xpose.msra.mxu0 0.0
        %1843 = vmatpush.xpose.msra.mxu0 0.0
        %1844 = vmatpush.xpose.msra.mxu0 0.0
        %1845 = vmatpush.xpose.msra.mxu0 0.0
        %1846 = vmatpush.xpose.msra.mxu0 0.0
        %1847 = vmatpush.xpose.msra.mxu0 0.0
        %1848 = vmatpush.xpose.msra.mxu0 %v1831
        %1849 = vmatmul.f32.gmra.mxu0 %v1829
        %v1850 = vpop.f32.mrf.mxu0
        %v1851 = vadd.f32 0.0, %v1850
        %1852 = vdwg.mxu0
        %1853 = vrot.lane.b32.xlu0 %v1157, 64
        %v1854 = vpop.permute.xlu0 %1853
        %1855 = vrot.lane.b32.xlu0 %v1171, 64
        %v1856 = vpop.permute.xlu0 %1855
        %v1857 = vsel %vm1203, %v1854, 0
        %v1859 = vsel %vm1203, %v1856, 0
        %1861 = vmatpush.xpose.msra.mxu0 0.0
        %1862 = vmatpush.xpose.msra.mxu0 0.0
        %1863 = vmatpush.xpose.msra.mxu0 0.0
        %1864 = vmatpush.xpose.msra.mxu0 0.0
        %1865 = vmatpush.xpose.msra.mxu0 0.0
        %1866 = vmatpush.xpose.msra.mxu0 0.0
        %1867 = vmatpush.xpose.msra.mxu0 0.0
        %1868 = vmatpush.xpose.msra.mxu0 0.0
        %1869 = vmatpush.xpose.msra.mxu0 0.0
        %1870 = vmatpush.xpose.msra.mxu0 0.0
        %1871 = vmatpush.xpose.msra.mxu0 0.0
        %1872 = vmatpush.xpose.msra.mxu0 0.0
        %1873 = vmatpush.xpose.msra.mxu0 0.0
        %1874 = vmatpush.xpose.msra.mxu0 0.0
        %1875 = vmatpush.xpose.msra.mxu0 0.0
        %1876 = vmatpush.xpose.msra.mxu0 %v1859
        %1877 = vmatmul.f32.gmra.mxu0 %v1857
        %v1878 = vpop.f32.mrf.mxu0
        %v1879 = vadd.f32 0.0, %v1878
        %1880 = vdwg.mxu0
        %v1881 = vmul.f32 %v1851, 0.25
        %v1882 = vmul.f32 %v1879, 0.25
        %v1883 = vsel %vm1258, %v1881, -inf
        %1884 = vmax.xlane.f32.xlu0 %v1883
        %v1885 = vpop.xlane.xlu0 %1884
        %v1886 = vsel %vm1258, %v1882, -inf
        %1887 = vmax.xlane.f32.xlu0 %v1886
        %v1888 = vpop.xlane.xlu0 %1887
        %v1889 = vsub.f32 %v1881, %v1885
        %v1890 = vsub.f32 %v1882, %v1888
        %v1891 = vmul.f32 %v1889, 1.442695
        %v1892 = vpow.pop %v1891
        %v1893 = vmul.f32 %v1890, 1.442695
        %v1894 = vpow.pop %v1893
        %v1895 = vsel %vm1258, %v1892, 0.0
        %1896 = vadd.xlane.f32.xlu0 %v1895
        %v1897 = vpop.xlane.xlu0 %1896
        %v1898 = vsel %vm1258, %v1894, 0.0
        %1899 = vadd.xlane.f32.xlu0 %v1898
        %v1900 = vpop.xlane.xlu0 %1899
        %v1901 = vrcp.pop %v1897
        %v1902 = vrcp.pop %v1900
        %v1903 = vmul.f32 %v1892, %v1901
        %v1904 = vmul.f32 %v1894, %v1902
        %1905 = vrot.lane.b32.xlu0 %v1183, 64
        %v1906 = vpop.permute.xlu0 %1905
        %v1909 = vsel %vm1258, %v1903, 0
        %1911 = vmatpush.msra.mxu0 0.0
        %1912 = vmatpush.msra.mxu0 0.0
        %1913 = vmatpush.msra.mxu0 0.0
        %1914 = vmatpush.msra.mxu0 0.0
        %1915 = vmatpush.msra.mxu0 0.0
        %1916 = vmatpush.msra.mxu0 0.0
        %1917 = vmatpush.msra.mxu0 0.0
        %1918 = vmatpush.msra.mxu0 0.0
        %1919 = vmatpush.msra.mxu0 0.0
        %1920 = vmatpush.msra.mxu0 0.0
        %1921 = vmatpush.msra.mxu0 0.0
        %1922 = vmatpush.msra.mxu0 0.0
        %1923 = vmatpush.msra.mxu0 0.0
        %1924 = vmatpush.msra.mxu0 0.0
        %1925 = vmatpush.msra.mxu0 0.0
        %1926 = vmatpush.msra.mxu0 %v1906
        %1927 = vmatmul.f32.gmra.mxu0 %v1909
        %v1928 = vpop.f32.mrf.mxu0
        %v1929 = vadd.f32 0.0, %v1928
        %1930 = vdwg.mxu0
        %1931 = vrot.lane.b32.xlu0 %v1185, 64
        %v1932 = vpop.permute.xlu0 %1931
        %v1935 = vsel %vm1258, %v1904, 0
        %1937 = vmatpush.msra.mxu0 0.0
        %1938 = vmatpush.msra.mxu0 0.0
        %1939 = vmatpush.msra.mxu0 0.0
        %1940 = vmatpush.msra.mxu0 0.0
        %1941 = vmatpush.msra.mxu0 0.0
        %1942 = vmatpush.msra.mxu0 0.0
        %1943 = vmatpush.msra.mxu0 0.0
        %1944 = vmatpush.msra.mxu0 0.0
        %1945 = vmatpush.msra.mxu0 0.0
        %1946 = vmatpush.msra.mxu0 0.0
        %1947 = vmatpush.msra.mxu0 0.0
        %1948 = vmatpush.msra.mxu0 0.0
        %1949 = vmatpush.msra.mxu0 0.0
        %1950 = vmatpush.msra.mxu0 0.0
        %1951 = vmatpush.msra.mxu0 0.0
        %1952 = vmatpush.msra.mxu0 %v1932
        %1953 = vmatmul.f32.gmra.mxu0 %v1935
        %v1954 = vpop.f32.mrf.mxu0
        %v1955 = vadd.f32 0.0, %v1954
        %1956 = vdwg.mxu0
        %v1957 = vpack.c.bf16 %v1955, %v1929
        %v1960 = vunpack.c.l.b16 %v1195
        %v1961 = vunpack.c.l.b16 %v1196
        %v1962 = vpack.c.b16 %v1961, %v1960
        %v1965 = vsel %vm1203, %v1957, 0
        %1967 = vmatpush.bf16.msra.mxu0 0
        %1968 = vmatpush.bf16.msra.mxu0 0
        %1969 = vmatpush.bf16.msra.mxu0 0
        %1970 = vmatpush.bf16.msra.mxu0 0
        %1971 = vmatpush.bf16.msra.mxu0 0
        %1972 = vmatpush.bf16.msra.mxu0 0
        %1973 = vmatpush.bf16.msra.mxu0 0
        %1974 = vmatpush.bf16.msra.mxu0 %v1962
        %1975 = vmatmul.bf16.gmra.mxu0 %v1965
        %v1976 = vpop.f32.mrf.mxu0
        %v1977 = vadd.f32 0.0, %v1976
        %v1978 = vpop.f32.mrf.mxu0
        %v1979 = vadd.f32 0.0, %v1978
        %1980 = vdwg.mxu0
        %v1981 = vadd.f32 %v1823, %v1977
        %v1982 = vadd.f32 %v1824, %v1979
        %1983 = vrot.lane.b32.xlu0 %v1155, 48
        %v1984 = vpop.permute.xlu0 %1983
        %1985 = vrot.lane.b32.xlu0 %v1169, 48
        %v1986 = vpop.permute.xlu0 %1985
        %v1987 = vsel %vm1203, %v1984, 0
        %v1989 = vsel %vm1203, %v1986, 0
        %1991 = vmatpush.xpose.msra.mxu0 0.0
        %1992 = vmatpush.xpose.msra.mxu0 0.0
        %1993 = vmatpush.xpose.msra.mxu0 0.0
        %1994 = vmatpush.xpose.msra.mxu0 0.0
        %1995 = vmatpush.xpose.msra.mxu0 0.0
        %1996 = vmatpush.xpose.msra.mxu0 0.0
        %1997 = vmatpush.xpose.msra.mxu0 0.0
        %1998 = vmatpush.xpose.msra.mxu0 0.0
        %1999 = vmatpush.xpose.msra.mxu0 0.0
        %2000 = vmatpush.xpose.msra.mxu0 0.0
        %2001 = vmatpush.xpose.msra.mxu0 0.0
        %2002 = vmatpush.xpose.msra.mxu0 0.0
        %2003 = vmatpush.xpose.msra.mxu0 0.0
        %2004 = vmatpush.xpose.msra.mxu0 0.0
        %2005 = vmatpush.xpose.msra.mxu0 0.0
        %2006 = vmatpush.xpose.msra.mxu0 %v1989
        %2007 = vmatmul.f32.gmra.mxu0 %v1987
        %v2008 = vpop.f32.mrf.mxu0
        %v2009 = vadd.f32 0.0, %v2008
        %2010 = vdwg.mxu0
        %2011 = vrot.lane.b32.xlu0 %v1157, 48
        %v2012 = vpop.permute.xlu0 %2011
        %2013 = vrot.lane.b32.xlu0 %v1171, 48
        %v2014 = vpop.permute.xlu0 %2013
        %v2015 = vsel %vm1203, %v2012, 0
        %v2017 = vsel %vm1203, %v2014, 0
        %2019 = vmatpush.xpose.msra.mxu0 0.0
        %2020 = vmatpush.xpose.msra.mxu0 0.0
        %2021 = vmatpush.xpose.msra.mxu0 0.0
        %2022 = vmatpush.xpose.msra.mxu0 0.0
        %2023 = vmatpush.xpose.msra.mxu0 0.0
        %2024 = vmatpush.xpose.msra.mxu0 0.0
        %2025 = vmatpush.xpose.msra.mxu0 0.0
        %2026 = vmatpush.xpose.msra.mxu0 0.0
        %2027 = vmatpush.xpose.msra.mxu0 0.0
        %2028 = vmatpush.xpose.msra.mxu0 0.0
        %2029 = vmatpush.xpose.msra.mxu0 0.0
        %2030 = vmatpush.xpose.msra.mxu0 0.0
        %2031 = vmatpush.xpose.msra.mxu0 0.0
        %2032 = vmatpush.xpose.msra.mxu0 0.0
        %2033 = vmatpush.xpose.msra.mxu0 0.0
        %2034 = vmatpush.xpose.msra.mxu0 %v2017
        %2035 = vmatmul.f32.gmra.mxu0 %v2015
        %v2036 = vpop.f32.mrf.mxu0
        %v2037 = vadd.f32 0.0, %v2036
        %2038 = vdwg.mxu0
        %v2039 = vmul.f32 %v2009, 0.25
        %v2040 = vmul.f32 %v2037, 0.25
        %v2041 = vsel %vm1258, %v2039, -inf
        %2042 = vmax.xlane.f32.xlu0 %v2041
        %v2043 = vpop.xlane.xlu0 %2042
        %v2044 = vsel %vm1258, %v2040, -inf
        %2045 = vmax.xlane.f32.xlu0 %v2044
        %v2046 = vpop.xlane.xlu0 %2045
        %v2047 = vsub.f32 %v2039, %v2043
        %v2048 = vsub.f32 %v2040, %v2046
        %v2049 = vmul.f32 %v2047, 1.442695
        %v2050 = vpow.pop %v2049
        %v2051 = vmul.f32 %v2048, 1.442695
        %v2052 = vpow.pop %v2051
        %v2053 = vsel %vm1258, %v2050, 0.0
        %2054 = vadd.xlane.f32.xlu0 %v2053
        %v2055 = vpop.xlane.xlu0 %2054
        %v2056 = vsel %vm1258, %v2052, 0.0
        %2057 = vadd.xlane.f32.xlu0 %v2056
        %v2058 = vpop.xlane.xlu0 %2057
        %v2059 = vrcp.pop %v2055
        %v2060 = vrcp.pop %v2058
        %v2061 = vmul.f32 %v2050, %v2059
        %v2062 = vmul.f32 %v2052, %v2060
        %2063 = vrot.lane.b32.xlu0 %v1183, 48
        %v2064 = vpop.permute.xlu0 %2063
        %v2067 = vsel %vm1258, %v2061, 0
        %2069 = vmatpush.msra.mxu0 0.0
        %2070 = vmatpush.msra.mxu0 0.0
        %2071 = vmatpush.msra.mxu0 0.0
        %2072 = vmatpush.msra.mxu0 0.0
        %2073 = vmatpush.msra.mxu0 0.0
        %2074 = vmatpush.msra.mxu0 0.0
        %2075 = vmatpush.msra.mxu0 0.0
        %2076 = vmatpush.msra.mxu0 0.0
        %2077 = vmatpush.msra.mxu0 0.0
        %2078 = vmatpush.msra.mxu0 0.0
        %2079 = vmatpush.msra.mxu0 0.0
        %2080 = vmatpush.msra.mxu0 0.0
        %2081 = vmatpush.msra.mxu0 0.0
        %2082 = vmatpush.msra.mxu0 0.0
        %2083 = vmatpush.msra.mxu0 0.0
        %2084 = vmatpush.msra.mxu0 %v2064
        %2085 = vmatmul.f32.gmra.mxu0 %v2067
        %v2086 = vpop.f32.mrf.mxu0
        %v2087 = vadd.f32 0.0, %v2086
        %2088 = vdwg.mxu0
        %2089 = vrot.lane.b32.xlu0 %v1185, 48
        %v2090 = vpop.permute.xlu0 %2089
        %v2093 = vsel %vm1258, %v2062, 0
        %2095 = vmatpush.msra.mxu0 0.0
        %2096 = vmatpush.msra.mxu0 0.0
        %2097 = vmatpush.msra.mxu0 0.0
        %2098 = vmatpush.msra.mxu0 0.0
        %2099 = vmatpush.msra.mxu0 0.0
        %2100 = vmatpush.msra.mxu0 0.0
        %2101 = vmatpush.msra.mxu0 0.0
        %2102 = vmatpush.msra.mxu0 0.0
        %2103 = vmatpush.msra.mxu0 0.0
        %2104 = vmatpush.msra.mxu0 0.0
        %2105 = vmatpush.msra.mxu0 0.0
        %2106 = vmatpush.msra.mxu0 0.0
        %2107 = vmatpush.msra.mxu0 0.0
        %2108 = vmatpush.msra.mxu0 0.0
        %2109 = vmatpush.msra.mxu0 0.0
        %2110 = vmatpush.msra.mxu0 %v2090
        %2111 = vmatmul.f32.gmra.mxu0 %v2093
        %v2112 = vpop.f32.mrf.mxu0
        %v2113 = vadd.f32 0.0, %v2112
        %2114 = vdwg.mxu0
        %v2115 = vpack.c.bf16 %v2113, %v2087
        %v2118 = vunpack.c.l.b16 %v1197
        %v2119 = vunpack.c.l.b16 %v1198
        %v2120 = vpack.c.b16 %v2119, %v2118
        %v2123 = vsel %vm1203, %v2115, 0
        %2125 = vmatpush.bf16.msra.mxu0 0
        %2126 = vmatpush.bf16.msra.mxu0 0
        %2127 = vmatpush.bf16.msra.mxu0 0
        %2128 = vmatpush.bf16.msra.mxu0 0
        %2129 = vmatpush.bf16.msra.mxu0 0
        %2130 = vmatpush.bf16.msra.mxu0 0
        %2131 = vmatpush.bf16.msra.mxu0 0
        %2132 = vmatpush.bf16.msra.mxu0 %v2120
        %2133 = vmatmul.bf16.gmra.mxu0 %v2123
        %v2134 = vpop.f32.mrf.mxu0
        %v2135 = vadd.f32 0.0, %v2134
        %v2136 = vpop.f32.mrf.mxu0
        %v2137 = vadd.f32 0.0, %v2136
        %2138 = vdwg.mxu0
        %v2139 = vadd.f32 %v1981, %v2135
        %v2140 = vadd.f32 %v1982, %v2137
        %2141 = vrot.lane.b32.xlu0 %v1155, 32
        %v2142 = vpop.permute.xlu0 %2141
        %2143 = vrot.lane.b32.xlu0 %v1169, 32
        %v2144 = vpop.permute.xlu0 %2143
        %v2145 = vsel %vm1203, %v2142, 0
        %v2147 = vsel %vm1203, %v2144, 0
        %2149 = vmatpush.xpose.msra.mxu0 0.0
        %2150 = vmatpush.xpose.msra.mxu0 0.0
        %2151 = vmatpush.xpose.msra.mxu0 0.0
        %2152 = vmatpush.xpose.msra.mxu0 0.0
        %2153 = vmatpush.xpose.msra.mxu0 0.0
        %2154 = vmatpush.xpose.msra.mxu0 0.0
        %2155 = vmatpush.xpose.msra.mxu0 0.0
        %2156 = vmatpush.xpose.msra.mxu0 0.0
        %2157 = vmatpush.xpose.msra.mxu0 0.0
        %2158 = vmatpush.xpose.msra.mxu0 0.0
        %2159 = vmatpush.xpose.msra.mxu0 0.0
        %2160 = vmatpush.xpose.msra.mxu0 0.0
        %2161 = vmatpush.xpose.msra.mxu0 0.0
        %2162 = vmatpush.xpose.msra.mxu0 0.0
        %2163 = vmatpush.xpose.msra.mxu0 0.0
        %2164 = vmatpush.xpose.msra.mxu0 %v2147
        %2165 = vmatmul.f32.gmra.mxu0 %v2145
        %v2166 = vpop.f32.mrf.mxu0
        %v2167 = vadd.f32 0.0, %v2166
        %2168 = vdwg.mxu0
        %2169 = vrot.lane.b32.xlu0 %v1157, 32
        %v2170 = vpop.permute.xlu0 %2169
        %2171 = vrot.lane.b32.xlu0 %v1171, 32
        %v2172 = vpop.permute.xlu0 %2171
        %v2173 = vsel %vm1203, %v2170, 0
        %v2175 = vsel %vm1203, %v2172, 0
        %2177 = vmatpush.xpose.msra.mxu0 0.0
        %2178 = vmatpush.xpose.msra.mxu0 0.0
        %2179 = vmatpush.xpose.msra.mxu0 0.0
        %2180 = vmatpush.xpose.msra.mxu0 0.0
        %2181 = vmatpush.xpose.msra.mxu0 0.0
        %2182 = vmatpush.xpose.msra.mxu0 0.0
        %2183 = vmatpush.xpose.msra.mxu0 0.0
        %2184 = vmatpush.xpose.msra.mxu0 0.0
        %2185 = vmatpush.xpose.msra.mxu0 0.0
        %2186 = vmatpush.xpose.msra.mxu0 0.0
        %2187 = vmatpush.xpose.msra.mxu0 0.0
        %2188 = vmatpush.xpose.msra.mxu0 0.0
        %2189 = vmatpush.xpose.msra.mxu0 0.0
        %2190 = vmatpush.xpose.msra.mxu0 0.0
        %2191 = vmatpush.xpose.msra.mxu0 0.0
        %2192 = vmatpush.xpose.msra.mxu0 %v2175
        %2193 = vmatmul.f32.gmra.mxu0 %v2173
        %v2194 = vpop.f32.mrf.mxu0
        %v2195 = vadd.f32 0.0, %v2194
        %2196 = vdwg.mxu0
        %v2197 = vmul.f32 %v2167, 0.25
        %v2198 = vmul.f32 %v2195, 0.25
        %v2199 = vsel %vm1258, %v2197, -inf
        %2200 = vmax.xlane.f32.xlu0 %v2199
        %v2201 = vpop.xlane.xlu0 %2200
        %v2202 = vsel %vm1258, %v2198, -inf
        %2203 = vmax.xlane.f32.xlu0 %v2202
        %v2204 = vpop.xlane.xlu0 %2203
        %v2205 = vsub.f32 %v2197, %v2201
        %v2206 = vsub.f32 %v2198, %v2204
        %v2207 = vmul.f32 %v2205, 1.442695
        %v2208 = vpow.pop %v2207
        %v2209 = vmul.f32 %v2206, 1.442695
        %v2210 = vpow.pop %v2209
        %v2211 = vsel %vm1258, %v2208, 0.0
        %2212 = vadd.xlane.f32.xlu0 %v2211
        %v2213 = vpop.xlane.xlu0 %2212
        %v2214 = vsel %vm1258, %v2210, 0.0
        %2215 = vadd.xlane.f32.xlu0 %v2214
        %v2216 = vpop.xlane.xlu0 %2215
        %v2217 = vrcp.pop %v2213
        %v2218 = vrcp.pop %v2216
        %v2219 = vmul.f32 %v2208, %v2217
        %v2220 = vmul.f32 %v2210, %v2218
        %2221 = vrot.lane.b32.xlu0 %v1183, 32
        %v2222 = vpop.permute.xlu0 %2221
        %v2225 = vsel %vm1258, %v2219, 0
        %2227 = vmatpush.msra.mxu0 0.0
        %2228 = vmatpush.msra.mxu0 0.0
        %2229 = vmatpush.msra.mxu0 0.0
        %2230 = vmatpush.msra.mxu0 0.0
        %2231 = vmatpush.msra.mxu0 0.0
        %2232 = vmatpush.msra.mxu0 0.0
        %2233 = vmatpush.msra.mxu0 0.0
        %2234 = vmatpush.msra.mxu0 0.0
        %2235 = vmatpush.msra.mxu0 0.0
        %2236 = vmatpush.msra.mxu0 0.0
        %2237 = vmatpush.msra.mxu0 0.0
        %2238 = vmatpush.msra.mxu0 0.0
        %2239 = vmatpush.msra.mxu0 0.0
        %2240 = vmatpush.msra.mxu0 0.0
        %2241 = vmatpush.msra.mxu0 0.0
        %2242 = vmatpush.msra.mxu0 %v2222
        %2243 = vmatmul.f32.gmra.mxu0 %v2225
        %v2244 = vpop.f32.mrf.mxu0
        %v2245 = vadd.f32 0.0, %v2244
        %2246 = vdwg.mxu0
        %2247 = vrot.lane.b32.xlu0 %v1185, 32
        %v2248 = vpop.permute.xlu0 %2247
        %v2251 = vsel %vm1258, %v2220, 0
        %2253 = vmatpush.msra.mxu0 0.0
        %2254 = vmatpush.msra.mxu0 0.0
        %2255 = vmatpush.msra.mxu0 0.0
        %2256 = vmatpush.msra.mxu0 0.0
        %2257 = vmatpush.msra.mxu0 0.0
        %2258 = vmatpush.msra.mxu0 0.0
        %2259 = vmatpush.msra.mxu0 0.0
        %2260 = vmatpush.msra.mxu0 0.0
        %2261 = vmatpush.msra.mxu0 0.0
        %2262 = vmatpush.msra.mxu0 0.0
        %2263 = vmatpush.msra.mxu0 0.0
        %2264 = vmatpush.msra.mxu0 0.0
        %2265 = vmatpush.msra.mxu0 0.0
        %2266 = vmatpush.msra.mxu0 0.0
        %2267 = vmatpush.msra.mxu0 0.0
        %2268 = vmatpush.msra.mxu0 %v2248
        %2269 = vmatmul.f32.gmra.mxu0 %v2251
        %v2270 = vpop.f32.mrf.mxu0
        %v2271 = vadd.f32 0.0, %v2270
        %2272 = vdwg.mxu0
        %v2273 = vpack.c.bf16 %v2271, %v2245
        %v2276 = vunpack.c.l.b16 %v1199
        %v2277 = vunpack.c.l.b16 %v1200
        %v2278 = vpack.c.b16 %v2277, %v2276
        %v2281 = vsel %vm1203, %v2273, 0
        %2283 = vmatpush.bf16.msra.mxu0 0
        %2284 = vmatpush.bf16.msra.mxu0 0
        %2285 = vmatpush.bf16.msra.mxu0 0
        %2286 = vmatpush.bf16.msra.mxu0 0
        %2287 = vmatpush.bf16.msra.mxu0 0
        %2288 = vmatpush.bf16.msra.mxu0 0
        %2289 = vmatpush.bf16.msra.mxu0 0
        %2290 = vmatpush.bf16.msra.mxu0 %v2278
        %2291 = vmatmul.bf16.gmra.mxu0 %v2281
        %v2292 = vpop.f32.mrf.mxu0
        %v2293 = vadd.f32 0.0, %v2292
        %v2294 = vpop.f32.mrf.mxu0
        %v2295 = vadd.f32 0.0, %v2294
        %2296 = vdwg.mxu0
        %v2297 = vadd.f32 %v2139, %v2293
        %v2298 = vadd.f32 %v2140, %v2295
        %2299 = vrot.lane.b32.xlu0 %v1155, 16
        %v2300 = vpop.permute.xlu0 %2299
        %2301 = vrot.lane.b32.xlu0 %v1169, 16
        %v2302 = vpop.permute.xlu0 %2301
        %v2303 = vsel %vm1203, %v2300, 0
        %v2305 = vsel %vm1203, %v2302, 0
        %2307 = vmatpush.xpose.msra.mxu0 0.0
        %2308 = vmatpush.xpose.msra.mxu0 0.0
        %2309 = vmatpush.xpose.msra.mxu0 0.0
        %2310 = vmatpush.xpose.msra.mxu0 0.0
        %2311 = vmatpush.xpose.msra.mxu0 0.0
        %2312 = vmatpush.xpose.msra.mxu0 0.0
        %2313 = vmatpush.xpose.msra.mxu0 0.0
        %2314 = vmatpush.xpose.msra.mxu0 0.0
        %2315 = vmatpush.xpose.msra.mxu0 0.0
        %2316 = vmatpush.xpose.msra.mxu0 0.0
        %2317 = vmatpush.xpose.msra.mxu0 0.0
        %2318 = vmatpush.xpose.msra.mxu0 0.0
        %2319 = vmatpush.xpose.msra.mxu0 0.0
        %2320 = vmatpush.xpose.msra.mxu0 0.0
        %2321 = vmatpush.xpose.msra.mxu0 0.0
        %2322 = vmatpush.xpose.msra.mxu0 %v2305
        %2323 = vmatmul.f32.gmra.mxu0 %v2303
        %v2324 = vpop.f32.mrf.mxu0
        %v2325 = vadd.f32 0.0, %v2324
        %2326 = vdwg.mxu0
        %2327 = vrot.lane.b32.xlu0 %v1157, 16
        %v2328 = vpop.permute.xlu0 %2327
        %2329 = vrot.lane.b32.xlu0 %v1171, 16
        %v2330 = vpop.permute.xlu0 %2329
        %v2331 = vsel %vm1203, %v2328, 0
        %v2333 = vsel %vm1203, %v2330, 0
        %2335 = vmatpush.xpose.msra.mxu0 0.0
        %2336 = vmatpush.xpose.msra.mxu0 0.0
        %2337 = vmatpush.xpose.msra.mxu0 0.0
        %2338 = vmatpush.xpose.msra.mxu0 0.0
        %2339 = vmatpush.xpose.msra.mxu0 0.0
        %2340 = vmatpush.xpose.msra.mxu0 0.0
        %2341 = vmatpush.xpose.msra.mxu0 0.0
        %2342 = vmatpush.xpose.msra.mxu0 0.0
        %2343 = vmatpush.xpose.msra.mxu0 0.0
        %2344 = vmatpush.xpose.msra.mxu0 0.0
        %2345 = vmatpush.xpose.msra.mxu0 0.0
        %2346 = vmatpush.xpose.msra.mxu0 0.0
        %2347 = vmatpush.xpose.msra.mxu0 0.0
        %2348 = vmatpush.xpose.msra.mxu0 0.0
        %2349 = vmatpush.xpose.msra.mxu0 0.0
        %2350 = vmatpush.xpose.msra.mxu0 %v2333
        %2351 = vmatmul.f32.gmra.mxu0 %v2331
        %v2352 = vpop.f32.mrf.mxu0
        %v2353 = vadd.f32 0.0, %v2352
        %2354 = vdwg.mxu0
        %v2355 = vmul.f32 %v2325, 0.25
        %v2356 = vmul.f32 %v2353, 0.25
        %v2357 = vsel %vm1258, %v2355, -inf
        %2358 = vmax.xlane.f32.xlu0 %v2357
        %v2359 = vpop.xlane.xlu0 %2358
        %v2360 = vsel %vm1258, %v2356, -inf
        %2361 = vmax.xlane.f32.xlu0 %v2360
        %v2362 = vpop.xlane.xlu0 %2361
        %v2363 = vsub.f32 %v2355, %v2359
        %v2364 = vsub.f32 %v2356, %v2362
        %v2365 = vmul.f32 %v2363, 1.442695
        %v2366 = vpow.pop %v2365
        %v2367 = vmul.f32 %v2364, 1.442695
        %v2368 = vpow.pop %v2367
        %v2369 = vsel %vm1258, %v2366, 0.0
        %2370 = vadd.xlane.f32.xlu0 %v2369
        %v2371 = vpop.xlane.xlu0 %2370
        %v2372 = vsel %vm1258, %v2368, 0.0
        %2373 = vadd.xlane.f32.xlu0 %v2372
        %v2374 = vpop.xlane.xlu0 %2373
        %v2375 = vrcp.pop %v2371
        %v2376 = vrcp.pop %v2374
        %v2377 = vmul.f32 %v2366, %v2375
        %v2378 = vmul.f32 %v2368, %v2376
        %2379 = vrot.lane.b32.xlu0 %v1183, 16
        %v2380 = vpop.permute.xlu0 %2379
        %v2383 = vsel %vm1258, %v2377, 0
        %2385 = vmatpush.msra.mxu0 0.0
        %2386 = vmatpush.msra.mxu0 0.0
        %2387 = vmatpush.msra.mxu0 0.0
        %2388 = vmatpush.msra.mxu0 0.0
        %2389 = vmatpush.msra.mxu0 0.0
        %2390 = vmatpush.msra.mxu0 0.0
        %2391 = vmatpush.msra.mxu0 0.0
        %2392 = vmatpush.msra.mxu0 0.0
        %2393 = vmatpush.msra.mxu0 0.0
        %2394 = vmatpush.msra.mxu0 0.0
        %2395 = vmatpush.msra.mxu0 0.0
        %2396 = vmatpush.msra.mxu0 0.0
        %2397 = vmatpush.msra.mxu0 0.0
        %2398 = vmatpush.msra.mxu0 0.0
        %2399 = vmatpush.msra.mxu0 0.0
        %2400 = vmatpush.msra.mxu0 %v2380
        %2401 = vmatmul.f32.gmra.mxu0 %v2383
        %v2402 = vpop.f32.mrf.mxu0
        %v2403 = vadd.f32 0.0, %v2402
        %2404 = vdwg.mxu0
        %2405 = vrot.lane.b32.xlu0 %v1185, 16
        %v2406 = vpop.permute.xlu0 %2405
        %v2409 = vsel %vm1258, %v2378, 0
        %2411 = vmatpush.msra.mxu0 0.0
        %2412 = vmatpush.msra.mxu0 0.0
        %2413 = vmatpush.msra.mxu0 0.0
        %2414 = vmatpush.msra.mxu0 0.0
        %2415 = vmatpush.msra.mxu0 0.0
        %2416 = vmatpush.msra.mxu0 0.0
        %2417 = vmatpush.msra.mxu0 0.0
        %2418 = vmatpush.msra.mxu0 0.0
        %2419 = vmatpush.msra.mxu0 0.0
        %2420 = vmatpush.msra.mxu0 0.0
        %2421 = vmatpush.msra.mxu0 0.0
        %2422 = vmatpush.msra.mxu0 0.0
        %2423 = vmatpush.msra.mxu0 0.0
        %2424 = vmatpush.msra.mxu0 0.0
        %2425 = vmatpush.msra.mxu0 0.0
        %2426 = vmatpush.msra.mxu0 %v2406
        %2427 = vmatmul.f32.gmra.mxu0 %v2409
        %v2428 = vpop.f32.mrf.mxu0
        %v2429 = vadd.f32 0.0, %v2428
        %2430 = vdwg.mxu0
        %v2431 = vpack.c.bf16 %v2429, %v2403
        %v2434 = vunpack.c.l.b16 %v1201
        %v2435 = vunpack.c.l.b16 %v1202
        %v2436 = vpack.c.b16 %v2435, %v2434
        %v2439 = vsel %vm1203, %v2431, 0
        %2441 = vmatpush.bf16.msra.mxu0 0
        %2442 = vmatpush.bf16.msra.mxu0 0
        %2443 = vmatpush.bf16.msra.mxu0 0
        %2444 = vmatpush.bf16.msra.mxu0 0
        %2445 = vmatpush.bf16.msra.mxu0 0
        %2446 = vmatpush.bf16.msra.mxu0 0
        %2447 = vmatpush.bf16.msra.mxu0 0
        %2448 = vmatpush.bf16.msra.mxu0 %v2436
        %2449 = vmatmul.bf16.gmra.mxu0 %v2439
        %v2450 = vpop.f32.mrf.mxu0
        %v2451 = vadd.f32 0.0, %v2450
        %v2452 = vpop.f32.mrf.mxu0
        %v2453 = vadd.f32 0.0, %v2452
        %2454 = vdwg.mxu0
        %v2455 = vadd.f32 %v2297, %v2451
        %v2456 = vadd.f32 %v2298, %v2453
        %v2457 = vld [vmem:[%s781] sm:$0x1]
        %v2459 = vperm.slane %v2457, 0
        %v2461 = vadd.f32 %v2455, %v2459
        %v2462 = vadd.f32 %v2456, %v2459
        %v2463 = vadd.f32 %v974, %v2461
        %v2464 = vadd.f32 %v975, %v2462
        %v2465 = vld [vmem:[%s790] sm:$0x1]
        %v2466 = vld [vmem:[%s799] sm:$0x1]
        %2467 = vadd.xlane.f32.xlu0 %v2463
        %v2468 = vpop.xlane.xlu0 %2467
        %2469 = vadd.xlane.f32.xlu0 %v2464
        %v2470 = vpop.xlane.xlu0 %2469
        %v2471 = vrcp.pop 128.0
        %v2472 = vmul.f32 128.0, %v2471
        %v2473 = vsub.f32 1.0, %v2472
        %v2474 = vmul.f32 %v2471, %v2473
        %v2475 = vadd.f32 %v2471, %v2474
        %vm2476 = vweird.f32 %v2471
        %v2477 = vsel %vm2476, %v2471, %v2475
        %v2478 = vmul.f32 %v2468, %v2477
        %v2479 = vmul.f32 %v2470, %v2477
        %v2480 = vsub.f32 %v2463, %v2478
        %v2481 = vsub.f32 %v2464, %v2479
        %v2482 = vmul.f32 %v2480, %v2480
        %v2483 = vmul.f32 %v2481, %v2481
        %2484 = vadd.xlane.f32.xlu0 %v2482
        %v2485 = vpop.xlane.xlu0 %2484
        %2486 = vadd.xlane.f32.xlu0 %v2483
        %v2487 = vpop.xlane.xlu0 %2486
        %v2488 = vmul.f32 %v2485, %v2477
        %v2489 = vmul.f32 %v2487, %v2477
        %v2490 = vadd.f32 %v2488, 1e-05
        %v2491 = vadd.f32 %v2489, 1e-05
        %v2492 = vrsqrt.pop %v2490
        %v2493 = vmul.f32 %v2492, %v2490
        %v2494 = vmul.f32 %v2493, %v2492
        %v2495 = vmul.f32 0.5, %v2494
        %v2496 = vsub.f32 1.5, %v2495
        %v2497 = vmul.f32 %v2492, %v2496
        %vm2498 = vweird.f32 %v2490
        %vm2499 = vweird.f32 %v2492
        %vm2500 = vmor %vm2498, %vm2499
        %v2501 = vsel %vm2500, %v2492, %v2497
        %v2502 = vrsqrt.pop %v2491
        %v2503 = vmul.f32 %v2502, %v2491
        %v2504 = vmul.f32 %v2503, %v2502
        %v2505 = vmul.f32 0.5, %v2504
        %v2506 = vsub.f32 1.5, %v2505
        %v2507 = vmul.f32 %v2502, %v2506
        %vm2508 = vweird.f32 %v2491
        %vm2509 = vweird.f32 %v2502
        %vm2510 = vmor %vm2508, %vm2509
        %v2511 = vsel %vm2510, %v2502, %v2507
        %v2512 = vmul.f32 %v2480, %v2501
        %v2513 = vmul.f32 %v2481, %v2511
        %v2515 = vperm.slane %v2465, 0
        %v2517 = vmul.f32 %v2512, %v2515
        %v2518 = vmul.f32 %v2513, %v2515
        %v2520 = vperm.slane %v2466, 0
        %v2522 = vadd.f32 %v2517, %v2520
        %v2523 = vadd.f32 %v2518, %v2520
        %v2524 = vpack.c.bf16 %v2523, %v2522
        %v2525 = vld [vmem:[%s809] sm:$0xff]
        %v2526 = vld [vmem:[%s809 + $0x8] sm:$0xff]
        %v2527 = vld [vmem:[%s809 + $0x40] sm:$0xff]
        %v2528 = vld [vmem:[%s809 + $0x48] sm:$0xff]
        %v2529 = vld [vmem:[%s809 + $0x80] sm:$0xff]
        %v2530 = vld [vmem:[%s809 + $0x88] sm:$0xff]
        %v2531 = vld [vmem:[%s809 + $0xc0] sm:$0xff]
        %v2532 = vld [vmem:[%s809 + $0xc8] sm:$0xff]
        %v2533 = vld [vmem:[%s809 + $0x100] sm:$0xff]
        %v2534 = vld [vmem:[%s809 + $0x108] sm:$0xff]
        %v2535 = vld [vmem:[%s809 + $0x140] sm:$0xff]
        %v2536 = vld [vmem:[%s809 + $0x148] sm:$0xff]
        %v2537 = vld [vmem:[%s809 + $0x180] sm:$0xff]
        %v2538 = vld [vmem:[%s809 + $0x188] sm:$0xff]
        %v2539 = vld [vmem:[%s809 + $0x1c0] sm:$0xff]
        %v2540 = vld [vmem:[%s809 + $0x1c8] sm:$0xff]
        %v2541 = vld [vmem:[%s809 + $0x200] sm:$0xff]
        %v2542 = vld [vmem:[%s809 + $0x208] sm:$0xff]
        %v2543 = vld [vmem:[%s809 + $0x240] sm:$0xff]
        %v2544 = vld [vmem:[%s809 + $0x248] sm:$0xff]
        %v2545 = vld [vmem:[%s809 + $0x280] sm:$0xff]
        %v2546 = vld [vmem:[%s809 + $0x288] sm:$0xff]
        %v2547 = vld [vmem:[%s809 + $0x2c0] sm:$0xff]
        %v2548 = vld [vmem:[%s809 + $0x2c8] sm:$0xff]
        %v2549 = vld [vmem:[%s809 + $0x300] sm:$0xff]
        %v2550 = vld [vmem:[%s809 + $0x308] sm:$0xff]
        %v2551 = vld [vmem:[%s809 + $0x340] sm:$0xff]
        %v2552 = vld [vmem:[%s809 + $0x348] sm:$0xff]
        %v2553 = vld [vmem:[%s809 + $0x380] sm:$0xff]
        %v2554 = vld [vmem:[%s809 + $0x388] sm:$0xff]
        %v2555 = vld [vmem:[%s809 + $0x3c0] sm:$0xff]
        %v2556 = vld [vmem:[%s809 + $0x3c8] sm:$0xff]
        %v2557 = vld [vmem:[%s819] sm:$0xf]
        %v2559 = vperm.slane %v2557, 0
        %v2560 = vperm.slane %v2557, 1
        %v2561 = vperm.slane %v2557, 2
        %v2562 = vperm.slane %v2557, 3
        %v2599 = vunpack.c.l.b16 %v2525
        %v2600 = vunpack.c.h.b16 %v2525
        %v2601 = vunpack.c.l.b16 %v2526
        %v2602 = vunpack.c.h.b16 %v2526
        %v2603 = vunpack.c.l.b16 %v2527
        %v2604 = vunpack.c.h.b16 %v2527
        %v2605 = vunpack.c.l.b16 %v2528
        %v2606 = vunpack.c.h.b16 %v2528
        %v2607 = vunpack.c.l.b16 %v2529
        %v2608 = vunpack.c.h.b16 %v2529
        %v2609 = vunpack.c.l.b16 %v2530
        %v2610 = vunpack.c.h.b16 %v2530
        %v2611 = vunpack.c.l.b16 %v2531
        %v2612 = vunpack.c.h.b16 %v2531
        %v2613 = vunpack.c.l.b16 %v2532
        %v2614 = vunpack.c.h.b16 %v2532
        %v2615 = vunpack.c.l.b16 %v2533
        %v2616 = vunpack.c.h.b16 %v2533
        %v2617 = vunpack.c.l.b16 %v2534
        %v2618 = vunpack.c.h.b16 %v2534
        %v2619 = vunpack.c.l.b16 %v2535
        %v2620 = vunpack.c.h.b16 %v2535
        %v2621 = vunpack.c.l.b16 %v2536
        %v2622 = vunpack.c.h.b16 %v2536
        %v2623 = vunpack.c.l.b16 %v2537
        %v2624 = vunpack.c.h.b16 %v2537
        %v2625 = vunpack.c.l.b16 %v2538
        %v2626 = vunpack.c.h.b16 %v2538
        %v2627 = vunpack.c.l.b16 %v2539
        %v2628 = vunpack.c.h.b16 %v2539
        %v2629 = vunpack.c.l.b16 %v2540
        %v2630 = vunpack.c.h.b16 %v2540
        %v2631 = vunpack.c.l.b16 %v2541
        %v2632 = vunpack.c.h.b16 %v2541
        %v2633 = vunpack.c.l.b16 %v2542
        %v2634 = vunpack.c.h.b16 %v2542
        %v2635 = vunpack.c.l.b16 %v2543
        %v2636 = vunpack.c.h.b16 %v2543
        %v2637 = vunpack.c.l.b16 %v2544
        %v2638 = vunpack.c.h.b16 %v2544
        %v2639 = vunpack.c.l.b16 %v2545
        %v2640 = vunpack.c.h.b16 %v2545
        %v2641 = vunpack.c.l.b16 %v2546
        %v2642 = vunpack.c.h.b16 %v2546
        %v2643 = vunpack.c.l.b16 %v2547
        %v2644 = vunpack.c.h.b16 %v2547
        %v2645 = vunpack.c.l.b16 %v2548
        %v2646 = vunpack.c.h.b16 %v2548
        %v2647 = vunpack.c.l.b16 %v2549
        %v2648 = vunpack.c.h.b16 %v2549
        %v2649 = vunpack.c.l.b16 %v2550
        %v2650 = vunpack.c.h.b16 %v2550
        %v2651 = vunpack.c.l.b16 %v2551
        %v2652 = vunpack.c.h.b16 %v2551
        %v2653 = vunpack.c.l.b16 %v2552
        %v2654 = vunpack.c.h.b16 %v2552
        %v2655 = vunpack.c.l.b16 %v2553
        %v2656 = vunpack.c.h.b16 %v2553
        %v2657 = vunpack.c.l.b16 %v2554
        %v2658 = vunpack.c.h.b16 %v2554
        %v2659 = vunpack.c.l.b16 %v2555
        %v2660 = vunpack.c.h.b16 %v2555
        %v2661 = vunpack.c.l.b16 %v2556
        %v2662 = vunpack.c.h.b16 %v2556
        %v2663 = vpack.c.b16 %v2603, %v2599
        %v2664 = vpack.c.b16 %v2604, %v2600
        %v2665 = vpack.c.b16 %v2605, %v2601
        %v2666 = vpack.c.b16 %v2606, %v2602
        %v2667 = vpack.c.b16 %v2611, %v2607
        %v2668 = vpack.c.b16 %v2612, %v2608
        %v2669 = vpack.c.b16 %v2613, %v2609
        %v2670 = vpack.c.b16 %v2614, %v2610
        %v2671 = vpack.c.b16 %v2619, %v2615
        %v2672 = vpack.c.b16 %v2620, %v2616
        %v2673 = vpack.c.b16 %v2621, %v2617
        %v2674 = vpack.c.b16 %v2622, %v2618
        %v2675 = vpack.c.b16 %v2627, %v2623
        %v2676 = vpack.c.b16 %v2628, %v2624
        %v2677 = vpack.c.b16 %v2629, %v2625
        %v2678 = vpack.c.b16 %v2630, %v2626
        %v2679 = vpack.c.b16 %v2635, %v2631
        %v2680 = vpack.c.b16 %v2636, %v2632
        %v2681 = vpack.c.b16 %v2637, %v2633
        %v2682 = vpack.c.b16 %v2638, %v2634
        %v2683 = vpack.c.b16 %v2643, %v2639
        %v2684 = vpack.c.b16 %v2644, %v2640
        %v2685 = vpack.c.b16 %v2645, %v2641
        %v2686 = vpack.c.b16 %v2646, %v2642
        %v2687 = vpack.c.b16 %v2651, %v2647
        %v2688 = vpack.c.b16 %v2652, %v2648
        %v2689 = vpack.c.b16 %v2653, %v2649
        %v2690 = vpack.c.b16 %v2654, %v2650
        %v2691 = vpack.c.b16 %v2659, %v2655
        %v2692 = vpack.c.b16 %v2660, %v2656
        %v2693 = vpack.c.b16 %v2661, %v2657
        %v2694 = vpack.c.b16 %v2662, %v2658
        %2727 = vmatpush.bf16.msra.mxu0 %v2691
        %2728 = vmatpush.bf16.msra.mxu0 %v2687
        %2729 = vmatpush.bf16.msra.mxu0 %v2683
        %2730 = vmatpush.bf16.msra.mxu0 %v2679
        %2731 = vmatpush.bf16.msra.mxu0 %v2675
        %2732 = vmatpush.bf16.msra.mxu0 %v2671
        %2733 = vmatpush.bf16.msra.mxu0 %v2667
        %2734 = vmatpush.bf16.msra.mxu0 %v2663
        %2735 = vmatmul.bf16.gmra.mxu0 %v2524
        %v2736 = vpop.f32.mrf.mxu0
        %v2737 = vadd.f32 %v2559, %v2736
        %v2738 = vpop.f32.mrf.mxu0
        %v2739 = vadd.f32 %v2559, %v2738
        %2740 = vdwg.mxu0
        %2741 = vmatpush.bf16.msra.mxu0 %v2692
        %2742 = vmatpush.bf16.msra.mxu0 %v2688
        %2743 = vmatpush.bf16.msra.mxu0 %v2684
        %2744 = vmatpush.bf16.msra.mxu0 %v2680
        %2745 = vmatpush.bf16.msra.mxu0 %v2676
        %2746 = vmatpush.bf16.msra.mxu0 %v2672
        %2747 = vmatpush.bf16.msra.mxu0 %v2668
        %2748 = vmatpush.bf16.msra.mxu0 %v2664
        %2749 = vmatmul.bf16.gmra.mxu0 %v2524
        %v2750 = vpop.f32.mrf.mxu0
        %v2751 = vadd.f32 %v2560, %v2750
        %v2752 = vpop.f32.mrf.mxu0
        %v2753 = vadd.f32 %v2560, %v2752
        %2754 = vdwg.mxu0
        %2755 = vmatpush.bf16.msra.mxu0 %v2693
        %2756 = vmatpush.bf16.msra.mxu0 %v2689
        %2757 = vmatpush.bf16.msra.mxu0 %v2685
        %2758 = vmatpush.bf16.msra.mxu0 %v2681
        %2759 = vmatpush.bf16.msra.mxu0 %v2677
        %2760 = vmatpush.bf16.msra.mxu0 %v2673
        %2761 = vmatpush.bf16.msra.mxu0 %v2669
        %2762 = vmatpush.bf16.msra.mxu0 %v2665
        %2763 = vmatmul.bf16.gmra.mxu0 %v2524
        %v2764 = vpop.f32.mrf.mxu0
        %v2765 = vadd.f32 %v2561, %v2764
        %v2766 = vpop.f32.mrf.mxu0
        %v2767 = vadd.f32 %v2561, %v2766
        %2768 = vdwg.mxu0
        %2769 = vmatpush.bf16.msra.mxu0 %v2694
        %2770 = vmatpush.bf16.msra.mxu0 %v2690
        %2771 = vmatpush.bf16.msra.mxu0 %v2686
        %2772 = vmatpush.bf16.msra.mxu0 %v2682
        %2773 = vmatpush.bf16.msra.mxu0 %v2678
        %2774 = vmatpush.bf16.msra.mxu0 %v2674
        %2775 = vmatpush.bf16.msra.mxu0 %v2670
        %2776 = vmatpush.bf16.msra.mxu0 %v2666
        %2777 = vmatmul.bf16.gmra.mxu0 %v2524
        %v2778 = vpop.f32.mrf.mxu0
        %v2779 = vadd.f32 %v2562, %v2778
        %v2780 = vpop.f32.mrf.mxu0
        %v2781 = vadd.f32 %v2562, %v2780
        %2782 = vdwg.mxu0
        %v2783 = vmax.f32 %v2737, 0.0
        %v2784 = vmax.f32 %v2751, 0.0
        %v2785 = vmax.f32 %v2765, 0.0
        %v2786 = vmax.f32 %v2779, 0.0
        %v2787 = vmax.f32 %v2739, 0.0
        %v2788 = vmax.f32 %v2753, 0.0
        %v2789 = vmax.f32 %v2767, 0.0
        %v2790 = vmax.f32 %v2781, 0.0
        %v2791 = vpack.c.bf16 %v2787, %v2783
        %v2792 = vpack.c.bf16 %v2788, %v2784
        %v2793 = vpack.c.bf16 %v2789, %v2785
        %v2794 = vpack.c.bf16 %v2790, %v2786
        %v2795 = vld [vmem:[%s829] sm:$0xf]
        %v2796 = vld [vmem:[%s829 + $0x4] sm:$0xf]
        %v2797 = vld [vmem:[%s829 + $0x8] sm:$0xf]
        %v2798 = vld [vmem:[%s829 + $0xc] sm:$0xf]
        %v2799 = vld [vmem:[%s829 + $0x10] sm:$0xf]
        %v2800 = vld [vmem:[%s829 + $0x14] sm:$0xf]
        %v2801 = vld [vmem:[%s829 + $0x18] sm:$0xf]
        %v2802 = vld [vmem:[%s829 + $0x1c] sm:$0xf]
        %v2803 = vld [vmem:[%s829 + $0x20] sm:$0xf]
        %v2804 = vld [vmem:[%s829 + $0x24] sm:$0xf]
        %v2805 = vld [vmem:[%s829 + $0x28] sm:$0xf]
        %v2806 = vld [vmem:[%s829 + $0x2c] sm:$0xf]
        %v2807 = vld [vmem:[%s829 + $0x30] sm:$0xf]
        %v2808 = vld [vmem:[%s829 + $0x34] sm:$0xf]
        %v2809 = vld [vmem:[%s829 + $0x38] sm:$0xf]
        %v2810 = vld [vmem:[%s829 + $0x3c] sm:$0xf]
        %v2811 = vld [vmem:[%s829 + $0x40] sm:$0xf]
        %v2812 = vld [vmem:[%s829 + $0x44] sm:$0xf]
        %v2813 = vld [vmem:[%s829 + $0x48] sm:$0xf]
        %v2814 = vld [vmem:[%s829 + $0x4c] sm:$0xf]
        %v2815 = vld [vmem:[%s829 + $0x50] sm:$0xf]
        %v2816 = vld [vmem:[%s829 + $0x54] sm:$0xf]
        %v2817 = vld [vmem:[%s829 + $0x58] sm:$0xf]
        %v2818 = vld [vmem:[%s829 + $0x5c] sm:$0xf]
        %v2819 = vld [vmem:[%s829 + $0x60] sm:$0xf]
        %v2820 = vld [vmem:[%s829 + $0x64] sm:$0xf]
        %v2821 = vld [vmem:[%s829 + $0x68] sm:$0xf]
        %v2822 = vld [vmem:[%s829 + $0x6c] sm:$0xf]
        %v2823 = vld [vmem:[%s829 + $0x70] sm:$0xf]
        %v2824 = vld [vmem:[%s829 + $0x74] sm:$0xf]
        %v2825 = vld [vmem:[%s829 + $0x78] sm:$0xf]
        %v2826 = vld [vmem:[%s829 + $0x7c] sm:$0xf]
        %v2827 = vld [vmem:[%s829 + $0x80] sm:$0xf]
        %v2828 = vld [vmem:[%s829 + $0x84] sm:$0xf]
        %v2829 = vld [vmem:[%s829 + $0x88] sm:$0xf]
        %v2830 = vld [vmem:[%s829 + $0x8c] sm:$0xf]
        %v2831 = vld [vmem:[%s829 + $0x90] sm:$0xf]
        %v2832 = vld [vmem:[%s829 + $0x94] sm:$0xf]
        %v2833 = vld [vmem:[%s829 + $0x98] sm:$0xf]
        %v2834 = vld [vmem:[%s829 + $0x9c] sm:$0xf]
        %v2835 = vld [vmem:[%s829 + $0xa0] sm:$0xf]
        %v2836 = vld [vmem:[%s829 + $0xa4] sm:$0xf]
        %v2837 = vld [vmem:[%s829 + $0xa8] sm:$0xf]
        %v2838 = vld [vmem:[%s829 + $0xac] sm:$0xf]
        %v2839 = vld [vmem:[%s829 + $0xb0] sm:$0xf]
        %v2840 = vld [vmem:[%s829 + $0xb4] sm:$0xf]
        %v2841 = vld [vmem:[%s829 + $0xb8] sm:$0xf]
        %v2842 = vld [vmem:[%s829 + $0xbc] sm:$0xf]
        %v2843 = vld [vmem:[%s829 + $0xc0] sm:$0xf]
        %v2844 = vld [vmem:[%s829 + $0xc4] sm:$0xf]
        %v2845 = vld [vmem:[%s829 + $0xc8] sm:$0xf]
        %v2846 = vld [vmem:[%s829 + $0xcc] sm:$0xf]
        %v2847 = vld [vmem:[%s829 + $0xd0] sm:$0xf]
        %v2848 = vld [vmem:[%s829 + $0xd4] sm:$0xf]
        %v2849 = vld [vmem:[%s829 + $0xd8] sm:$0xf]
        %v2850 = vld [vmem:[%s829 + $0xdc] sm:$0xf]
        %v2851 = vld [vmem:[%s829 + $0xe0] sm:$0xf]
        %v2852 = vld [vmem:[%s829 + $0xe4] sm:$0xf]
        %v2853 = vld [vmem:[%s829 + $0xe8] sm:$0xf]
        %v2854 = vld [vmem:[%s829 + $0xec] sm:$0xf]
        %v2855 = vld [vmem:[%s829 + $0xf0] sm:$0xf]
        %v2856 = vld [vmem:[%s829 + $0xf4] sm:$0xf]
        %v2857 = vld [vmem:[%s829 + $0xf8] sm:$0xf]
        %v2858 = vld [vmem:[%s829 + $0xfc] sm:$0xf]
        %v2859 = vld [vmem:[%s809 + $0x10] sm:$0xff]
        %v2860 = vld [vmem:[%s809 + $0x18] sm:$0xff]
        %v2861 = vld [vmem:[%s809 + $0x50] sm:$0xff]
        %v2862 = vld [vmem:[%s809 + $0x58] sm:$0xff]
        %v2863 = vld [vmem:[%s809 + $0x90] sm:$0xff]
        %v2864 = vld [vmem:[%s809 + $0x98] sm:$0xff]
        %v2865 = vld [vmem:[%s809 + $0xd0] sm:$0xff]
        %v2866 = vld [vmem:[%s809 + $0xd8] sm:$0xff]
        %v2867 = vld [vmem:[%s809 + $0x110] sm:$0xff]
        %v2868 = vld [vmem:[%s809 + $0x118] sm:$0xff]
        %v2869 = vld [vmem:[%s809 + $0x150] sm:$0xff]
        %v2870 = vld [vmem:[%s809 + $0x158] sm:$0xff]
        %v2871 = vld [vmem:[%s809 + $0x190] sm:$0xff]
        %v2872 = vld [vmem:[%s809 + $0x198] sm:$0xff]
        %v2873 = vld [vmem:[%s809 + $0x1d0] sm:$0xff]
        %v2874 = vld [vmem:[%s809 + $0x1d8] sm:$0xff]
        %v2875 = vld [vmem:[%s809 + $0x210] sm:$0xff]
        %v2876 = vld [vmem:[%s809 + $0x218] sm:$0xff]
        %v2877 = vld [vmem:[%s809 + $0x250] sm:$0xff]
        %v2878 = vld [vmem:[%s809 + $0x258] sm:$0xff]
        %v2879 = vld [vmem:[%s809 + $0x290] sm:$0xff]
        %v2880 = vld [vmem:[%s809 + $0x298] sm:$0xff]
        %v2881 = vld [vmem:[%s809 + $0x2d0] sm:$0xff]
        %v2882 = vld [vmem:[%s809 + $0x2d8] sm:$0xff]
        %v2883 = vld [vmem:[%s809 + $0x310] sm:$0xff]
        %v2884 = vld [vmem:[%s809 + $0x318] sm:$0xff]
        %v2885 = vld [vmem:[%s809 + $0x350] sm:$0xff]
        %v2886 = vld [vmem:[%s809 + $0x358] sm:$0xff]
        %v2887 = vld [vmem:[%s809 + $0x390] sm:$0xff]
        %v2888 = vld [vmem:[%s809 + $0x398] sm:$0xff]
        %v2889 = vld [vmem:[%s809 + $0x3d0] sm:$0xff]
        %v2890 = vld [vmem:[%s809 + $0x3d8] sm:$0xff]
        %v2891 = vld [vmem:[%s819 + $0x4] sm:$0xf]
        %v2893 = vperm.slane %v2891, 0
        %v2894 = vperm.slane %v2891, 1
        %v2895 = vperm.slane %v2891, 2
        %v2896 = vperm.slane %v2891, 3
        %v2933 = vunpack.c.l.b16 %v2859
        %v2934 = vunpack.c.h.b16 %v2859
        %v2935 = vunpack.c.l.b16 %v2860
        %v2936 = vunpack.c.h.b16 %v2860
        %v2937 = vunpack.c.l.b16 %v2861
        %v2938 = vunpack.c.h.b16 %v2861
        %v2939 = vunpack.c.l.b16 %v2862
        %v2940 = vunpack.c.h.b16 %v2862
        %v2941 = vunpack.c.l.b16 %v2863
        %v2942 = vunpack.c.h.b16 %v2863
        %v2943 = vunpack.c.l.b16 %v2864
        %v2944 = vunpack.c.h.b16 %v2864
        %v2945 = vunpack.c.l.b16 %v2865
        %v2946 = vunpack.c.h.b16 %v2865
        %v2947 = vunpack.c.l.b16 %v2866
        %v2948 = vunpack.c.h.b16 %v2866
        %v2949 = vunpack.c.l.b16 %v2867
        %v2950 = vunpack.c.h.b16 %v2867
        %v2951 = vunpack.c.l.b16 %v2868
        %v2952 = vunpack.c.h.b16 %v2868
        %v2953 = vunpack.c.l.b16 %v2869
        %v2954 = vunpack.c.h.b16 %v2869
        %v2955 = vunpack.c.l.b16 %v2870
        %v2956 = vunpack.c.h.b16 %v2870
        %v2957 = vunpack.c.l.b16 %v2871
        %v2958 = vunpack.c.h.b16 %v2871
        %v2959 = vunpack.c.l.b16 %v2872
        %v2960 = vunpack.c.h.b16 %v2872
        %v2961 = vunpack.c.l.b16 %v2873
        %v2962 = vunpack.c.h.b16 %v2873
        %v2963 = vunpack.c.l.b16 %v2874
        %v2964 = vunpack.c.h.b16 %v2874
        %v2965 = vunpack.c.l.b16 %v2875
        %v2966 = vunpack.c.h.b16 %v2875
        %v2967 = vunpack.c.l.b16 %v2876
        %v2968 = vunpack.c.h.b16 %v2876
        %v2969 = vunpack.c.l.b16 %v2877
        %v2970 = vunpack.c.h.b16 %v2877
        %v2971 = vunpack.c.l.b16 %v2878
        %v2972 = vunpack.c.h.b16 %v2878
        %v2973 = vunpack.c.l.b16 %v2879
        %v2974 = vunpack.c.h.b16 %v2879
        %v2975 = vunpack.c.l.b16 %v2880
        %v2976 = vunpack.c.h.b16 %v2880
        %v2977 = vunpack.c.l.b16 %v2881
        %v2978 = vunpack.c.h.b16 %v2881
        %v2979 = vunpack.c.l.b16 %v2882
        %v2980 = vunpack.c.h.b16 %v2882
        %v2981 = vunpack.c.l.b16 %v2883
        %v2982 = vunpack.c.h.b16 %v2883
        %v2983 = vunpack.c.l.b16 %v2884
        %v2984 = vunpack.c.h.b16 %v2884
        %v2985 = vunpack.c.l.b16 %v2885
        %v2986 = vunpack.c.h.b16 %v2885
        %v2987 = vunpack.c.l.b16 %v2886
        %v2988 = vunpack.c.h.b16 %v2886
        %v2989 = vunpack.c.l.b16 %v2887
        %v2990 = vunpack.c.h.b16 %v2887
        %v2991 = vunpack.c.l.b16 %v2888
        %v2992 = vunpack.c.h.b16 %v2888
        %v2993 = vunpack.c.l.b16 %v2889
        %v2994 = vunpack.c.h.b16 %v2889
        %v2995 = vunpack.c.l.b16 %v2890
        %v2996 = vunpack.c.h.b16 %v2890
        %v2997 = vpack.c.b16 %v2937, %v2933
        %v2998 = vpack.c.b16 %v2938, %v2934
        %v2999 = vpack.c.b16 %v2939, %v2935
        %v3000 = vpack.c.b16 %v2940, %v2936
        %v3001 = vpack.c.b16 %v2945, %v2941
        %v3002 = vpack.c.b16 %v2946, %v2942
        %v3003 = vpack.c.b16 %v2947, %v2943
        %v3004 = vpack.c.b16 %v2948, %v2944
        %v3005 = vpack.c.b16 %v2953, %v2949
        %v3006 = vpack.c.b16 %v2954, %v2950
        %v3007 = vpack.c.b16 %v2955, %v2951
        %v3008 = vpack.c.b16 %v2956, %v2952
        %v3009 = vpack.c.b16 %v2961, %v2957
        %v3010 = vpack.c.b16 %v2962, %v2958
        %v3011 = vpack.c.b16 %v2963, %v2959
        %v3012 = vpack.c.b16 %v2964, %v2960
        %v3013 = vpack.c.b16 %v2969, %v2965
        %v3014 = vpack.c.b16 %v2970, %v2966
        %v3015 = vpack.c.b16 %v2971, %v2967
        %v3016 = vpack.c.b16 %v2972, %v2968
        %v3017 = vpack.c.b16 %v2977, %v2973
        %v3018 = vpack.c.b16 %v2978, %v2974
        %v3019 = vpack.c.b16 %v2979, %v2975
        %v3020 = vpack.c.b16 %v2980, %v2976
        %v3021 = vpack.c.b16 %v2985, %v2981
        %v3022 = vpack.c.b16 %v2986, %v2982
        %v3023 = vpack.c.b16 %v2987, %v2983
        %v3024 = vpack.c.b16 %v2988, %v2984
        %v3025 = vpack.c.b16 %v2993, %v2989
        %v3026 = vpack.c.b16 %v2994, %v2990
        %v3027 = vpack.c.b16 %v2995, %v2991
        %v3028 = vpack.c.b16 %v2996, %v2992
        %3061 = vmatpush.bf16.msra.mxu0 %v3025
        %3062 = vmatpush.bf16.msra.mxu0 %v3021
        %3063 = vmatpush.bf16.msra.mxu0 %v3017
        %3064 = vmatpush.bf16.msra.mxu0 %v3013
        %3065 = vmatpush.bf16.msra.mxu0 %v3009
        %3066 = vmatpush.bf16.msra.mxu0 %v3005
        %3067 = vmatpush.bf16.msra.mxu0 %v3001
        %3068 = vmatpush.bf16.msra.mxu0 %v2997
        %3069 = vmatmul.bf16.gmra.mxu0 %v2524
        %v3070 = vpop.f32.mrf.mxu0
        %v3071 = vadd.f32 %v2893, %v3070
        %v3072 = vpop.f32.mrf.mxu0
        %v3073 = vadd.f32 %v2893, %v3072
        %3074 = vdwg.mxu0
        %3075 = vmatpush.bf16.msra.mxu0 %v3026
        %3076 = vmatpush.bf16.msra.mxu0 %v3022
        %3077 = vmatpush.bf16.msra.mxu0 %v3018
        %3078 = vmatpush.bf16.msra.mxu0 %v3014
        %3079 = vmatpush.bf16.msra.mxu0 %v3010
        %3080 = vmatpush.bf16.msra.mxu0 %v3006
        %3081 = vmatpush.bf16.msra.mxu0 %v3002
        %3082 = vmatpush.bf16.msra.mxu0 %v2998
        %3083 = vmatmul.bf16.gmra.mxu0 %v2524
        %v3084 = vpop.f32.mrf.mxu0
        %v3085 = vadd.f32 %v2894, %v3084
        %v3086 = vpop.f32.mrf.mxu0
        %v3087 = vadd.f32 %v2894, %v3086
        %3088 = vdwg.mxu0
        %3089 = vmatpush.bf16.msra.mxu0 %v3027
        %3090 = vmatpush.bf16.msra.mxu0 %v3023
        %3091 = vmatpush.bf16.msra.mxu0 %v3019
        %3092 = vmatpush.bf16.msra.mxu0 %v3015
        %3093 = vmatpush.bf16.msra.mxu0 %v3011
        %3094 = vmatpush.bf16.msra.mxu0 %v3007
        %3095 = vmatpush.bf16.msra.mxu0 %v3003
        %3096 = vmatpush.bf16.msra.mxu0 %v2999
        %3097 = vmatmul.bf16.gmra.mxu0 %v2524
        %v3098 = vpop.f32.mrf.mxu0
        %v3099 = vadd.f32 %v2895, %v3098
        %v3100 = vpop.f32.mrf.mxu0
        %v3101 = vadd.f32 %v2895, %v3100
        %3102 = vdwg.mxu0
        %3103 = vmatpush.bf16.msra.mxu0 %v3028
        %3104 = vmatpush.bf16.msra.mxu0 %v3024
        %3105 = vmatpush.bf16.msra.mxu0 %v3020
        %3106 = vmatpush.bf16.msra.mxu0 %v3016
        %3107 = vmatpush.bf16.msra.mxu0 %v3012
        %3108 = vmatpush.bf16.msra.mxu0 %v3008
        %3109 = vmatpush.bf16.msra.mxu0 %v3004
        %3110 = vmatpush.bf16.msra.mxu0 %v3000
        %3111 = vmatmul.bf16.gmra.mxu0 %v2524
        %v3112 = vpop.f32.mrf.mxu0
        %v3113 = vadd.f32 %v2896, %v3112
        %v3114 = vpop.f32.mrf.mxu0
        %v3115 = vadd.f32 %v2896, %v3114
        %3116 = vdwg.mxu0
        %v3117 = vmax.f32 %v3071, 0.0
        %v3118 = vmax.f32 %v3085, 0.0
        %v3119 = vmax.f32 %v3099, 0.0
        %v3120 = vmax.f32 %v3113, 0.0
        %v3121 = vmax.f32 %v3073, 0.0
        %v3122 = vmax.f32 %v3087, 0.0
        %v3123 = vmax.f32 %v3101, 0.0
        %v3124 = vmax.f32 %v3115, 0.0
        %v3125 = vpack.c.bf16 %v3121, %v3117
        %v3126 = vpack.c.bf16 %v3122, %v3118
        %v3127 = vpack.c.bf16 %v3123, %v3119
        %v3128 = vpack.c.bf16 %v3124, %v3120
        %v3129 = vld [vmem:[%s829 + $0x100] sm:$0xf]
        %v3130 = vld [vmem:[%s829 + $0x104] sm:$0xf]
        %v3131 = vld [vmem:[%s829 + $0x108] sm:$0xf]
        %v3132 = vld [vmem:[%s829 + $0x10c] sm:$0xf]
        %v3133 = vld [vmem:[%s829 + $0x110] sm:$0xf]
        %v3134 = vld [vmem:[%s829 + $0x114] sm:$0xf]
        %v3135 = vld [vmem:[%s829 + $0x118] sm:$0xf]
        %v3136 = vld [vmem:[%s829 + $0x11c] sm:$0xf]
        %v3137 = vld [vmem:[%s829 + $0x120] sm:$0xf]
        %v3138 = vld [vmem:[%s829 + $0x124] sm:$0xf]
        %v3139 = vld [vmem:[%s829 + $0x128] sm:$0xf]
        %v3140 = vld [vmem:[%s829 + $0x12c] sm:$0xf]
        %v3141 = vld [vmem:[%s829 + $0x130] sm:$0xf]
        %v3142 = vld [vmem:[%s829 + $0x134] sm:$0xf]
        %v3143 = vld [vmem:[%s829 + $0x138] sm:$0xf]
        %v3144 = vld [vmem:[%s829 + $0x13c] sm:$0xf]
        %v3145 = vld [vmem:[%s829 + $0x140] sm:$0xf]
        %v3146 = vld [vmem:[%s829 + $0x144] sm:$0xf]
        %v3147 = vld [vmem:[%s829 + $0x148] sm:$0xf]
        %v3148 = vld [vmem:[%s829 + $0x14c] sm:$0xf]
        %v3149 = vld [vmem:[%s829 + $0x150] sm:$0xf]
        %v3150 = vld [vmem:[%s829 + $0x154] sm:$0xf]
        %v3151 = vld [vmem:[%s829 + $0x158] sm:$0xf]
        %v3152 = vld [vmem:[%s829 + $0x15c] sm:$0xf]
        %v3153 = vld [vmem:[%s829 + $0x160] sm:$0xf]
        %v3154 = vld [vmem:[%s829 + $0x164] sm:$0xf]
        %v3155 = vld [vmem:[%s829 + $0x168] sm:$0xf]
        %v3156 = vld [vmem:[%s829 + $0x16c] sm:$0xf]
        %v3157 = vld [vmem:[%s829 + $0x170] sm:$0xf]
        %v3158 = vld [vmem:[%s829 + $0x174] sm:$0xf]
        %v3159 = vld [vmem:[%s829 + $0x178] sm:$0xf]
        %v3160 = vld [vmem:[%s829 + $0x17c] sm:$0xf]
        %v3161 = vld [vmem:[%s829 + $0x180] sm:$0xf]
        %v3162 = vld [vmem:[%s829 + $0x184] sm:$0xf]
        %v3163 = vld [vmem:[%s829 + $0x188] sm:$0xf]
        %v3164 = vld [vmem:[%s829 + $0x18c] sm:$0xf]
        %v3165 = vld [vmem:[%s829 + $0x190] sm:$0xf]
        %v3166 = vld [vmem:[%s829 + $0x194] sm:$0xf]
        %v3167 = vld [vmem:[%s829 + $0x198] sm:$0xf]
        %v3168 = vld [vmem:[%s829 + $0x19c] sm:$0xf]
        %v3169 = vld [vmem:[%s829 + $0x1a0] sm:$0xf]
        %v3170 = vld [vmem:[%s829 + $0x1a4] sm:$0xf]
        %v3171 = vld [vmem:[%s829 + $0x1a8] sm:$0xf]
        %v3172 = vld [vmem:[%s829 + $0x1ac] sm:$0xf]
        %v3173 = vld [vmem:[%s829 + $0x1b0] sm:$0xf]
        %v3174 = vld [vmem:[%s829 + $0x1b4] sm:$0xf]
        %v3175 = vld [vmem:[%s829 + $0x1b8] sm:$0xf]
        %v3176 = vld [vmem:[%s829 + $0x1bc] sm:$0xf]
        %v3177 = vld [vmem:[%s829 + $0x1c0] sm:$0xf]
        %v3178 = vld [vmem:[%s829 + $0x1c4] sm:$0xf]
        %v3179 = vld [vmem:[%s829 + $0x1c8] sm:$0xf]
        %v3180 = vld [vmem:[%s829 + $0x1cc] sm:$0xf]
        %v3181 = vld [vmem:[%s829 + $0x1d0] sm:$0xf]
        %v3182 = vld [vmem:[%s829 + $0x1d4] sm:$0xf]
        %v3183 = vld [vmem:[%s829 + $0x1d8] sm:$0xf]
        %v3184 = vld [vmem:[%s829 + $0x1dc] sm:$0xf]
        %v3185 = vld [vmem:[%s829 + $0x1e0] sm:$0xf]
        %v3186 = vld [vmem:[%s829 + $0x1e4] sm:$0xf]
        %v3187 = vld [vmem:[%s829 + $0x1e8] sm:$0xf]
        %v3188 = vld [vmem:[%s829 + $0x1ec] sm:$0xf]
        %v3189 = vld [vmem:[%s829 + $0x1f0] sm:$0xf]
        %v3190 = vld [vmem:[%s829 + $0x1f4] sm:$0xf]
        %v3191 = vld [vmem:[%s829 + $0x1f8] sm:$0xf]
        %v3192 = vld [vmem:[%s829 + $0x1fc] sm:$0xf]
        %v3257 = vunpack.c.l.b16 %v3129
        %v3258 = vunpack.c.l.b16 %v3130
        %v3259 = vunpack.c.l.b16 %v3131
        %v3260 = vunpack.c.l.b16 %v3132
        %v3261 = vunpack.c.l.b16 %v3133
        %v3262 = vunpack.c.l.b16 %v3134
        %v3263 = vunpack.c.l.b16 %v3135
        %v3264 = vunpack.c.l.b16 %v3136
        %v3265 = vunpack.c.l.b16 %v3137
        %v3266 = vunpack.c.l.b16 %v3138
        %v3267 = vunpack.c.l.b16 %v3139
        %v3268 = vunpack.c.l.b16 %v3140
        %v3269 = vunpack.c.l.b16 %v3141
        %v3270 = vunpack.c.l.b16 %v3142
        %v3271 = vunpack.c.l.b16 %v3143
        %v3272 = vunpack.c.l.b16 %v3144
        %v3273 = vunpack.c.l.b16 %v3145
        %v3274 = vunpack.c.l.b16 %v3146
        %v3275 = vunpack.c.l.b16 %v3147
        %v3276 = vunpack.c.l.b16 %v3148
        %v3277 = vunpack.c.l.b16 %v3149
        %v3278 = vunpack.c.l.b16 %v3150
        %v3279 = vunpack.c.l.b16 %v3151
        %v3280 = vunpack.c.l.b16 %v3152
        %v3281 = vunpack.c.l.b16 %v3153
        %v3282 = vunpack.c.l.b16 %v3154
        %v3283 = vunpack.c.l.b16 %v3155
        %v3284 = vunpack.c.l.b16 %v3156
        %v3285 = vunpack.c.l.b16 %v3157
        %v3286 = vunpack.c.l.b16 %v3158
        %v3287 = vunpack.c.l.b16 %v3159
        %v3288 = vunpack.c.l.b16 %v3160
        %v3289 = vunpack.c.l.b16 %v3161
        %v3290 = vunpack.c.l.b16 %v3162
        %v3291 = vunpack.c.l.b16 %v3163
        %v3292 = vunpack.c.l.b16 %v3164
        %v3293 = vunpack.c.l.b16 %v3165
        %v3294 = vunpack.c.l.b16 %v3166
        %v3295 = vunpack.c.l.b16 %v3167
        %v3296 = vunpack.c.l.b16 %v3168
        %v3297 = vunpack.c.l.b16 %v3169
        %v3298 = vunpack.c.l.b16 %v3170
        %v3299 = vunpack.c.l.b16 %v3171
        %v3300 = vunpack.c.l.b16 %v3172
        %v3301 = vunpack.c.l.b16 %v3173
        %v3302 = vunpack.c.l.b16 %v3174
        %v3303 = vunpack.c.l.b16 %v3175
        %v3304 = vunpack.c.l.b16 %v3176
        %v3305 = vunpack.c.l.b16 %v3177
        %v3306 = vunpack.c.l.b16 %v3178
        %v3307 = vunpack.c.l.b16 %v3179
        %v3308 = vunpack.c.l.b16 %v3180
        %v3309 = vunpack.c.l.b16 %v3181
        %v3310 = vunpack.c.l.b16 %v3182
        %v3311 = vunpack.c.l.b16 %v3183
        %v3312 = vunpack.c.l.b16 %v3184
        %v3313 = vunpack.c.l.b16 %v3185
        %v3314 = vunpack.c.l.b16 %v3186
        %v3315 = vunpack.c.l.b16 %v3187
        %v3316 = vunpack.c.l.b16 %v3188
        %v3317 = vunpack.c.l.b16 %v3189
        %v3318 = vunpack.c.l.b16 %v3190
        %v3319 = vunpack.c.l.b16 %v3191
        %v3320 = vunpack.c.l.b16 %v3192
        %v3321 = vpack.c.b16 %v3258, %v3257
        %v3322 = vpack.c.b16 %v3260, %v3259
        %v3323 = vpack.c.b16 %v3262, %v3261
        %v3324 = vpack.c.b16 %v3264, %v3263
        %v3325 = vpack.c.b16 %v3266, %v3265
        %v3326 = vpack.c.b16 %v3268, %v3267
        %v3327 = vpack.c.b16 %v3270, %v3269
        %v3328 = vpack.c.b16 %v3272, %v3271
        %v3329 = vpack.c.b16 %v3274, %v3273
        %v3330 = vpack.c.b16 %v3276, %v3275
        %v3331 = vpack.c.b16 %v3278, %v3277
        %v3332 = vpack.c.b16 %v3280, %v3279
        %v3333 = vpack.c.b16 %v3282, %v3281
        %v3334 = vpack.c.b16 %v3284, %v3283
        %v3335 = vpack.c.b16 %v3286, %v3285
        %v3336 = vpack.c.b16 %v3288, %v3287
        %v3337 = vpack.c.b16 %v3290, %v3289
        %v3338 = vpack.c.b16 %v3292, %v3291
        %v3339 = vpack.c.b16 %v3294, %v3293
        %v3340 = vpack.c.b16 %v3296, %v3295
        %v3341 = vpack.c.b16 %v3298, %v3297
        %v3342 = vpack.c.b16 %v3300, %v3299
        %v3343 = vpack.c.b16 %v3302, %v3301
        %v3344 = vpack.c.b16 %v3304, %v3303
        %v3345 = vpack.c.b16 %v3306, %v3305
        %v3346 = vpack.c.b16 %v3308, %v3307
        %v3347 = vpack.c.b16 %v3310, %v3309
        %v3348 = vpack.c.b16 %v3312, %v3311
        %v3349 = vpack.c.b16 %v3314, %v3313
        %v3350 = vpack.c.b16 %v3316, %v3315
        %v3351 = vpack.c.b16 %v3318, %v3317
        %v3352 = vpack.c.b16 %v3320, %v3319
        %3385 = vmatpush.bf16.msra.mxu0 %v3328
        %3386 = vmatpush.bf16.msra.mxu0 %v3327
        %3387 = vmatpush.bf16.msra.mxu0 %v3326
        %3388 = vmatpush.bf16.msra.mxu0 %v3325
        %3389 = vmatpush.bf16.msra.mxu0 %v3324
        %3390 = vmatpush.bf16.msra.mxu0 %v3323
        %3391 = vmatpush.bf16.msra.mxu0 %v3322
        %3392 = vmatpush.bf16.msra.mxu0 %v3321
        %3393 = vmatmul.bf16.gmra.mxu0 %v3125
        %v3394 = vpop.f32.mrf.mxu0
        %v3395 = vadd.f32 0.0, %v3394
        %v3396 = vpop.f32.mrf.mxu0
        %v3397 = vadd.f32 0.0, %v3396
        %3398 = vdwg.mxu0
        %3399 = vmatpush.bf16.msra.mxu0 %v3336
        %3400 = vmatpush.bf16.msra.mxu0 %v3335
        %3401 = vmatpush.bf16.msra.mxu0 %v3334
        %3402 = vmatpush.bf16.msra.mxu0 %v3333
        %3403 = vmatpush.bf16.msra.mxu0 %v3332
        %3404 = vmatpush.bf16.msra.mxu0 %v3331
        %3405 = vmatpush.bf16.msra.mxu0 %v3330
        %3406 = vmatpush.bf16.msra.mxu0 %v3329
        %3407 = vmatmul.bf16.gmra.mxu0 %v3126
        %v3408 = vpop.f32.mrf.mxu0
        %v3409 = vadd.f32 %v3395, %v3408
        %v3410 = vpop.f32.mrf.mxu0
        %v3411 = vadd.f32 %v3397, %v3410
        %3412 = vdwg.mxu0
        %3413 = vmatpush.bf16.msra.mxu0 %v3344
        %3414 = vmatpush.bf16.msra.mxu0 %v3343
        %3415 = vmatpush.bf16.msra.mxu0 %v3342
        %3416 = vmatpush.bf16.msra.mxu0 %v3341
        %3417 = vmatpush.bf16.msra.mxu0 %v3340
        %3418 = vmatpush.bf16.msra.mxu0 %v3339
        %3419 = vmatpush.bf16.msra.mxu0 %v3338
        %3420 = vmatpush.bf16.msra.mxu0 %v3337
        %3421 = vmatmul.bf16.gmra.mxu0 %v3127
        %v3422 = vpop.f32.mrf.mxu0
        %v3423 = vadd.f32 %v3409, %v3422
        %v3424 = vpop.f32.mrf.mxu0
        %v3425 = vadd.f32 %v3411, %v3424
        %3426 = vdwg.mxu0
        %3427 = vmatpush.bf16.msra.mxu0 %v3352
        %3428 = vmatpush.bf16.msra.mxu0 %v3351
        %3429 = vmatpush.bf16.msra.mxu0 %v3350
        %3430 = vmatpush.bf16.msra.mxu0 %v3349
        %3431 = vmatpush.bf16.msra.mxu0 %v3348
        %3432 = vmatpush.bf16.msra.mxu0 %v3347
        %3433 = vmatpush.bf16.msra.mxu0 %v3346
        %3434 = vmatpush.bf16.msra.mxu0 %v3345
        %3435 = vmatmul.bf16.gmra.mxu0 %v3128
        %v3436 = vpop.f32.mrf.mxu0
        %v3437 = vadd.f32 %v3423, %v3436
        %v3438 = vpop.f32.mrf.mxu0
        %v3439 = vadd.f32 %v3425, %v3438
        %3440 = vdwg.mxu0
        %v3505 = vunpack.c.l.b16 %v2795
        %v3506 = vunpack.c.l.b16 %v2796
        %v3507 = vunpack.c.l.b16 %v2797
        %v3508 = vunpack.c.l.b16 %v2798
        %v3509 = vunpack.c.l.b16 %v2799
        %v3510 = vunpack.c.l.b16 %v2800
        %v3511 = vunpack.c.l.b16 %v2801
        %v3512 = vunpack.c.l.b16 %v2802
        %v3513 = vunpack.c.l.b16 %v2803
        %v3514 = vunpack.c.l.b16 %v2804
        %v3515 = vunpack.c.l.b16 %v2805
        %v3516 = vunpack.c.l.b16 %v2806
        %v3517 = vunpack.c.l.b16 %v2807
        %v3518 = vunpack.c.l.b16 %v2808
        %v3519 = vunpack.c.l.b16 %v2809
        %v3520 = vunpack.c.l.b16 %v2810
        %v3521 = vunpack.c.l.b16 %v2811
        %v3522 = vunpack.c.l.b16 %v2812
        %v3523 = vunpack.c.l.b16 %v2813
        %v3524 = vunpack.c.l.b16 %v2814
        %v3525 = vunpack.c.l.b16 %v2815
        %v3526 = vunpack.c.l.b16 %v2816
        %v3527 = vunpack.c.l.b16 %v2817
        %v3528 = vunpack.c.l.b16 %v2818
        %v3529 = vunpack.c.l.b16 %v2819
        %v3530 = vunpack.c.l.b16 %v2820
        %v3531 = vunpack.c.l.b16 %v2821
        %v3532 = vunpack.c.l.b16 %v2822
        %v3533 = vunpack.c.l.b16 %v2823
        %v3534 = vunpack.c.l.b16 %v2824
        %v3535 = vunpack.c.l.b16 %v2825
        %v3536 = vunpack.c.l.b16 %v2826
        %v3537 = vunpack.c.l.b16 %v2827
        %v3538 = vunpack.c.l.b16 %v2828
        %v3539 = vunpack.c.l.b16 %v2829
        %v3540 = vunpack.c.l.b16 %v2830
        %v3541 = vunpack.c.l.b16 %v2831
        %v3542 = vunpack.c.l.b16 %v2832
        %v3543 = vunpack.c.l.b16 %v2833
        %v3544 = vunpack.c.l.b16 %v2834
        %v3545 = vunpack.c.l.b16 %v2835
        %v3546 = vunpack.c.l.b16 %v2836
        %v3547 = vunpack.c.l.b16 %v2837
        %v3548 = vunpack.c.l.b16 %v2838
        %v3549 = vunpack.c.l.b16 %v2839
        %v3550 = vunpack.c.l.b16 %v2840
        %v3551 = vunpack.c.l.b16 %v2841
        %v3552 = vunpack.c.l.b16 %v2842
        %v3553 = vunpack.c.l.b16 %v2843
        %v3554 = vunpack.c.l.b16 %v2844
        %v3555 = vunpack.c.l.b16 %v2845
        %v3556 = vunpack.c.l.b16 %v2846
        %v3557 = vunpack.c.l.b16 %v2847
        %v3558 = vunpack.c.l.b16 %v2848
        %v3559 = vunpack.c.l.b16 %v2849
        %v3560 = vunpack.c.l.b16 %v2850
        %v3561 = vunpack.c.l.b16 %v2851
        %v3562 = vunpack.c.l.b16 %v2852
        %v3563 = vunpack.c.l.b16 %v2853
        %v3564 = vunpack.c.l.b16 %v2854
        %v3565 = vunpack.c.l.b16 %v2855
        %v3566 = vunpack.c.l.b16 %v2856
        %v3567 = vunpack.c.l.b16 %v2857
        %v3568 = vunpack.c.l.b16 %v2858
        %v3569 = vpack.c.b16 %v3506, %v3505
        %v3570 = vpack.c.b16 %v3508, %v3507
        %v3571 = vpack.c.b16 %v3510, %v3509
        %v3572 = vpack.c.b16 %v3512, %v3511
        %v3573 = vpack.c.b16 %v3514, %v3513
        %v3574 = vpack.c.b16 %v3516, %v3515
        %v3575 = vpack.c.b16 %v3518, %v3517
        %v3576 = vpack.c.b16 %v3520, %v3519
        %v3577 = vpack.c.b16 %v3522, %v3521
        %v3578 = vpack.c.b16 %v3524, %v3523
        %v3579 = vpack.c.b16 %v3526, %v3525
        %v3580 = vpack.c.b16 %v3528, %v3527
        %v3581 = vpack.c.b16 %v3530, %v3529
        %v3582 = vpack.c.b16 %v3532, %v3531
        %v3583 = vpack.c.b16 %v3534, %v3533
        %v3584 = vpack.c.b16 %v3536, %v3535
        %v3585 = vpack.c.b16 %v3538, %v3537
        %v3586 = vpack.c.b16 %v3540, %v3539
        %v3587 = vpack.c.b16 %v3542, %v3541
        %v3588 = vpack.c.b16 %v3544, %v3543
        %v3589 = vpack.c.b16 %v3546, %v3545
        %v3590 = vpack.c.b16 %v3548, %v3547
        %v3591 = vpack.c.b16 %v3550, %v3549
        %v3592 = vpack.c.b16 %v3552, %v3551
        %v3593 = vpack.c.b16 %v3554, %v3553
        %v3594 = vpack.c.b16 %v3556, %v3555
        %v3595 = vpack.c.b16 %v3558, %v3557
        %v3596 = vpack.c.b16 %v3560, %v3559
        %v3597 = vpack.c.b16 %v3562, %v3561
        %v3598 = vpack.c.b16 %v3564, %v3563
        %v3599 = vpack.c.b16 %v3566, %v3565
        %v3600 = vpack.c.b16 %v3568, %v3567
        %3633 = vmatpush.bf16.msra.mxu0 %v3576
        %3634 = vmatpush.bf16.msra.mxu0 %v3575
        %3635 = vmatpush.bf16.msra.mxu0 %v3574
        %3636 = vmatpush.bf16.msra.mxu0 %v3573
        %3637 = vmatpush.bf16.msra.mxu0 %v3572
        %3638 = vmatpush.bf16.msra.mxu0 %v3571
        %3639 = vmatpush.bf16.msra.mxu0 %v3570
        %3640 = vmatpush.bf16.msra.mxu0 %v3569
        %3641 = vmatmul.bf16.gmra.mxu0 %v2791
        %v3642 = vpop.f32.mrf.mxu0
        %v3643 = vadd.f32 %v3437, %v3642
        %v3644 = vpop.f32.mrf.mxu0
        %v3645 = vadd.f32 %v3439, %v3644
        %3646 = vdwg.mxu0
        %3647 = vmatpush.bf16.msra.mxu0 %v3584
        %3648 = vmatpush.bf16.msra.mxu0 %v3583
        %3649 = vmatpush.bf16.msra.mxu0 %v3582
        %3650 = vmatpush.bf16.msra.mxu0 %v3581
        %3651 = vmatpush.bf16.msra.mxu0 %v3580
        %3652 = vmatpush.bf16.msra.mxu0 %v3579
        %3653 = vmatpush.bf16.msra.mxu0 %v3578
        %3654 = vmatpush.bf16.msra.mxu0 %v3577
        %3655 = vmatmul.bf16.gmra.mxu0 %v2792
        %v3656 = vpop.f32.mrf.mxu0
        %v3657 = vadd.f32 %v3643, %v3656
        %v3658 = vpop.f32.mrf.mxu0
        %v3659 = vadd.f32 %v3645, %v3658
        %3660 = vdwg.mxu0
        %3661 = vmatpush.bf16.msra.mxu0 %v3592
        %3662 = vmatpush.bf16.msra.mxu0 %v3591
        %3663 = vmatpush.bf16.msra.mxu0 %v3590
        %3664 = vmatpush.bf16.msra.mxu0 %v3589
        %3665 = vmatpush.bf16.msra.mxu0 %v3588
        %3666 = vmatpush.bf16.msra.mxu0 %v3587
        %3667 = vmatpush.bf16.msra.mxu0 %v3586
        %3668 = vmatpush.bf16.msra.mxu0 %v3585
        %3669 = vmatmul.bf16.gmra.mxu0 %v2793
        %v3670 = vpop.f32.mrf.mxu0
        %v3671 = vadd.f32 %v3657, %v3670
        %v3672 = vpop.f32.mrf.mxu0
        %v3673 = vadd.f32 %v3659, %v3672
        %3674 = vdwg.mxu0
        %3675 = vmatpush.bf16.msra.mxu0 %v3600
        %3676 = vmatpush.bf16.msra.mxu0 %v3599
        %3677 = vmatpush.bf16.msra.mxu0 %v3598
        %3678 = vmatpush.bf16.msra.mxu0 %v3597
        %3679 = vmatpush.bf16.msra.mxu0 %v3596
        %3680 = vmatpush.bf16.msra.mxu0 %v3595
        %3681 = vmatpush.bf16.msra.mxu0 %v3594
        %3682 = vmatpush.bf16.msra.mxu0 %v3593
        %3683 = vmatmul.bf16.gmra.mxu0 %v2794
        %v3684 = vpop.f32.mrf.mxu0
        %v3685 = vadd.f32 %v3671, %v3684
        %v3686 = vpop.f32.mrf.mxu0
        %v3687 = vadd.f32 %v3673, %v3686
        %3688 = vdwg.mxu0
        %v3689 = vld [vmem:[%s809 + $0x20] sm:$0xff]
        %v3690 = vld [vmem:[%s809 + $0x28] sm:$0xff]
        %v3691 = vld [vmem:[%s809 + $0x60] sm:$0xff]
        %v3692 = vld [vmem:[%s809 + $0x68] sm:$0xff]
        %v3693 = vld [vmem:[%s809 + $0xa0] sm:$0xff]
        %v3694 = vld [vmem:[%s809 + $0xa8] sm:$0xff]
        %v3695 = vld [vmem:[%s809 + $0xe0] sm:$0xff]
        %v3696 = vld [vmem:[%s809 + $0xe8] sm:$0xff]
        %v3697 = vld [vmem:[%s809 + $0x120] sm:$0xff]
        %v3698 = vld [vmem:[%s809 + $0x128] sm:$0xff]
        %v3699 = vld [vmem:[%s809 + $0x160] sm:$0xff]
        %v3700 = vld [vmem:[%s809 + $0x168] sm:$0xff]
        %v3701 = vld [vmem:[%s809 + $0x1a0] sm:$0xff]
        %v3702 = vld [vmem:[%s809 + $0x1a8] sm:$0xff]
        %v3703 = vld [vmem:[%s809 + $0x1e0] sm:$0xff]
        %v3704 = vld [vmem:[%s809 + $0x1e8] sm:$0xff]
        %v3705 = vld [vmem:[%s809 + $0x220] sm:$0xff]
        %v3706 = vld [vmem:[%s809 + $0x228] sm:$0xff]
        %v3707 = vld [vmem:[%s809 + $0x260] sm:$0xff]
        %v3708 = vld [vmem:[%s809 + $0x268] sm:$0xff]
        %v3709 = vld [vmem:[%s809 + $0x2a0] sm:$0xff]
        %v3710 = vld [vmem:[%s809 + $0x2a8] sm:$0xff]
        %v3711 = vld [vmem:[%s809 + $0x2e0] sm:$0xff]
        %v3712 = vld [vmem:[%s809 + $0x2e8] sm:$0xff]
        %v3713 = vld [vmem:[%s809 + $0x320] sm:$0xff]
        %v3714 = vld [vmem:[%s809 + $0x328] sm:$0xff]
        %v3715 = vld [vmem:[%s809 + $0x360] sm:$0xff]
        %v3716 = vld [vmem:[%s809 + $0x368] sm:$0xff]
        %v3717 = vld [vmem:[%s809 + $0x3a0] sm:$0xff]
        %v3718 = vld [vmem:[%s809 + $0x3a8] sm:$0xff]
        %v3719 = vld [vmem:[%s809 + $0x3e0] sm:$0xff]
        %v3720 = vld [vmem:[%s809 + $0x3e8] sm:$0xff]
        %v3721 = vld [vmem:[%s819 + $0x8] sm:$0xf]
        %v3723 = vperm.slane %v3721, 0
        %v3724 = vperm.slane %v3721, 1
        %v3725 = vperm.slane %v3721, 2
        %v3726 = vperm.slane %v3721, 3
        %v3763 = vunpack.c.l.b16 %v3689
        %v3764 = vunpack.c.h.b16 %v3689
        %v3765 = vunpack.c.l.b16 %v3690
        %v3766 = vunpack.c.h.b16 %v3690
        %v3767 = vunpack.c.l.b16 %v3691
        %v3768 = vunpack.c.h.b16 %v3691
        %v3769 = vunpack.c.l.b16 %v3692
        %v3770 = vunpack.c.h.b16 %v3692
        %v3771 = vunpack.c.l.b16 %v3693
        %v3772 = vunpack.c.h.b16 %v3693
        %v3773 = vunpack.c.l.b16 %v3694
        %v3774 = vunpack.c.h.b16 %v3694
        %v3775 = vunpack.c.l.b16 %v3695
        %v3776 = vunpack.c.h.b16 %v3695
        %v3777 = vunpack.c.l.b16 %v3696
        %v3778 = vunpack.c.h.b16 %v3696
        %v3779 = vunpack.c.l.b16 %v3697
        %v3780 = vunpack.c.h.b16 %v3697
        %v3781 = vunpack.c.l.b16 %v3698
        %v3782 = vunpack.c.h.b16 %v3698
        %v3783 = vunpack.c.l.b16 %v3699
        %v3784 = vunpack.c.h.b16 %v3699
        %v3785 = vunpack.c.l.b16 %v3700
        %v3786 = vunpack.c.h.b16 %v3700
        %v3787 = vunpack.c.l.b16 %v3701
        %v3788 = vunpack.c.h.b16 %v3701
        %v3789 = vunpack.c.l.b16 %v3702
        %v3790 = vunpack.c.h.b16 %v3702
        %v3791 = vunpack.c.l.b16 %v3703
        %v3792 = vunpack.c.h.b16 %v3703
        %v3793 = vunpack.c.l.b16 %v3704
        %v3794 = vunpack.c.h.b16 %v3704
        %v3795 = vunpack.c.l.b16 %v3705
        %v3796 = vunpack.c.h.b16 %v3705
        %v3797 = vunpack.c.l.b16 %v3706
        %v3798 = vunpack.c.h.b16 %v3706
        %v3799 = vunpack.c.l.b16 %v3707
        %v3800 = vunpack.c.h.b16 %v3707
        %v3801 = vunpack.c.l.b16 %v3708
        %v3802 = vunpack.c.h.b16 %v3708
        %v3803 = vunpack.c.l.b16 %v3709
        %v3804 = vunpack.c.h.b16 %v3709
        %v3805 = vunpack.c.l.b16 %v3710
        %v3806 = vunpack.c.h.b16 %v3710
        %v3807 = vunpack.c.l.b16 %v3711
        %v3808 = vunpack.c.h.b16 %v3711
        %v3809 = vunpack.c.l.b16 %v3712
        %v3810 = vunpack.c.h.b16 %v3712
        %v3811 = vunpack.c.l.b16 %v3713
        %v3812 = vunpack.c.h.b16 %v3713
        %v3813 = vunpack.c.l.b16 %v3714
        %v3814 = vunpack.c.h.b16 %v3714
        %v3815 = vunpack.c.l.b16 %v3715
        %v3816 = vunpack.c.h.b16 %v3715
        %v3817 = vunpack.c.l.b16 %v3716
        %v3818 = vunpack.c.h.b16 %v3716
        %v3819 = vunpack.c.l.b16 %v3717
        %v3820 = vunpack.c.h.b16 %v3717
        %v3821 = vunpack.c.l.b16 %v3718
        %v3822 = vunpack.c.h.b16 %v3718
        %v3823 = vunpack.c.l.b16 %v3719
        %v3824 = vunpack.c.h.b16 %v3719
        %v3825 = vunpack.c.l.b16 %v3720
        %v3826 = vunpack.c.h.b16 %v3720
        %v3827 = vpack.c.b16 %v3767, %v3763
        %v3828 = vpack.c.b16 %v3768, %v3764
        %v3829 = vpack.c.b16 %v3769, %v3765
        %v3830 = vpack.c.b16 %v3770, %v3766
        %v3831 = vpack.c.b16 %v3775, %v3771
        %v3832 = vpack.c.b16 %v3776, %v3772
        %v3833 = vpack.c.b16 %v3777, %v3773
        %v3834 = vpack.c.b16 %v3778, %v3774
        %v3835 = vpack.c.b16 %v3783, %v3779
        %v3836 = vpack.c.b16 %v3784, %v3780
        %v3837 = vpack.c.b16 %v3785, %v3781
        %v3838 = vpack.c.b16 %v3786, %v3782
        %v3839 = vpack.c.b16 %v3791, %v3787
        %v3840 = vpack.c.b16 %v3792, %v3788
        %v3841 = vpack.c.b16 %v3793, %v3789
        %v3842 = vpack.c.b16 %v3794, %v3790
        %v3843 = vpack.c.b16 %v3799, %v3795
        %v3844 = vpack.c.b16 %v3800, %v3796
        %v3845 = vpack.c.b16 %v3801, %v3797
        %v3846 = vpack.c.b16 %v3802, %v3798
        %v3847 = vpack.c.b16 %v3807, %v3803
        %v3848 = vpack.c.b16 %v3808, %v3804
        %v3849 = vpack.c.b16 %v3809, %v3805
        %v3850 = vpack.c.b16 %v3810, %v3806
        %v3851 = vpack.c.b16 %v3815, %v3811
        %v3852 = vpack.c.b16 %v3816, %v3812
        %v3853 = vpack.c.b16 %v3817, %v3813
        %v3854 = vpack.c.b16 %v3818, %v3814
        %v3855 = vpack.c.b16 %v3823, %v3819
        %v3856 = vpack.c.b16 %v3824, %v3820
        %v3857 = vpack.c.b16 %v3825, %v3821
        %v3858 = vpack.c.b16 %v3826, %v3822
        %3891 = vmatpush.bf16.msra.mxu0 %v3855
        %3892 = vmatpush.bf16.msra.mxu0 %v3851
        %3893 = vmatpush.bf16.msra.mxu0 %v3847
        %3894 = vmatpush.bf16.msra.mxu0 %v3843
        %3895 = vmatpush.bf16.msra.mxu0 %v3839
        %3896 = vmatpush.bf16.msra.mxu0 %v3835
        %3897 = vmatpush.bf16.msra.mxu0 %v3831
        %3898 = vmatpush.bf16.msra.mxu0 %v3827
        %3899 = vmatmul.bf16.gmra.mxu0 %v2524
        %v3900 = vpop.f32.mrf.mxu0
        %v3901 = vadd.f32 %v3723, %v3900
        %v3902 = vpop.f32.mrf.mxu0
        %v3903 = vadd.f32 %v3723, %v3902
        %3904 = vdwg.mxu0
        %3905 = vmatpush.bf16.msra.mxu0 %v3856
        %3906 = vmatpush.bf16.msra.mxu0 %v3852
        %3907 = vmatpush.bf16.msra.mxu0 %v3848
        %3908 = vmatpush.bf16.msra.mxu0 %v3844
        %3909 = vmatpush.bf16.msra.mxu0 %v3840
        %3910 = vmatpush.bf16.msra.mxu0 %v3836
        %3911 = vmatpush.bf16.msra.mxu0 %v3832
        %3912 = vmatpush.bf16.msra.mxu0 %v3828
        %3913 = vmatmul.bf16.gmra.mxu0 %v2524
        %v3914 = vpop.f32.mrf.mxu0
        %v3915 = vadd.f32 %v3724, %v3914
        %v3916 = vpop.f32.mrf.mxu0
        %v3917 = vadd.f32 %v3724, %v3916
        %3918 = vdwg.mxu0
        %3919 = vmatpush.bf16.msra.mxu0 %v3857
        %3920 = vmatpush.bf16.msra.mxu0 %v3853
        %3921 = vmatpush.bf16.msra.mxu0 %v3849
        %3922 = vmatpush.bf16.msra.mxu0 %v3845
        %3923 = vmatpush.bf16.msra.mxu0 %v3841
        %3924 = vmatpush.bf16.msra.mxu0 %v3837
        %3925 = vmatpush.bf16.msra.mxu0 %v3833
        %3926 = vmatpush.bf16.msra.mxu0 %v3829
        %3927 = vmatmul.bf16.gmra.mxu0 %v2524
        %v3928 = vpop.f32.mrf.mxu0
        %v3929 = vadd.f32 %v3725, %v3928
        %v3930 = vpop.f32.mrf.mxu0
        %v3931 = vadd.f32 %v3725, %v3930
        %3932 = vdwg.mxu0
        %3933 = vmatpush.bf16.msra.mxu0 %v3858
        %3934 = vmatpush.bf16.msra.mxu0 %v3854
        %3935 = vmatpush.bf16.msra.mxu0 %v3850
        %3936 = vmatpush.bf16.msra.mxu0 %v3846
        %3937 = vmatpush.bf16.msra.mxu0 %v3842
        %3938 = vmatpush.bf16.msra.mxu0 %v3838
        %3939 = vmatpush.bf16.msra.mxu0 %v3834
        %3940 = vmatpush.bf16.msra.mxu0 %v3830
        %3941 = vmatmul.bf16.gmra.mxu0 %v2524
        %v3942 = vpop.f32.mrf.mxu0
        %v3943 = vadd.f32 %v3726, %v3942
        %v3944 = vpop.f32.mrf.mxu0
        %v3945 = vadd.f32 %v3726, %v3944
        %3946 = vdwg.mxu0
        %v3947 = vmax.f32 %v3901, 0.0
        %v3948 = vmax.f32 %v3915, 0.0
        %v3949 = vmax.f32 %v3929, 0.0
        %v3950 = vmax.f32 %v3943, 0.0
        %v3951 = vmax.f32 %v3903, 0.0
        %v3952 = vmax.f32 %v3917, 0.0
        %v3953 = vmax.f32 %v3931, 0.0
        %v3954 = vmax.f32 %v3945, 0.0
        %v3955 = vpack.c.bf16 %v3951, %v3947
        %v3956 = vpack.c.bf16 %v3952, %v3948
        %v3957 = vpack.c.bf16 %v3953, %v3949
        %v3958 = vpack.c.bf16 %v3954, %v3950
        %v3959 = vld [vmem:[%s829 + $0x200] sm:$0xf]
        %v3960 = vld [vmem:[%s829 + $0x204] sm:$0xf]
        %v3961 = vld [vmem:[%s829 + $0x208] sm:$0xf]
        %v3962 = vld [vmem:[%s829 + $0x20c] sm:$0xf]
        %v3963 = vld [vmem:[%s829 + $0x210] sm:$0xf]
        %v3964 = vld [vmem:[%s829 + $0x214] sm:$0xf]
        %v3965 = vld [vmem:[%s829 + $0x218] sm:$0xf]
        %v3966 = vld [vmem:[%s829 + $0x21c] sm:$0xf]
        %v3967 = vld [vmem:[%s829 + $0x220] sm:$0xf]
        %v3968 = vld [vmem:[%s829 + $0x224] sm:$0xf]
        %v3969 = vld [vmem:[%s829 + $0x228] sm:$0xf]
        %v3970 = vld [vmem:[%s829 + $0x22c] sm:$0xf]
        %v3971 = vld [vmem:[%s829 + $0x230] sm:$0xf]
        %v3972 = vld [vmem:[%s829 + $0x234] sm:$0xf]
        %v3973 = vld [vmem:[%s829 + $0x238] sm:$0xf]
        %v3974 = vld [vmem:[%s829 + $0x23c] sm:$0xf]
        %v3975 = vld [vmem:[%s829 + $0x240] sm:$0xf]
        %v3976 = vld [vmem:[%s829 + $0x244] sm:$0xf]
        %v3977 = vld [vmem:[%s829 + $0x248] sm:$0xf]
        %v3978 = vld [vmem:[%s829 + $0x24c] sm:$0xf]
        %v3979 = vld [vmem:[%s829 + $0x250] sm:$0xf]
        %v3980 = vld [vmem:[%s829 + $0x254] sm:$0xf]
        %v3981 = vld [vmem:[%s829 + $0x258] sm:$0xf]
        %v3982 = vld [vmem:[%s829 + $0x25c] sm:$0xf]
        %v3983 = vld [vmem:[%s829 + $0x260] sm:$0xf]
        %v3984 = vld [vmem:[%s829 + $0x264] sm:$0xf]
        %v3985 = vld [vmem:[%s829 + $0x268] sm:$0xf]
        %v3986 = vld [vmem:[%s829 + $0x26c] sm:$0xf]
        %v3987 = vld [vmem:[%s829 + $0x270] sm:$0xf]
        %v3988 = vld [vmem:[%s829 + $0x274] sm:$0xf]
        %v3989 = vld [vmem:[%s829 + $0x278] sm:$0xf]
        %v3990 = vld [vmem:[%s829 + $0x27c] sm:$0xf]
        %v3991 = vld [vmem:[%s829 + $0x280] sm:$0xf]
        %v3992 = vld [vmem:[%s829 + $0x284] sm:$0xf]
        %v3993 = vld [vmem:[%s829 + $0x288] sm:$0xf]
        %v3994 = vld [vmem:[%s829 + $0x28c] sm:$0xf]
        %v3995 = vld [vmem:[%s829 + $0x290] sm:$0xf]
        %v3996 = vld [vmem:[%s829 + $0x294] sm:$0xf]
        %v3997 = vld [vmem:[%s829 + $0x298] sm:$0xf]
        %v3998 = vld [vmem:[%s829 + $0x29c] sm:$0xf]
        %v3999 = vld [vmem:[%s829 + $0x2a0] sm:$0xf]
        %v4000 = vld [vmem:[%s829 + $0x2a4] sm:$0xf]
        %v4001 = vld [vmem:[%s829 + $0x2a8] sm:$0xf]
        %v4002 = vld [vmem:[%s829 + $0x2ac] sm:$0xf]
        %v4003 = vld [vmem:[%s829 + $0x2b0] sm:$0xf]
        %v4004 = vld [vmem:[%s829 + $0x2b4] sm:$0xf]
        %v4005 = vld [vmem:[%s829 + $0x2b8] sm:$0xf]
        %v4006 = vld [vmem:[%s829 + $0x2bc] sm:$0xf]
        %v4007 = vld [vmem:[%s829 + $0x2c0] sm:$0xf]
        %v4008 = vld [vmem:[%s829 + $0x2c4] sm:$0xf]
        %v4009 = vld [vmem:[%s829 + $0x2c8] sm:$0xf]
        %v4010 = vld [vmem:[%s829 + $0x2cc] sm:$0xf]
        %v4011 = vld [vmem:[%s829 + $0x2d0] sm:$0xf]
        %v4012 = vld [vmem:[%s829 + $0x2d4] sm:$0xf]
        %v4013 = vld [vmem:[%s829 + $0x2d8] sm:$0xf]
        %v4014 = vld [vmem:[%s829 + $0x2dc] sm:$0xf]
        %v4015 = vld [vmem:[%s829 + $0x2e0] sm:$0xf]
        %v4016 = vld [vmem:[%s829 + $0x2e4] sm:$0xf]
        %v4017 = vld [vmem:[%s829 + $0x2e8] sm:$0xf]
        %v4018 = vld [vmem:[%s829 + $0x2ec] sm:$0xf]
        %v4019 = vld [vmem:[%s829 + $0x2f0] sm:$0xf]
        %v4020 = vld [vmem:[%s829 + $0x2f4] sm:$0xf]
        %v4021 = vld [vmem:[%s829 + $0x2f8] sm:$0xf]
        %v4022 = vld [vmem:[%s829 + $0x2fc] sm:$0xf]
        %v4087 = vunpack.c.l.b16 %v3959
        %v4088 = vunpack.c.l.b16 %v3960
        %v4089 = vunpack.c.l.b16 %v3961
        %v4090 = vunpack.c.l.b16 %v3962
        %v4091 = vunpack.c.l.b16 %v3963
        %v4092 = vunpack.c.l.b16 %v3964
        %v4093 = vunpack.c.l.b16 %v3965
        %v4094 = vunpack.c.l.b16 %v3966
        %v4095 = vunpack.c.l.b16 %v3967
        %v4096 = vunpack.c.l.b16 %v3968
        %v4097 = vunpack.c.l.b16 %v3969
        %v4098 = vunpack.c.l.b16 %v3970
        %v4099 = vunpack.c.l.b16 %v3971
        %v4100 = vunpack.c.l.b16 %v3972
        %v4101 = vunpack.c.l.b16 %v3973
        %v4102 = vunpack.c.l.b16 %v3974
        %v4103 = vunpack.c.l.b16 %v3975
        %v4104 = vunpack.c.l.b16 %v3976
        %v4105 = vunpack.c.l.b16 %v3977
        %v4106 = vunpack.c.l.b16 %v3978
        %v4107 = vunpack.c.l.b16 %v3979
        %v4108 = vunpack.c.l.b16 %v3980
        %v4109 = vunpack.c.l.b16 %v3981
        %v4110 = vunpack.c.l.b16 %v3982
        %v4111 = vunpack.c.l.b16 %v3983
        %v4112 = vunpack.c.l.b16 %v3984
        %v4113 = vunpack.c.l.b16 %v3985
        %v4114 = vunpack.c.l.b16 %v3986
        %v4115 = vunpack.c.l.b16 %v3987
        %v4116 = vunpack.c.l.b16 %v3988
        %v4117 = vunpack.c.l.b16 %v3989
        %v4118 = vunpack.c.l.b16 %v3990
        %v4119 = vunpack.c.l.b16 %v3991
        %v4120 = vunpack.c.l.b16 %v3992
        %v4121 = vunpack.c.l.b16 %v3993
        %v4122 = vunpack.c.l.b16 %v3994
        %v4123 = vunpack.c.l.b16 %v3995
        %v4124 = vunpack.c.l.b16 %v3996
        %v4125 = vunpack.c.l.b16 %v3997
        %v4126 = vunpack.c.l.b16 %v3998
        %v4127 = vunpack.c.l.b16 %v3999
        %v4128 = vunpack.c.l.b16 %v4000
        %v4129 = vunpack.c.l.b16 %v4001
        %v4130 = vunpack.c.l.b16 %v4002
        %v4131 = vunpack.c.l.b16 %v4003
        %v4132 = vunpack.c.l.b16 %v4004
        %v4133 = vunpack.c.l.b16 %v4005
        %v4134 = vunpack.c.l.b16 %v4006
        %v4135 = vunpack.c.l.b16 %v4007
        %v4136 = vunpack.c.l.b16 %v4008
        %v4137 = vunpack.c.l.b16 %v4009
        %v4138 = vunpack.c.l.b16 %v4010
        %v4139 = vunpack.c.l.b16 %v4011
        %v4140 = vunpack.c.l.b16 %v4012
        %v4141 = vunpack.c.l.b16 %v4013
        %v4142 = vunpack.c.l.b16 %v4014
        %v4143 = vunpack.c.l.b16 %v4015
        %v4144 = vunpack.c.l.b16 %v4016
        %v4145 = vunpack.c.l.b16 %v4017
        %v4146 = vunpack.c.l.b16 %v4018
        %v4147 = vunpack.c.l.b16 %v4019
        %v4148 = vunpack.c.l.b16 %v4020
        %v4149 = vunpack.c.l.b16 %v4021
        %v4150 = vunpack.c.l.b16 %v4022
        %v4151 = vpack.c.b16 %v4088, %v4087
        %v4152 = vpack.c.b16 %v4090, %v4089
        %v4153 = vpack.c.b16 %v4092, %v4091
        %v4154 = vpack.c.b16 %v4094, %v4093
        %v4155 = vpack.c.b16 %v4096, %v4095
        %v4156 = vpack.c.b16 %v4098, %v4097
        %v4157 = vpack.c.b16 %v4100, %v4099
        %v4158 = vpack.c.b16 %v4102, %v4101
        %v4159 = vpack.c.b16 %v4104, %v4103
        %v4160 = vpack.c.b16 %v4106, %v4105
        %v4161 = vpack.c.b16 %v4108, %v4107
        %v4162 = vpack.c.b16 %v4110, %v4109
        %v4163 = vpack.c.b16 %v4112, %v4111
        %v4164 = vpack.c.b16 %v4114, %v4113
        %v4165 = vpack.c.b16 %v4116, %v4115
        %v4166 = vpack.c.b16 %v4118, %v4117
        %v4167 = vpack.c.b16 %v4120, %v4119
        %v4168 = vpack.c.b16 %v4122, %v4121
        %v4169 = vpack.c.b16 %v4124, %v4123
        %v4170 = vpack.c.b16 %v4126, %v4125
        %v4171 = vpack.c.b16 %v4128, %v4127
        %v4172 = vpack.c.b16 %v4130, %v4129
        %v4173 = vpack.c.b16 %v4132, %v4131
        %v4174 = vpack.c.b16 %v4134, %v4133
        %v4175 = vpack.c.b16 %v4136, %v4135
        %v4176 = vpack.c.b16 %v4138, %v4137
        %v4177 = vpack.c.b16 %v4140, %v4139
        %v4178 = vpack.c.b16 %v4142, %v4141
        %v4179 = vpack.c.b16 %v4144, %v4143
        %v4180 = vpack.c.b16 %v4146, %v4145
        %v4181 = vpack.c.b16 %v4148, %v4147
        %v4182 = vpack.c.b16 %v4150, %v4149
        %4215 = vmatpush.bf16.msra.mxu0 %v4158
        %4216 = vmatpush.bf16.msra.mxu0 %v4157
        %4217 = vmatpush.bf16.msra.mxu0 %v4156
        %4218 = vmatpush.bf16.msra.mxu0 %v4155
        %4219 = vmatpush.bf16.msra.mxu0 %v4154
        %4220 = vmatpush.bf16.msra.mxu0 %v4153
        %4221 = vmatpush.bf16.msra.mxu0 %v4152
        %4222 = vmatpush.bf16.msra.mxu0 %v4151
        %4223 = vmatmul.bf16.gmra.mxu0 %v3955
        %v4224 = vpop.f32.mrf.mxu0
        %v4225 = vadd.f32 0.0, %v4224
        %v4226 = vpop.f32.mrf.mxu0
        %v4227 = vadd.f32 0.0, %v4226
        %4228 = vdwg.mxu0
        %4229 = vmatpush.bf16.msra.mxu0 %v4166
        %4230 = vmatpush.bf16.msra.mxu0 %v4165
        %4231 = vmatpush.bf16.msra.mxu0 %v4164
        %4232 = vmatpush.bf16.msra.mxu0 %v4163
        %4233 = vmatpush.bf16.msra.mxu0 %v4162
        %4234 = vmatpush.bf16.msra.mxu0 %v4161
        %4235 = vmatpush.bf16.msra.mxu0 %v4160
        %4236 = vmatpush.bf16.msra.mxu0 %v4159
        %4237 = vmatmul.bf16.gmra.mxu0 %v3956
        %v4238 = vpop.f32.mrf.mxu0
        %v4239 = vadd.f32 %v4225, %v4238
        %v4240 = vpop.f32.mrf.mxu0
        %v4241 = vadd.f32 %v4227, %v4240
        %4242 = vdwg.mxu0
        %4243 = vmatpush.bf16.msra.mxu0 %v4174
        %4244 = vmatpush.bf16.msra.mxu0 %v4173
        %4245 = vmatpush.bf16.msra.mxu0 %v4172
        %4246 = vmatpush.bf16.msra.mxu0 %v4171
        %4247 = vmatpush.bf16.msra.mxu0 %v4170
        %4248 = vmatpush.bf16.msra.mxu0 %v4169
        %4249 = vmatpush.bf16.msra.mxu0 %v4168
        %4250 = vmatpush.bf16.msra.mxu0 %v4167
        %4251 = vmatmul.bf16.gmra.mxu0 %v3957
        %v4252 = vpop.f32.mrf.mxu0
        %v4253 = vadd.f32 %v4239, %v4252
        %v4254 = vpop.f32.mrf.mxu0
        %v4255 = vadd.f32 %v4241, %v4254
        %4256 = vdwg.mxu0
        %4257 = vmatpush.bf16.msra.mxu0 %v4182
        %4258 = vmatpush.bf16.msra.mxu0 %v4181
        %4259 = vmatpush.bf16.msra.mxu0 %v4180
        %4260 = vmatpush.bf16.msra.mxu0 %v4179
        %4261 = vmatpush.bf16.msra.mxu0 %v4178
        %4262 = vmatpush.bf16.msra.mxu0 %v4177
        %4263 = vmatpush.bf16.msra.mxu0 %v4176
        %4264 = vmatpush.bf16.msra.mxu0 %v4175
        %4265 = vmatmul.bf16.gmra.mxu0 %v3958
        %v4266 = vpop.f32.mrf.mxu0
        %v4267 = vadd.f32 %v4253, %v4266
        %v4268 = vpop.f32.mrf.mxu0
        %v4269 = vadd.f32 %v4255, %v4268
        %4270 = vdwg.mxu0
        %v4271 = vadd.f32 %v3685, %v4267
        %v4272 = vadd.f32 %v3687, %v4269
        %v4273 = vld [vmem:[%s809 + $0x30] sm:$0xff]
        %v4274 = vld [vmem:[%s809 + $0x38] sm:$0xff]
        %v4275 = vld [vmem:[%s809 + $0x70] sm:$0xff]
        %v4276 = vld [vmem:[%s809 + $0x78] sm:$0xff]
        %v4277 = vld [vmem:[%s809 + $0xb0] sm:$0xff]
        %v4278 = vld [vmem:[%s809 + $0xb8] sm:$0xff]
        %v4279 = vld [vmem:[%s809 + $0xf0] sm:$0xff]
        %v4280 = vld [vmem:[%s809 + $0xf8] sm:$0xff]
        %v4281 = vld [vmem:[%s809 + $0x130] sm:$0xff]
        %v4282 = vld [vmem:[%s809 + $0x138] sm:$0xff]
        %v4283 = vld [vmem:[%s809 + $0x170] sm:$0xff]
        %v4284 = vld [vmem:[%s809 + $0x178] sm:$0xff]
        %v4285 = vld [vmem:[%s809 + $0x1b0] sm:$0xff]
        %v4286 = vld [vmem:[%s809 + $0x1b8] sm:$0xff]
        %v4287 = vld [vmem:[%s809 + $0x1f0] sm:$0xff]
        %v4288 = vld [vmem:[%s809 + $0x1f8] sm:$0xff]
        %v4289 = vld [vmem:[%s809 + $0x230] sm:$0xff]
        %v4290 = vld [vmem:[%s809 + $0x238] sm:$0xff]
        %v4291 = vld [vmem:[%s809 + $0x270] sm:$0xff]
        %v4292 = vld [vmem:[%s809 + $0x278] sm:$0xff]
        %v4293 = vld [vmem:[%s809 + $0x2b0] sm:$0xff]
        %v4294 = vld [vmem:[%s809 + $0x2b8] sm:$0xff]
        %v4295 = vld [vmem:[%s809 + $0x2f0] sm:$0xff]
        %v4296 = vld [vmem:[%s809 + $0x2f8] sm:$0xff]
        %v4297 = vld [vmem:[%s809 + $0x330] sm:$0xff]
        %v4298 = vld [vmem:[%s809 + $0x338] sm:$0xff]
        %v4299 = vld [vmem:[%s809 + $0x370] sm:$0xff]
        %v4300 = vld [vmem:[%s809 + $0x378] sm:$0xff]
        %v4301 = vld [vmem:[%s809 + $0x3b0] sm:$0xff]
        %v4302 = vld [vmem:[%s809 + $0x3b8] sm:$0xff]
        %v4303 = vld [vmem:[%s809 + $0x3f0] sm:$0xff]
        %v4304 = vld [vmem:[%s809 + $0x3f8] sm:$0xff]
        %v4305 = vld [vmem:[%s819 + $0xc] sm:$0xf]
        %v4307 = vperm.slane %v4305, 0
        %v4308 = vperm.slane %v4305, 1
        %v4309 = vperm.slane %v4305, 2
        %v4310 = vperm.slane %v4305, 3
        %v4347 = vunpack.c.l.b16 %v4273
        %v4348 = vunpack.c.h.b16 %v4273
        %v4349 = vunpack.c.l.b16 %v4274
        %v4350 = vunpack.c.h.b16 %v4274
        %v4351 = vunpack.c.l.b16 %v4275
        %v4352 = vunpack.c.h.b16 %v4275
        %v4353 = vunpack.c.l.b16 %v4276
        %v4354 = vunpack.c.h.b16 %v4276
        %v4355 = vunpack.c.l.b16 %v4277
        %v4356 = vunpack.c.h.b16 %v4277
        %v4357 = vunpack.c.l.b16 %v4278
        %v4358 = vunpack.c.h.b16 %v4278
        %v4359 = vunpack.c.l.b16 %v4279
        %v4360 = vunpack.c.h.b16 %v4279
        %v4361 = vunpack.c.l.b16 %v4280
        %v4362 = vunpack.c.h.b16 %v4280
        %v4363 = vunpack.c.l.b16 %v4281
        %v4364 = vunpack.c.h.b16 %v4281
        %v4365 = vunpack.c.l.b16 %v4282
        %v4366 = vunpack.c.h.b16 %v4282
        %v4367 = vunpack.c.l.b16 %v4283
        %v4368 = vunpack.c.h.b16 %v4283
        %v4369 = vunpack.c.l.b16 %v4284
        %v4370 = vunpack.c.h.b16 %v4284
        %v4371 = vunpack.c.l.b16 %v4285
        %v4372 = vunpack.c.h.b16 %v4285
        %v4373 = vunpack.c.l.b16 %v4286
        %v4374 = vunpack.c.h.b16 %v4286
        %v4375 = vunpack.c.l.b16 %v4287
        %v4376 = vunpack.c.h.b16 %v4287
        %v4377 = vunpack.c.l.b16 %v4288
        %v4378 = vunpack.c.h.b16 %v4288
        %v4379 = vunpack.c.l.b16 %v4289
        %v4380 = vunpack.c.h.b16 %v4289
        %v4381 = vunpack.c.l.b16 %v4290
        %v4382 = vunpack.c.h.b16 %v4290
        %v4383 = vunpack.c.l.b16 %v4291
        %v4384 = vunpack.c.h.b16 %v4291
        %v4385 = vunpack.c.l.b16 %v4292
        %v4386 = vunpack.c.h.b16 %v4292
        %v4387 = vunpack.c.l.b16 %v4293
        %v4388 = vunpack.c.h.b16 %v4293
        %v4389 = vunpack.c.l.b16 %v4294
        %v4390 = vunpack.c.h.b16 %v4294
        %v4391 = vunpack.c.l.b16 %v4295
        %v4392 = vunpack.c.h.b16 %v4295
        %v4393 = vunpack.c.l.b16 %v4296
        %v4394 = vunpack.c.h.b16 %v4296
        %v4395 = vunpack.c.l.b16 %v4297
        %v4396 = vunpack.c.h.b16 %v4297
        %v4397 = vunpack.c.l.b16 %v4298
        %v4398 = vunpack.c.h.b16 %v4298
        %v4399 = vunpack.c.l.b16 %v4299
        %v4400 = vunpack.c.h.b16 %v4299
        %v4401 = vunpack.c.l.b16 %v4300
        %v4402 = vunpack.c.h.b16 %v4300
        %v4403 = vunpack.c.l.b16 %v4301
        %v4404 = vunpack.c.h.b16 %v4301
        %v4405 = vunpack.c.l.b16 %v4302
        %v4406 = vunpack.c.h.b16 %v4302
        %v4407 = vunpack.c.l.b16 %v4303
        %v4408 = vunpack.c.h.b16 %v4303
        %v4409 = vunpack.c.l.b16 %v4304
        %v4410 = vunpack.c.h.b16 %v4304
        %v4411 = vpack.c.b16 %v4351, %v4347
        %v4412 = vpack.c.b16 %v4352, %v4348
        %v4413 = vpack.c.b16 %v4353, %v4349
        %v4414 = vpack.c.b16 %v4354, %v4350
        %v4415 = vpack.c.b16 %v4359, %v4355
        %v4416 = vpack.c.b16 %v4360, %v4356
        %v4417 = vpack.c.b16 %v4361, %v4357
        %v4418 = vpack.c.b16 %v4362, %v4358
        %v4419 = vpack.c.b16 %v4367, %v4363
        %v4420 = vpack.c.b16 %v4368, %v4364
        %v4421 = vpack.c.b16 %v4369, %v4365
        %v4422 = vpack.c.b16 %v4370, %v4366
        %v4423 = vpack.c.b16 %v4375, %v4371
        %v4424 = vpack.c.b16 %v4376, %v4372
        %v4425 = vpack.c.b16 %v4377, %v4373
        %v4426 = vpack.c.b16 %v4378, %v4374
        %v4427 = vpack.c.b16 %v4383, %v4379
        %v4428 = vpack.c.b16 %v4384, %v4380
        %v4429 = vpack.c.b16 %v4385, %v4381
        %v4430 = vpack.c.b16 %v4386, %v4382
        %v4431 = vpack.c.b16 %v4391, %v4387
        %v4432 = vpack.c.b16 %v4392, %v4388
        %v4433 = vpack.c.b16 %v4393, %v4389
        %v4434 = vpack.c.b16 %v4394, %v4390
        %v4435 = vpack.c.b16 %v4399, %v4395
        %v4436 = vpack.c.b16 %v4400, %v4396
        %v4437 = vpack.c.b16 %v4401, %v4397
        %v4438 = vpack.c.b16 %v4402, %v4398
        %v4439 = vpack.c.b16 %v4407, %v4403
        %v4440 = vpack.c.b16 %v4408, %v4404
        %v4441 = vpack.c.b16 %v4409, %v4405
        %v4442 = vpack.c.b16 %v4410, %v4406
        %4475 = vmatpush.bf16.msra.mxu0 %v4439
        %4476 = vmatpush.bf16.msra.mxu0 %v4435
        %4477 = vmatpush.bf16.msra.mxu0 %v4431
        %4478 = vmatpush.bf16.msra.mxu0 %v4427
        %4479 = vmatpush.bf16.msra.mxu0 %v4423
        %4480 = vmatpush.bf16.msra.mxu0 %v4419
        %4481 = vmatpush.bf16.msra.mxu0 %v4415
        %4482 = vmatpush.bf16.msra.mxu0 %v4411
        %4483 = vmatmul.bf16.gmra.mxu0 %v2524
        %v4484 = vpop.f32.mrf.mxu0
        %v4485 = vadd.f32 %v4307, %v4484
        %v4486 = vpop.f32.mrf.mxu0
        %v4487 = vadd.f32 %v4307, %v4486
        %4488 = vdwg.mxu0
        %4489 = vmatpush.bf16.msra.mxu0 %v4440
        %4490 = vmatpush.bf16.msra.mxu0 %v4436
        %4491 = vmatpush.bf16.msra.mxu0 %v4432
        %4492 = vmatpush.bf16.msra.mxu0 %v4428
        %4493 = vmatpush.bf16.msra.mxu0 %v4424
        %4494 = vmatpush.bf16.msra.mxu0 %v4420
        %4495 = vmatpush.bf16.msra.mxu0 %v4416
        %4496 = vmatpush.bf16.msra.mxu0 %v4412
        %4497 = vmatmul.bf16.gmra.mxu0 %v2524
        %v4498 = vpop.f32.mrf.mxu0
        %v4499 = vadd.f32 %v4308, %v4498
        %v4500 = vpop.f32.mrf.mxu0
        %v4501 = vadd.f32 %v4308, %v4500
        %4502 = vdwg.mxu0
        %4503 = vmatpush.bf16.msra.mxu0 %v4441
        %4504 = vmatpush.bf16.msra.mxu0 %v4437
        %4505 = vmatpush.bf16.msra.mxu0 %v4433
        %4506 = vmatpush.bf16.msra.mxu0 %v4429
        %4507 = vmatpush.bf16.msra.mxu0 %v4425
        %4508 = vmatpush.bf16.msra.mxu0 %v4421
        %4509 = vmatpush.bf16.msra.mxu0 %v4417
        %4510 = vmatpush.bf16.msra.mxu0 %v4413
        %4511 = vmatmul.bf16.gmra.mxu0 %v2524
        %v4512 = vpop.f32.mrf.mxu0
        %v4513 = vadd.f32 %v4309, %v4512
        %v4514 = vpop.f32.mrf.mxu0
        %v4515 = vadd.f32 %v4309, %v4514
        %4516 = vdwg.mxu0
        %4517 = vmatpush.bf16.msra.mxu0 %v4442
        %4518 = vmatpush.bf16.msra.mxu0 %v4438
        %4519 = vmatpush.bf16.msra.mxu0 %v4434
        %4520 = vmatpush.bf16.msra.mxu0 %v4430
        %4521 = vmatpush.bf16.msra.mxu0 %v4426
        %4522 = vmatpush.bf16.msra.mxu0 %v4422
        %4523 = vmatpush.bf16.msra.mxu0 %v4418
        %4524 = vmatpush.bf16.msra.mxu0 %v4414
        %4525 = vmatmul.bf16.gmra.mxu0 %v2524
        %v4526 = vpop.f32.mrf.mxu0
        %v4527 = vadd.f32 %v4310, %v4526
        %v4528 = vpop.f32.mrf.mxu0
        %v4529 = vadd.f32 %v4310, %v4528
        %4530 = vdwg.mxu0
        %v4531 = vmax.f32 %v4485, 0.0
        %v4532 = vmax.f32 %v4499, 0.0
        %v4533 = vmax.f32 %v4513, 0.0
        %v4534 = vmax.f32 %v4527, 0.0
        %v4535 = vmax.f32 %v4487, 0.0
        %v4536 = vmax.f32 %v4501, 0.0
        %v4537 = vmax.f32 %v4515, 0.0
        %v4538 = vmax.f32 %v4529, 0.0
        %v4539 = vpack.c.bf16 %v4535, %v4531
        %v4540 = vpack.c.bf16 %v4536, %v4532
        %v4541 = vpack.c.bf16 %v4537, %v4533
        %v4542 = vpack.c.bf16 %v4538, %v4534
        %v4543 = vld [vmem:[%s829 + $0x300] sm:$0xf]
        %v4544 = vld [vmem:[%s829 + $0x304] sm:$0xf]
        %v4545 = vld [vmem:[%s829 + $0x308] sm:$0xf]
        %v4546 = vld [vmem:[%s829 + $0x30c] sm:$0xf]
        %v4547 = vld [vmem:[%s829 + $0x310] sm:$0xf]
        %v4548 = vld [vmem:[%s829 + $0x314] sm:$0xf]
        %v4549 = vld [vmem:[%s829 + $0x318] sm:$0xf]
        %v4550 = vld [vmem:[%s829 + $0x31c] sm:$0xf]
        %v4551 = vld [vmem:[%s829 + $0x320] sm:$0xf]
        %v4552 = vld [vmem:[%s829 + $0x324] sm:$0xf]
        %v4553 = vld [vmem:[%s829 + $0x328] sm:$0xf]
        %v4554 = vld [vmem:[%s829 + $0x32c] sm:$0xf]
        %v4555 = vld [vmem:[%s829 + $0x330] sm:$0xf]
        %v4556 = vld [vmem:[%s829 + $0x334] sm:$0xf]
        %v4557 = vld [vmem:[%s829 + $0x338] sm:$0xf]
        %v4558 = vld [vmem:[%s829 + $0x33c] sm:$0xf]
        %v4559 = vld [vmem:[%s829 + $0x340] sm:$0xf]
        %v4560 = vld [vmem:[%s829 + $0x344] sm:$0xf]
        %v4561 = vld [vmem:[%s829 + $0x348] sm:$0xf]
        %v4562 = vld [vmem:[%s829 + $0x34c] sm:$0xf]
        %v4563 = vld [vmem:[%s829 + $0x350] sm:$0xf]
        %v4564 = vld [vmem:[%s829 + $0x354] sm:$0xf]
        %v4565 = vld [vmem:[%s829 + $0x358] sm:$0xf]
        %v4566 = vld [vmem:[%s829 + $0x35c] sm:$0xf]
        %v4567 = vld [vmem:[%s829 + $0x360] sm:$0xf]
        %v4568 = vld [vmem:[%s829 + $0x364] sm:$0xf]
        %v4569 = vld [vmem:[%s829 + $0x368] sm:$0xf]
        %v4570 = vld [vmem:[%s829 + $0x36c] sm:$0xf]
        %v4571 = vld [vmem:[%s829 + $0x370] sm:$0xf]
        %v4572 = vld [vmem:[%s829 + $0x374] sm:$0xf]
        %v4573 = vld [vmem:[%s829 + $0x378] sm:$0xf]
        %v4574 = vld [vmem:[%s829 + $0x37c] sm:$0xf]
        %v4575 = vld [vmem:[%s829 + $0x380] sm:$0xf]
        %v4576 = vld [vmem:[%s829 + $0x384] sm:$0xf]
        %v4577 = vld [vmem:[%s829 + $0x388] sm:$0xf]
        %v4578 = vld [vmem:[%s829 + $0x38c] sm:$0xf]
        %v4579 = vld [vmem:[%s829 + $0x390] sm:$0xf]
        %v4580 = vld [vmem:[%s829 + $0x394] sm:$0xf]
        %v4581 = vld [vmem:[%s829 + $0x398] sm:$0xf]
        %v4582 = vld [vmem:[%s829 + $0x39c] sm:$0xf]
        %v4583 = vld [vmem:[%s829 + $0x3a0] sm:$0xf]
        %v4584 = vld [vmem:[%s829 + $0x3a4] sm:$0xf]
        %v4585 = vld [vmem:[%s829 + $0x3a8] sm:$0xf]
        %v4586 = vld [vmem:[%s829 + $0x3ac] sm:$0xf]
        %v4587 = vld [vmem:[%s829 + $0x3b0] sm:$0xf]
        %v4588 = vld [vmem:[%s829 + $0x3b4] sm:$0xf]
        %v4589 = vld [vmem:[%s829 + $0x3b8] sm:$0xf]
        %v4590 = vld [vmem:[%s829 + $0x3bc] sm:$0xf]
        %v4591 = vld [vmem:[%s829 + $0x3c0] sm:$0xf]
        %v4592 = vld [vmem:[%s829 + $0x3c4] sm:$0xf]
        %v4593 = vld [vmem:[%s829 + $0x3c8] sm:$0xf]
        %v4594 = vld [vmem:[%s829 + $0x3cc] sm:$0xf]
        %v4595 = vld [vmem:[%s829 + $0x3d0] sm:$0xf]
        %v4596 = vld [vmem:[%s829 + $0x3d4] sm:$0xf]
        %v4597 = vld [vmem:[%s829 + $0x3d8] sm:$0xf]
        %v4598 = vld [vmem:[%s829 + $0x3dc] sm:$0xf]
        %v4599 = vld [vmem:[%s829 + $0x3e0] sm:$0xf]
        %v4600 = vld [vmem:[%s829 + $0x3e4] sm:$0xf]
        %v4601 = vld [vmem:[%s829 + $0x3e8] sm:$0xf]
        %v4602 = vld [vmem:[%s829 + $0x3ec] sm:$0xf]
        %v4603 = vld [vmem:[%s829 + $0x3f0] sm:$0xf]
        %v4604 = vld [vmem:[%s829 + $0x3f4] sm:$0xf]
        %v4605 = vld [vmem:[%s829 + $0x3f8] sm:$0xf]
        %v4606 = vld [vmem:[%s829 + $0x3fc] sm:$0xf]
        %v4671 = vunpack.c.l.b16 %v4543
        %v4672 = vunpack.c.l.b16 %v4544
        %v4673 = vunpack.c.l.b16 %v4545
        %v4674 = vunpack.c.l.b16 %v4546
        %v4675 = vunpack.c.l.b16 %v4547
        %v4676 = vunpack.c.l.b16 %v4548
        %v4677 = vunpack.c.l.b16 %v4549
        %v4678 = vunpack.c.l.b16 %v4550
        %v4679 = vunpack.c.l.b16 %v4551
        %v4680 = vunpack.c.l.b16 %v4552
        %v4681 = vunpack.c.l.b16 %v4553
        %v4682 = vunpack.c.l.b16 %v4554
        %v4683 = vunpack.c.l.b16 %v4555
        %v4684 = vunpack.c.l.b16 %v4556
        %v4685 = vunpack.c.l.b16 %v4557
        %v4686 = vunpack.c.l.b16 %v4558
        %v4687 = vunpack.c.l.b16 %v4559
        %v4688 = vunpack.c.l.b16 %v4560
        %v4689 = vunpack.c.l.b16 %v4561
        %v4690 = vunpack.c.l.b16 %v4562
        %v4691 = vunpack.c.l.b16 %v4563
        %v4692 = vunpack.c.l.b16 %v4564
        %v4693 = vunpack.c.l.b16 %v4565
        %v4694 = vunpack.c.l.b16 %v4566
        %v4695 = vunpack.c.l.b16 %v4567
        %v4696 = vunpack.c.l.b16 %v4568
        %v4697 = vunpack.c.l.b16 %v4569
        %v4698 = vunpack.c.l.b16 %v4570
        %v4699 = vunpack.c.l.b16 %v4571
        %v4700 = vunpack.c.l.b16 %v4572
        %v4701 = vunpack.c.l.b16 %v4573
        %v4702 = vunpack.c.l.b16 %v4574
        %v4703 = vunpack.c.l.b16 %v4575
        %v4704 = vunpack.c.l.b16 %v4576
        %v4705 = vunpack.c.l.b16 %v4577
        %v4706 = vunpack.c.l.b16 %v4578
        %v4707 = vunpack.c.l.b16 %v4579
        %v4708 = vunpack.c.l.b16 %v4580
        %v4709 = vunpack.c.l.b16 %v4581
        %v4710 = vunpack.c.l.b16 %v4582
        %v4711 = vunpack.c.l.b16 %v4583
        %v4712 = vunpack.c.l.b16 %v4584
        %v4713 = vunpack.c.l.b16 %v4585
        %v4714 = vunpack.c.l.b16 %v4586
        %v4715 = vunpack.c.l.b16 %v4587
        %v4716 = vunpack.c.l.b16 %v4588
        %v4717 = vunpack.c.l.b16 %v4589
        %v4718 = vunpack.c.l.b16 %v4590
        %v4719 = vunpack.c.l.b16 %v4591
        %v4720 = vunpack.c.l.b16 %v4592
        %v4721 = vunpack.c.l.b16 %v4593
        %v4722 = vunpack.c.l.b16 %v4594
        %v4723 = vunpack.c.l.b16 %v4595
        %v4724 = vunpack.c.l.b16 %v4596
        %v4725 = vunpack.c.l.b16 %v4597
        %v4726 = vunpack.c.l.b16 %v4598
        %v4727 = vunpack.c.l.b16 %v4599
        %v4728 = vunpack.c.l.b16 %v4600
        %v4729 = vunpack.c.l.b16 %v4601
        %v4730 = vunpack.c.l.b16 %v4602
        %v4731 = vunpack.c.l.b16 %v4603
        %v4732 = vunpack.c.l.b16 %v4604
        %v4733 = vunpack.c.l.b16 %v4605
        %v4734 = vunpack.c.l.b16 %v4606
        %v4735 = vpack.c.b16 %v4672, %v4671
        %v4736 = vpack.c.b16 %v4674, %v4673
        %v4737 = vpack.c.b16 %v4676, %v4675
        %v4738 = vpack.c.b16 %v4678, %v4677
        %v4739 = vpack.c.b16 %v4680, %v4679
        %v4740 = vpack.c.b16 %v4682, %v4681
        %v4741 = vpack.c.b16 %v4684, %v4683
        %v4742 = vpack.c.b16 %v4686, %v4685
        %v4743 = vpack.c.b16 %v4688, %v4687
        %v4744 = vpack.c.b16 %v4690, %v4689
        %v4745 = vpack.c.b16 %v4692, %v4691
        %v4746 = vpack.c.b16 %v4694, %v4693
        %v4747 = vpack.c.b16 %v4696, %v4695
        %v4748 = vpack.c.b16 %v4698, %v4697
        %v4749 = vpack.c.b16 %v4700, %v4699
        %v4750 = vpack.c.b16 %v4702, %v4701
        %v4751 = vpack.c.b16 %v4704, %v4703
        %v4752 = vpack.c.b16 %v4706, %v4705
        %v4753 = vpack.c.b16 %v4708, %v4707
        %v4754 = vpack.c.b16 %v4710, %v4709
        %v4755 = vpack.c.b16 %v4712, %v4711
        %v4756 = vpack.c.b16 %v4714, %v4713
        %v4757 = vpack.c.b16 %v4716, %v4715
        %v4758 = vpack.c.b16 %v4718, %v4717
        %v4759 = vpack.c.b16 %v4720, %v4719
        %v4760 = vpack.c.b16 %v4722, %v4721
        %v4761 = vpack.c.b16 %v4724, %v4723
        %v4762 = vpack.c.b16 %v4726, %v4725
        %v4763 = vpack.c.b16 %v4728, %v4727
        %v4764 = vpack.c.b16 %v4730, %v4729
        %v4765 = vpack.c.b16 %v4732, %v4731
        %v4766 = vpack.c.b16 %v4734, %v4733
        %4799 = vmatpush.bf16.msra.mxu0 %v4742
        %4800 = vmatpush.bf16.msra.mxu0 %v4741
        %4801 = vmatpush.bf16.msra.mxu0 %v4740
        %4802 = vmatpush.bf16.msra.mxu0 %v4739
        %4803 = vmatpush.bf16.msra.mxu0 %v4738
        %4804 = vmatpush.bf16.msra.mxu0 %v4737
        %4805 = vmatpush.bf16.msra.mxu0 %v4736
        %4806 = vmatpush.bf16.msra.mxu0 %v4735
        %4807 = vmatmul.bf16.gmra.mxu0 %v4539
        %v4808 = vpop.f32.mrf.mxu0
        %v4809 = vadd.f32 0.0, %v4808
        %v4810 = vpop.f32.mrf.mxu0
        %v4811 = vadd.f32 0.0, %v4810
        %4812 = vdwg.mxu0
        %4813 = vmatpush.bf16.msra.mxu0 %v4750
        %4814 = vmatpush.bf16.msra.mxu0 %v4749
        %4815 = vmatpush.bf16.msra.mxu0 %v4748
        %4816 = vmatpush.bf16.msra.mxu0 %v4747
        %4817 = vmatpush.bf16.msra.mxu0 %v4746
        %4818 = vmatpush.bf16.msra.mxu0 %v4745
        %4819 = vmatpush.bf16.msra.mxu0 %v4744
        %4820 = vmatpush.bf16.msra.mxu0 %v4743
        %4821 = vmatmul.bf16.gmra.mxu0 %v4540
        %v4822 = vpop.f32.mrf.mxu0
        %v4823 = vadd.f32 %v4809, %v4822
        %v4824 = vpop.f32.mrf.mxu0
        %v4825 = vadd.f32 %v4811, %v4824
        %4826 = vdwg.mxu0
        %4827 = vmatpush.bf16.msra.mxu0 %v4758
        %4828 = vmatpush.bf16.msra.mxu0 %v4757
        %4829 = vmatpush.bf16.msra.mxu0 %v4756
        %4830 = vmatpush.bf16.msra.mxu0 %v4755
        %4831 = vmatpush.bf16.msra.mxu0 %v4754
        %4832 = vmatpush.bf16.msra.mxu0 %v4753
        %4833 = vmatpush.bf16.msra.mxu0 %v4752
        %4834 = vmatpush.bf16.msra.mxu0 %v4751
        %4835 = vmatmul.bf16.gmra.mxu0 %v4541
        %v4836 = vpop.f32.mrf.mxu0
        %v4837 = vadd.f32 %v4823, %v4836
        %v4838 = vpop.f32.mrf.mxu0
        %v4839 = vadd.f32 %v4825, %v4838
        %4840 = vdwg.mxu0
        %4841 = vmatpush.bf16.msra.mxu0 %v4766
        %4842 = vmatpush.bf16.msra.mxu0 %v4765
        %4843 = vmatpush.bf16.msra.mxu0 %v4764
        %4844 = vmatpush.bf16.msra.mxu0 %v4763
        %4845 = vmatpush.bf16.msra.mxu0 %v4762
        %4846 = vmatpush.bf16.msra.mxu0 %v4761
        %4847 = vmatpush.bf16.msra.mxu0 %v4760
        %4848 = vmatpush.bf16.msra.mxu0 %v4759
        %4849 = vmatmul.bf16.gmra.mxu0 %v4542
        %v4850 = vpop.f32.mrf.mxu0
        %v4851 = vadd.f32 %v4837, %v4850
        %v4852 = vpop.f32.mrf.mxu0
        %v4853 = vadd.f32 %v4839, %v4852
        %4854 = vdwg.mxu0
        %v4855 = vadd.f32 %v4271, %v4851
        %v4856 = vadd.f32 %v4272, %v4853
        %v4857 = vld [vmem:[%s838] sm:$0x1]
        %v4859 = vperm.slane %v4857, 0
        %v4861 = vadd.f32 %v4855, %v4859
        %v4862 = vadd.f32 %v4856, %v4859
        %v4863 = vadd.f32 %v2522, %v4861
        %v4864 = vadd.f32 %v2523, %v4862
        %v4865 = vld [vmem:[%s847] sm:$0x1]
        %v4866 = vld [vmem:[%s856] sm:$0x1]
        %4867 = vadd.xlane.f32.xlu0 %v4863
        %v4868 = vpop.xlane.xlu0 %4867
        %4869 = vadd.xlane.f32.xlu0 %v4864
        %v4870 = vpop.xlane.xlu0 %4869
        %v4871 = vmul.f32 %v4868, %v2477
        %v4872 = vmul.f32 %v4870, %v2477
        %v4873 = vsub.f32 %v4863, %v4871
        %v4874 = vsub.f32 %v4864, %v4872
        %v4875 = vmul.f32 %v4873, %v4873
        %v4876 = vmul.f32 %v4874, %v4874
        %4877 = vadd.xlane.f32.xlu0 %v4875
        %v4878 = vpop.xlane.xlu0 %4877
        %4879 = vadd.xlane.f32.xlu0 %v4876
        %v4880 = vpop.xlane.xlu0 %4879
        %v4881 = vmul.f32 %v4878, %v2477
        %v4882 = vmul.f32 %v4880, %v2477
        %v4883 = vadd.f32 %v4881, 1e-05
        %v4884 = vadd.f32 %v4882, 1e-05
        %v4885 = vrsqrt.pop %v4883
        %v4886 = vmul.f32 %v4885, %v4883
        %v4887 = vmul.f32 %v4886, %v4885
        %v4888 = vmul.f32 0.5, %v4887
        %v4889 = vsub.f32 1.5, %v4888
        %v4890 = vmul.f32 %v4885, %v4889
        %vm4891 = vweird.f32 %v4883
        %vm4892 = vweird.f32 %v4885
        %vm4893 = vmor %vm4891, %vm4892
        %v4894 = vsel %vm4893, %v4885, %v4890
        %v4895 = vrsqrt.pop %v4884
        %v4896 = vmul.f32 %v4895, %v4884
        %v4897 = vmul.f32 %v4896, %v4895
        %v4898 = vmul.f32 0.5, %v4897
        %v4899 = vsub.f32 1.5, %v4898
        %v4900 = vmul.f32 %v4895, %v4899
        %vm4901 = vweird.f32 %v4884
        %vm4902 = vweird.f32 %v4895
        %vm4903 = vmor %vm4901, %vm4902
        %v4904 = vsel %vm4903, %v4895, %v4900
        %v4905 = vmul.f32 %v4873, %v4894
        %v4906 = vmul.f32 %v4874, %v4904
        %v4908 = vperm.slane %v4865, 0
        %v4910 = vmul.f32 %v4905, %v4908
        %v4911 = vmul.f32 %v4906, %v4908
        %v4913 = vperm.slane %v4866, 0
        %v4915 = vadd.f32 %v4910, %v4913
        %v4916 = vadd.f32 %v4911, %v4913
        %4917 = vst [vmem:[#allocation2] sm:$0xff] %v4915
        %4918 = vst [vmem:[#allocation2 + $0x8] sm:$0xff] %v4916
        %p4919 = scmp.eq.s32.totalorder %s50, 5
        // Predicated region
        $region145: #{transformer_classifier_forward.1} parent=83 // pred_check
          %p4920 = pneg %p4919
        $region146: #{transformer_classifier_forward.1} parent=83 // pred_check_branch
          %4922 = sbr.rel (%p4920) target = $region148
        $region147: #{transformer_classifier_forward.1} parent=83 // pred_region
          %v4923 = vrot.slane %v4915, 4
          %v4924 = vadd.f32 %v4915, %v4923
          %v4925 = vrot.slane %v4924, 2
          %v4926 = vadd.f32 %v4924, %v4925
          %v4927 = vrot.slane %v4926, 1
          %v4928 = vadd.f32 %v4926, %v4927
          %v4929 = vrot.slane %v4916, 4
          %v4930 = vadd.f32 %v4916, %v4929
          %v4931 = vrot.slane %v4930, 2
          %v4932 = vadd.f32 %v4930, %v4931
          %v4933 = vrot.slane %v4932, 1
          %v4934 = vadd.f32 %v4932, %v4933
          %v4935 = vrcp.pop 8.0
          %v4936 = vmul.f32 8.0, %v4935
          %v4937 = vsub.f32 1.0, %v4936
          %v4938 = vmul.f32 %v4935, %v4937
          %v4939 = vadd.f32 %v4935, %v4938
          %vm4940 = vweird.f32 %v4935
          %v4941 = vsel %vm4940, %v4935, %v4939
          %v4942 = vmul.f32 %v4928, %v4941
          %v4943 = vmul.f32 %v4934, %v4941
          %v4944 = vpack.c.bf16 %v4942, %v4942
          %v4945 = vpack.c.bf16 %v4943, %v4943
          %v4946 = vld [vmem:[#allocation23] sm:$0xf]
          %v4947 = vld [vmem:[#allocation23 + $0x4] sm:$0xf]
          %v4948 = vld [vmem:[#allocation23 + $0x8] sm:$0xf]
          %v4949 = vld [vmem:[#allocation23 + $0xc] sm:$0xf]
          %v4950 = vld [vmem:[#allocation23 + $0x10] sm:$0xf]
          %v4951 = vld [vmem:[#allocation23 + $0x14] sm:$0xf]
          %v4952 = vld [vmem:[#allocation23 + $0x18] sm:$0xf]
          %v4953 = vld [vmem:[#allocation23 + $0x1c] sm:$0xf]
          %v4954 = vld [vmem:[#allocation23 + $0x20] sm:$0xf]
          %v4955 = vld [vmem:[#allocation23 + $0x24] sm:$0xf]
          %v4956 = vld [vmem:[#allocation23 + $0x28] sm:$0xf]
          %v4957 = vld [vmem:[#allocation23 + $0x2c] sm:$0xf]
          %v4958 = vld [vmem:[#allocation23 + $0x30] sm:$0xf]
          %v4959 = vld [vmem:[#allocation23 + $0x34] sm:$0xf]
          %v4960 = vld [vmem:[#allocation23 + $0x38] sm:$0xf]
          %v4961 = vld [vmem:[#allocation23 + $0x3c] sm:$0xf]
          %v4962 = vld [vmem:[#allocation24] sm:$0x1]
          %v4964 = vperm.slane %v4962, 0
          %v4968 = vunpack.c.l.b16 %v4944
          %v4969 = vunpack.c.l.b16 %v4945
          %vm4970 = vcmask 1041409
          %v4971 = vsel %vm4970, %v4969, %v4968
          %v4972 = vpack.c.b16 %v4971, %v4971
          %v4990 = vunpack.c.l.b16 %v4946
          %v4991 = vunpack.c.l.b16 %v4947
          %v4992 = vunpack.c.l.b16 %v4948
          %v4993 = vunpack.c.l.b16 %v4949
          %v4994 = vunpack.c.l.b16 %v4950
          %v4995 = vunpack.c.l.b16 %v4951
          %v4996 = vunpack.c.l.b16 %v4952
          %v4997 = vunpack.c.l.b16 %v4953
          %v4998 = vunpack.c.l.b16 %v4954
          %v4999 = vunpack.c.l.b16 %v4955
          %v5000 = vunpack.c.l.b16 %v4956
          %v5001 = vunpack.c.l.b16 %v4957
          %v5002 = vunpack.c.l.b16 %v4958
          %v5003 = vunpack.c.l.b16 %v4959
          %v5004 = vunpack.c.l.b16 %v4960
          %v5005 = vunpack.c.l.b16 %v4961
          %v5006 = vpack.c.b16 %v4991, %v4990
          %v5007 = vpack.c.b16 %v4993, %v4992
          %v5008 = vpack.c.b16 %v4995, %v4994
          %v5009 = vpack.c.b16 %v4997, %v4996
          %v5010 = vpack.c.b16 %v4999, %v4998
          %v5011 = vpack.c.b16 %v5001, %v5000
          %v5012 = vpack.c.b16 %v5003, %v5002
          %v5013 = vpack.c.b16 %v5005, %v5004
          %5022 = vmatpush.bf16.msra.mxu0 %v5013
          %5023 = vmatpush.bf16.msra.mxu0 %v5012
          %5024 = vmatpush.bf16.msra.mxu0 %v5011
          %5025 = vmatpush.bf16.msra.mxu0 %v5010
          %5026 = vmatpush.bf16.msra.mxu0 %v5009
          %5027 = vmatpush.bf16.msra.mxu0 %v5008
          %5028 = vmatpush.bf16.msra.mxu0 %v5007
          %5029 = vmatpush.bf16.msra.mxu0 %v5006
          %5030 = vmatmul.bf16.gmra.mxu0 %v4972
          %v5031 = vpop.f32.mrf.mxu0
          %v5032 = vadd.f32 %v4964, %v5031
          %v5033 = vpop.f32.mrf.mxu0
          %5034 = vdwg.mxu0
          %5035 = vst [vmem:[#allocation26] sm:$0x3] %v5032
        $region148: #{transformer_classifier_forward.1} parent=83 // pred_fallthru
          _
        // Predicated region
        $region149: #{transformer_classifier_forward.1} parent=83 // pred_check
          %p5036 = pneg %p459
        $region150: #{transformer_classifier_forward.1} parent=83 // pred_check_branch
          %5038 = sbr.rel (%p5036) target = $region152
        $region151: #{transformer_classifier_forward.1} parent=83 // pred_region
          %5040 = vsyncadd [#allocation5], 0
          %s5042 = sshll.u32 [#allocation26], 4
          %s5043 = int_to_ptr.vmem [resolvable:$true] %s5042
          %s5044 = sshll.u32 %s16, 4
          %s5045 = int_to_ptr.hbm [resolvable:$true] %s5044
          %5047 = dma.vmem_to_hbm [thread:$0]  %s5043, 32, %s5045, [#allocation5]
        $region152: #{transformer_classifier_forward.1} parent=83 // pred_fallthru
          _
        // Predicated region
        $region153: #{transformer_classifier_forward.1} parent=83 // pred_check
          %p5048 = pneg %p459
        $region154: #{transformer_classifier_forward.1} parent=83 // pred_check_branch
          %5050 = sbr.rel (%p5048) target = $region156
        $region155: #{transformer_classifier_forward.1} parent=83 // pred_region
          %5052 = dma.done [#allocation5], 32
        $region156: #{transformer_classifier_forward.1} parent=83 // pred_fallthru
          _
      $region84: #{transformer_classifier_forward.1} parent=5 // pred_fallthru
        _
      %p5053 = scmp.le.s32.totalorder 2, %s45
      // Predicated region
      $region157: #{transformer_classifier_forward.1} parent=5 // pred_check
        %p5054 = pneg %p5053
      $region158: #{transformer_classifier_forward.1} parent=5 // pred_check_branch
        %5056 = sbr.rel (%p5054) target = $region160
      $region159: #{transformer_classifier_forward.1} parent=5 // pred_region
        %s5057 = ssub.s32 %s45, 2
      $region160: #{transformer_classifier_forward.1} parent=5 // pred_fallthru
        _
    $region6: #{transformer_classifier_forward.1} parent=1 // loop_footer
      %s49 = sadd.s32 1, %s45
    $region7: #{transformer_classifier_forward.1} parent=1 // loop_footer_branch
      %44 = sbr.rel target = $region3
    $region8: #{transformer_classifier_forward.1} parent=1 // loop_exit
      _
    %5058 = vsyncpa [#allocation4], 1
    %s5059 = scalar_lea.sflag [#allocation4], 1
    %5060 = vsyncpa %s5059, 1
    %5061 = vsyncpa [#allocation7], 1
    %s5062 = scalar_lea.sflag [#allocation7], 1
    %5063 = vsyncpa %s5062, 1
    %5064 = vsyncpa [#allocation10], 1
    %s5065 = scalar_lea.sflag [#allocation10], 1
    %5066 = vsyncpa %s5065, 1
    %5067 = vsyncpa [#allocation13], 1
    %s5068 = scalar_lea.sflag [#allocation13], 1
    %5069 = vsyncpa %s5068, 1
    %5070 = vsyncpa [#allocation16], 1
    %s5071 = scalar_lea.sflag [#allocation16], 1
    %5072 = vsyncpa %s5071, 1
    %5073 = vsyncpa [#allocation19], 1
    %s5074 = scalar_lea.sflag [#allocation19], 1
    %5075 = vsyncpa %s5074, 1
    %5076 = vsyncpa [#allocation22], 1
    %s5077 = scalar_lea.sflag [#allocation22], 1
    %5078 = vsyncpa %s5077, 1
    %5079 = vsyncpa [#allocation25], 1
    %5080 = vsyncpa [#allocation5], 1
    %s5081 = scalar_lea.sflag [#allocation5], 1
    %5082 = vsyncpa %s5081, 1

</llo_original>
